<compile_context>
chip_gen: v6e
topology: v6e:2x2x1
jax: 0.10.0
libtpu: 0.0.40
codegen_flags: <defaults>
</compile_context>

<pallas_src>
import functools

import jax
import jax.numpy as jnp
from jax.experimental import pallas as pl
from jax.experimental.pallas import tpu as pltpu

LN_EPS = 1e-5    # torch.nn.LayerNorm default eps
NEG_INF = -1e9   # finite mask value: avoids NaN on fully-masked rows


# ---------------------------------------------------------------------------
# in-kernel math helpers
# ---------------------------------------------------------------------------

def _erf_approx(x):
    # Abramowitz & Stegun 7.1.26 rational approximation (~1.5e-7 abs error);
    # the divide is an approximate EUP reciprocal (perf review item).
    a1, a2, a3, a4, a5 = 0.254829592, -0.284496736, 1.421413741, -1.453152027, 1.061405429
    p = 0.3275911
    ax = jnp.abs(x)
    t = pl.reciprocal(1.0 + p * ax, approx=True)
    poly = ((((a5 * t + a4) * t + a3) * t + a2) * t + a1) * t
    y = 1.0 - poly * jnp.exp(-ax * ax)
    return jnp.where(x >= 0.0, y, -y)


def _gelu(x):
    # torch.nn.GELU() default = exact (erf) gelu, approximated as above.
    return 0.5 * x * (1.0 + _erf_approx(x * 0.7071067811865476))


# ---------------------------------------------------------------------------
# kernel 1: adaLN modulate + fused QKV projection + RoPE
# ---------------------------------------------------------------------------

def _adaln_qkv_rope_kernel(x_ref, shift_ref, scale_ref, cos_ref, sinr_ref,
                           wqkv_ref, bqkv_ref, q_ref, k_ref, v_ref,
                           *, num_heads, head_dim):
    f32, bf16 = jnp.float32, jnp.bfloat16
    H, HD = num_heads, head_dim
    W = H * HD
    half = HD // 2

    x = x_ref[0].astype(f32)                  # (TS, D)
    ts = x.shape[0]

    # LayerNorm (no affine), single-pass stats: var = E[x^2] - mu^2
    mu = jnp.mean(x, axis=-1, keepdims=True)
    var = jnp.mean(x * x, axis=-1, keepdims=True) - mu * mu
    x_ln = (x - mu) * jax.lax.rsqrt(var + LN_EPS)
    nh = x_ln * (1.0 + scale_ref[0]) + shift_ref[0]          # adaLN modulate

    # fused QKV projection; the q slab of wqkv/bqkv is pre-scaled by
    # 1/sqrt(head_dim) in the wrapper.
    qkv = jnp.dot(nh.astype(bf16), wqkv_ref[...],
                  preferred_element_type=f32) + bqkv_ref[...]  # (TS, 3W)
    q, k, v = qkv[:, :W], qkv[:, W:2 * W], qkv[:, 2 * W:]

    # Rotate-half RoPE on the flat (TS, W) layout: two XLU rolls + one select,
    # with the rotate-half sign folded into the (T, HD) sin table.  Tables are
    # H-times smaller than full-width ones; tiling happens in VMEM only.
    cos = jnp.tile(cos_ref[...], (1, H))      # (TS, W)
    sinr = jnp.tile(sinr_ref[...], (1, H))
    lane = jax.lax.broadcasted_iota(jnp.int32, (ts, W), 1)
    is_lo = (lane % HD) < half

    def rope(u):
        fwd = pltpu.roll(u, shift=half, axis=1)        # u[c - half]
        bwd = pltpu.roll(u, shift=W - half, axis=1)    # u[c + half]
        return u * cos + jnp.where(is_lo, bwd, fwd) * sinr

    q_ref[0] = rope(q).astype(bf16)
    k_ref[0] = rope(k).astype(bf16)
    v_ref[0] = v.astype(bf16)


# ---------------------------------------------------------------------------
# kernel 2: flash attention over (batch, head, q-tile, kv-tile) grid
# ---------------------------------------------------------------------------

def _flash_attn_kernel(*refs, has_mask, exp_dtype):
    f32, bf16 = jnp.float32, jnp.bfloat16
    if has_mask:
        q_ref, k_ref, v_ref, km_ref, o_ref, m_sc, l_sc, acc_sc = refs
    else:
        q_ref, k_ref, v_ref, o_ref, m_sc, l_sc, acc_sc = refs
        km_ref = None

    ki = pl.program_id(3)

    @pl.when(ki == 0)
    def _():
        m_sc[...] = jnp.full_like(m_sc, NEG_INF)
        l_sc[...] = jnp.zeros_like(l_sc)
        acc_sc[...] = jnp.zeros_like(acc_sc)

    # scores; q already carries the 1/sqrt(head_dim) softmax scale
    s = jax.lax.dot_general(q_ref[0], k_ref[0], (((1,), (1,)), ((), ())),
                            preferred_element_type=f32)        # (TQ, TKV)
    if has_mask:
        s = jnp.where(km_ref[0] > 0.5, s, NEG_INF)              # (1,TKV) bcast

    m_prev = m_sc[...]
    m_new = jnp.maximum(m_prev, jnp.max(s, axis=-1, keepdims=True))
    alpha = jnp.exp(m_prev - m_new)
    # bf16 exp on bf16-capable EUPs (v6e/v7x); f32 on v5e
    p = jnp.exp((s - m_new).astype(exp_dtype))
    l_sc[...] = alpha * l_sc[...] + jnp.sum(p.astype(f32), axis=-1, keepdims=True)
    acc_sc[...] = alpha * acc_sc[...] + jnp.dot(p.astype(bf16), v_ref[0],
                                                preferred_element_type=f32)
    m_sc[...] = m_new

    @pl.when(ki == pl.num_programs(3) - 1)
    def _():
        o_ref[0] = (acc_sc[...] * pl.reciprocal(l_sc[...], approx=True)
                    ).astype(o_ref.dtype)


# ---------------------------------------------------------------------------
# kernel 3: output projection + gated residual + RMSNorm + gated MLP
# ---------------------------------------------------------------------------

def _out_mlp_kernel(ctx_ref, x_ref, gate_ref, wo_ref, bo_ref, wrms_ref,
                    wgu_ref, wdn_ref, o_ref, *, rms_eps):
    f32, bf16 = jnp.float32, jnp.bfloat16
    x = x_ref[0].astype(f32)                     # (TS, D)
    gate = gate_ref[0].astype(f32)               # (1, D) adaLN gate, bcast over seq

    # attention output projection (K = num_heads * head_dim, full width)
    x_att = jnp.dot(ctx_ref[0], wo_ref[...],
                    preferred_element_type=f32) + bo_ref[...]

    # gated residual
    hidden = x + gate * x_att

    # RMSNorm
    ms = jnp.mean(hidden * hidden, axis=-1, keepdims=True)
    hn = hidden * jax.lax.rsqrt(ms + rms_eps) * wrms_ref[...]

    # GatedVariantsMLP: fused gate/up matmul, gelu(gate) * up, down projection
    hn_b = hn.astype(bf16)
    ffn = wgu_ref.shape[-1] // 2
    gu = jnp.dot(hn_b, wgu_ref[...], preferred_element_type=f32)   # (TS, 2*FFN)
    act = _gelu(gu[:, :ffn]) * gu[:, ffn:]
    mlp = jnp.dot(act.astype(bf16), wdn_ref[...], preferred_element_type=f32)

    # residual over the RMS-normed states, exactly as in the reference forward.
    # TODO(synk): the fp16 clip(-65504, 65504) branch is a no-op for f32/bf16.
    o_ref[0] = (mlp + hn).astype(o_ref.dtype)


# ---------------------------------------------------------------------------
# wrapper
# ---------------------------------------------------------------------------

def _const_spec(arr, single_buffer):
    nd = arr.ndim
    idx = lambda *_: (0,) * nd
    if single_buffer:
        try:
            # constant-index operands: fetch once, no double buffering (halves
            # their VMEM footprint; matters most on v7x's 64 MiB VMEM).
            return pl.BlockSpec(arr.shape, idx, pipeline_mode=pl.Buffered(1))
        except (TypeError, AttributeError):
            pass
    return pl.BlockSpec(arr.shape, idx)


def _vmem_limit_bytes():
    # ~75% of physical VMEM: ~48 MiB on v7x, ~96 MiB on v5e/v6e.
    try:
        return int(pltpu.get_tpu_info().vmem_capacity_bytes) * 3 // 4
    except Exception:
        return 48 * 1024 * 1024


def _has_bf16_eup():
    # v6e / v7x EUPs have a bf16 path; v5e (and older) do not.
    try:
        kind = jax.devices()[0].device_kind.lower()
    except Exception:
        return False
    return not any(tag in kind for tag in ("v2", "v3", "v4", "v5"))


def flux_single_transformer_block(x, temb, key_mask, pos_emb, params, *,
                                  num_heads, head_dim, rms_eps=1e-5,
                                  seq_tile=None, q_tile=None, kv_tile=None,
                                  single_buffer_weights=True):
    """key_mask: (B, T) with 1.0 = key position attendable, or None (no mask).
    TODO(synk): general per-query (B,T,T) masks would need the full-bias path;
    the compact per-key mask covers the padding-mask case of the reference."""
    f32, bf16 = jnp.float32, jnp.bfloat16
    B, T, D = x.shape
    H, HD = num_heads, head_dim
    W = H * HD

    seq_tile = seq_tile or min(T, 256)
    q_tile = q_tile or min(T, 256)
    kv_tile = kv_tile or min(T, 256)   # >=256 keeps probs@V MXU-deep on v6e/v7x
    assert T % seq_tile == 0 and T % q_tile == 0 and T % kv_tile == 0
    assert D % 128 == 0 and HD % 128 == 0 and T % 8 == 0

    exp_dtype = bf16 if _has_bf16_eup() else f32
    vmem_limit = _vmem_limit_bytes()
    has_mask = key_mask is not None

    # ---- wrapper-side precompute (plain XLA, once per call) ----
    # adaLN-Zero shift/scale/gate hoisted out of the kernel (M=1 matmul with a
    # (D,3D) weight slab that dominated weight DMA / VMEM).
    t_act = jax.nn.gelu(temb.astype(f32), approximate=False)
    ada = t_act @ params["w_ada"].astype(f32) + params["b_ada"].reshape(1, 3 * D)
    shift = ada[:, :D].reshape(B, 1, D)
    scale = ada[:, D:2 * D].reshape(B, 1, D)
    gate = ada[:, 2 * D:].reshape(B, 1, D)

    # RoPE tables stored (T, head_dim); rotate-half sign folded into sin.
    cos_h = jnp.cos(pos_emb).astype(f32)
    sin_h = jnp.sin(pos_emb).astype(f32)
    cos_t = jnp.concatenate([cos_h, cos_h], axis=-1)        # (T, HD)
    sinr_t = jnp.concatenate([-sin_h, sin_h], axis=-1)       # (T, HD)

    # fused QKV weight/bias, softmax scale folded into the q slab
    inv_sqrt_d = 1.0 / float(HD) ** 0.5
    wqkv = jnp.concatenate([params["wq"] * inv_sqrt_d, params["wk"],
                            params["wv"]], axis=-1).astype(bf16)       # (D, 3W)
    bqkv = jnp.concatenate([params["bq"] * inv_sqrt_d, params["bk"],
                            params["bv"]], axis=-1).astype(f32)        # (1, 3W)

    # fused MLP gate/up weight
    wgu = jnp.concatenate([params["w_gate"], params["w_up"]], axis=-1).astype(bf16)
    wdn = params["w_down"].astype(bf16)
    wo = params["wo"].astype(bf16)
    bo = params["bo"].astype(f32)
    wrms = params["w_rms"].astype(f32)

    cparams = lambda sem: pltpu.CompilerParams(dimension_semantics=sem,
                                               vmem_limit_bytes=vmem_limit)
    cs = functools.partial(_const_spec, single_buffer=single_buffer_weights)

    # ---- kernel 1: adaLN modulate + fused QKV + RoPE ----
    n_seq = T // seq_tile
    q_rot, k_rot, v_proj = pl.pallas_call(
        functools.partial(_adaln_qkv_rope_kernel, num_heads=H, head_dim=HD),
        out_shape=(jax.ShapeDtypeStruct((B, T, W), bf16),) * 3,
        grid=(B, n_seq),
        in_specs=[
            pl.BlockSpec((1, seq_tile, D), lambda b, i: (b, i, 0)),   # x
            pl.BlockSpec((1, 1, D), lambda b, i: (b, 0, 0)),          # shift
            pl.BlockSpec((1, 1, D), lambda b, i: (b, 0, 0)),          # scale
            pl.BlockSpec((seq_tile, HD), lambda b, i: (i, 0)),        # cos
            pl.BlockSpec((seq_tile, HD), lambda b, i: (i, 0)),        # sin (signed)
            cs(wqkv), cs(bqkv),
        ],
        out_specs=tuple(pl.BlockSpec((1, seq_tile, W), lambda b, i: (b, i, 0))
                        for _ in range(3)),
        compiler_params=cparams(("parallel", "parallel")),
    )(x, shift, scale, cos_t, sinr_t, wqkv, bqkv)

    # ---- kernel 2: flash attention, grid = (B, H, q-tiles, kv-tiles) ----
    n_q, n_kv = T // q_tile, T // kv_tile
    attn_in_specs = [
        pl.BlockSpec((1, q_tile, HD), lambda b, h, qi, ki: (b, qi, h)),
        pl.BlockSpec((1, kv_tile, HD), lambda b, h, qi, ki: (b, ki, h)),
        pl.BlockSpec((1, kv_tile, HD), lambda b, h, qi, ki: (b, ki, h)),
    ]
    attn_inputs = [q_rot, k_rot, v_proj]
    if has_mask:
        km = key_mask.reshape(B, 1, T).astype(f32)
        attn_in_specs.append(
            pl.BlockSpec((1, 1, kv_tile), lambda b, h, qi, ki: (b, 0, ki)))
        attn_inputs.append(km)

    ctx = pl.pallas_call(
        functools.partial(_flash_attn_kernel, has_mask=has_mask,
                          exp_dtype=exp_dtype),
        out_shape=jax.ShapeDtypeStruct((B, T, W), bf16),
        grid=(B, H, n_q, n_kv),
        in_specs=attn_in_specs,
        out_specs=pl.BlockSpec((1, q_tile, HD), lambda b, h, qi, ki: (b, qi, h)),
        scratch_shapes=[pltpu.VMEM((q_tile, 1), f32),     # running max
                        pltpu.VMEM((q_tile, 1), f32),     # running denom
                        pltpu.VMEM((q_tile, HD), f32)],   # context accumulator
        compiler_params=cparams(("parallel", "parallel", "parallel", "arbitrary")),
    )(*attn_inputs)

    # ---- kernel 3: out projection + gated residual + RMSNorm + gated MLP ----
    return pl.pallas_call(
        functools.partial(_out_mlp_kernel, rms_eps=rms_eps),
        out_shape=jax.ShapeDtypeStruct((B, T, D), x.dtype),
        grid=(B, n_seq),
        in_specs=[
            pl.BlockSpec((1, seq_tile, W), lambda b, i: (b, i, 0)),   # ctx
            pl.BlockSpec((1, seq_tile, D), lambda b, i: (b, i, 0)),   # x (residual)
            pl.BlockSpec((1, 1, D), lambda b, i: (b, 0, 0)),          # gate
            cs(wo), cs(bo), cs(wrms), cs(wgu), cs(wdn),
        ],
        out_specs=pl.BlockSpec((1, seq_tile, D), lambda b, i: (b, i, 0)),
        compiler_params=cparams(("parallel", "parallel")),
    )(ctx, x, gate, wo, bo, wrms, wgu, wdn)


def init_params(key, dim, num_heads, head_dim, ffn_dim):
    """Deterministic synthetic parameters (shapes match the torch module)."""
    hd = num_heads * head_dim
    ks = jax.random.split(key, 12)

    def normal(k, shape, std):
        return jax.random.normal(k, shape, jnp.float32) * std

    return {
        # AdaLayerNormZeroSingle.lin: kaiming_normal_(nonlinearity='linear')
        "w_ada": normal(ks[0], (dim, 3 * dim), dim ** -0.5),
        "b_ada": jnp.zeros((1, 3 * dim), jnp.float32),
        # attention q/k/v/out projections (bias enabled)
        "wq": normal(ks[1], (dim, hd), dim ** -0.5),
        "bq": normal(ks[2], (1, hd), 0.01),
        "wk": normal(ks[3], (dim, hd), dim ** -0.5),
        "bk": normal(ks[4], (1, hd), 0.01),
        "wv": normal(ks[5], (dim, hd), dim ** -0.5),
        "bv": normal(ks[6], (1, hd), 0.01),
        "wo": normal(ks[7], (hd, dim), hd ** -0.5),
        "bo": jnp.zeros((1, dim), jnp.float32),
        # RMSNorm weight
        "w_rms": jnp.ones((1, dim), jnp.float32),
        # GatedVariantsMLP (bias=False)
        "w_gate": normal(ks[8], (dim, ffn_dim), dim ** -0.5),
        "w_up": normal(ks[9], (dim, ffn_dim), dim ** -0.5),
        "w_down": normal(ks[10], (ffn_dim, dim), ffn_dim ** -0.5),
    }


if __name__ == "__main__":
    # Small but lane-aligned demo shapes (feature dims multiples of 128, T % 8 == 0).
    B, T, D = 2, 128, 256         # batch, sequence, model dim (output_size)
    H, HD = 2, 128                # attention_heads, head_dim  (D == H * HD)
    FFN = 512                     # linear_units
    NORM_EPS = 1e-5               # config.norm_eps

    key = jax.random.PRNGKey(0)
    k_x, k_t, k_p = jax.random.split(key, 3)
    x = jax.random.normal(k_x, (B, T, D), jnp.float32)
    temb = jax.random.normal(k_t, (B, D), jnp.float32)
    key_mask = jnp.ones((B, T), jnp.float32)     # every key position attendable

    # rotary positional angles: theta[t, i] = t / 10000^(2i/head_dim)
    pos = jnp.arange(T, dtype=jnp.float32)[:, None]
    inv_freq = 1.0 / (10000.0 ** (jnp.arange(0, HD, 2, dtype=jnp.float32) / HD))
    pos_emb = pos * inv_freq[None, :]            # (T, HD//2)

    params = init_params(k_p, D, H, HD, FFN)

    run = functools.partial(flux_single_transformer_block, x, temb, key_mask,
                            pos_emb, params, num_heads=H, head_dim=HD,
                            rms_eps=NORM_EPS)
    try:
        out = jax.block_until_ready(run(single_buffer_weights=True))
    except Exception:
        # pl.Buffered(1) single-buffering of constant weights is a perf hint;
        # fall back to default double-buffering if this JAX/Mosaic rejects it.
        out = jax.block_until_ready(run(single_buffer_weights=False))

    assert out.shape == (B, T, D)
    assert bool(jnp.all(jnp.isfinite(out)))
    print("KERNEL_OK")
</pallas_src>

<mosaic_0001>
module attributes {stable_mosaic.version = 11 : i64} {
  func.func @_adaln_qkv_rope_kernel(%arg0: i32, %arg1: i32, %arg2: memref<1x128x256xf32, #tpu.memory_space<vmem>>, %arg3: memref<1x1x256xf32, #tpu.memory_space<vmem>>, %arg4: memref<1x1x256xf32, #tpu.memory_space<vmem>>, %arg5: memref<128x128xf32, #tpu.memory_space<vmem>>, %arg6: memref<128x128xf32, #tpu.memory_space<vmem>>, %arg7: memref<256x768xbf16, #tpu.memory_space<vmem>>, %arg8: memref<1x768xf32, #tpu.memory_space<vmem>>, %arg9: memref<1x128x256xbf16, #tpu.memory_space<vmem>>, %arg10: memref<1x128x256xbf16, #tpu.memory_space<vmem>>, %arg11: memref<1x128x256xbf16, #tpu.memory_space<vmem>>) attributes {dimension_semantics = [#tpu.dimension_semantics<parallel>, #tpu.dimension_semantics<parallel>], iteration_bounds = array<i64: 2, 1>, scalar_prefetch = 0 : i64, scratch_operands = 0 : i64, tpu.core_type = #tpu.core_type<tc>, window_params = [{transform_indices = @transform_0, window_bounds = array<i64: 1, 128, 256>}, {transform_indices = @transform_1, window_bounds = array<i64: 1, 1, 256>}, {transform_indices = @transform_2, window_bounds = array<i64: 1, 1, 256>}, {transform_indices = @transform_3, window_bounds = array<i64: 128, 128>}, {transform_indices = @transform_4, window_bounds = array<i64: 128, 128>}, {pipeline_mode = #tpu.pipeline_mode<synchronous>, transform_indices = @transform_5, window_bounds = array<i64: 256, 768>}, {pipeline_mode = #tpu.pipeline_mode<synchronous>, transform_indices = @transform_6, window_bounds = array<i64: 1, 768>}, {transform_indices = @transform_7, window_bounds = array<i64: 1, 128, 256>}, {transform_indices = @transform_8, window_bounds = array<i64: 1, 128, 256>}, {transform_indices = @transform_9, window_bounds = array<i64: 1, 128, 256>}]} {
    %c0 = arith.constant 0 : index
    %c0_0 = arith.constant 0 : index
    %c0_1 = arith.constant 0 : index
    %0 = vector.load %arg2[%c0, %c0_0, %c0_1] : memref<1x128x256xf32, #tpu.memory_space<vmem>>, vector<1x128x256xf32>
    %1 = vector.shape_cast %0 : vector<1x128x256xf32> to vector<128x256xf32>
    %cst = arith.constant dense<0.000000e+00> : vector<128xf32>
    %2 = vector.multi_reduction <add>, %1, %cst [1] : vector<128x256xf32> to vector<128xf32>
    %3 = vector.shape_cast %2 : vector<128xf32> to vector<128x1xf32>
    %cst_2 = arith.constant 2.560000e+02 : f32
    %4 = vector.broadcast %cst_2 : f32 to vector<128x1xf32>
    %5 = arith.divf %3, %4 : vector<128x1xf32>
    %6 = arith.mulf %1, %1 : vector<128x256xf32>
    %cst_3 = arith.constant dense<0.000000e+00> : vector<128xf32>
    %7 = vector.multi_reduction <add>, %6, %cst_3 [1] : vector<128x256xf32> to vector<128xf32>
    %8 = vector.shape_cast %7 : vector<128xf32> to vector<128x1xf32>
    %cst_4 = arith.constant 2.560000e+02 : f32
    %9 = vector.broadcast %cst_4 : f32 to vector<128x1xf32>
    %10 = arith.divf %8, %9 : vector<128x1xf32>
    %11 = arith.mulf %5, %5 : vector<128x1xf32>
    %12 = arith.subf %10, %11 : vector<128x1xf32>
    %13 = vector.broadcast %5 : vector<128x1xf32> to vector<128x256xf32>
    %14 = arith.subf %1, %13 : vector<128x256xf32>
    %cst_5 = arith.constant 9.99999974E-6 : f32
    %15 = vector.broadcast %cst_5 : f32 to vector<128x1xf32>
    %16 = arith.addf %12, %15 : vector<128x1xf32>
    %17 = math.rsqrt %16 : vector<128x1xf32>
    %18 = vector.broadcast %17 : vector<128x1xf32> to vector<128x256xf32>
    %19 = arith.mulf %14, %18 : vector<128x256xf32>
    %c0_6 = arith.constant 0 : index
    %c0_7 = arith.constant 0 : index
    %c0_8 = arith.constant 0 : index
    %20 = vector.load %arg4[%c0_6, %c0_7, %c0_8] : memref<1x1x256xf32, #tpu.memory_space<vmem>>, vector<1x1x256xf32>
    %21 = vector.shape_cast %20 : vector<1x1x256xf32> to vector<1x256xf32>
    %cst_9 = arith.constant 1.000000e+00 : f32
    %22 = vector.broadcast %cst_9 : f32 to vector<1x256xf32>
    %23 = arith.addf %22, %21 : vector<1x256xf32>
    %24 = vector.broadcast %23 : vector<1x256xf32> to vector<128x256xf32>
    %25 = arith.mulf %19, %24 : vector<128x256xf32>
    %c0_10 = arith.constant 0 : index
    %c0_11 = arith.constant 0 : index
    %c0_12 = arith.constant 0 : index
    %26 = vector.load %arg3[%c0_10, %c0_11, %c0_12] : memref<1x1x256xf32, #tpu.memory_space<vmem>>, vector<1x1x256xf32>
    %27 = vector.shape_cast %26 : vector<1x1x256xf32> to vector<1x256xf32>
    %28 = vector.broadcast %27 : vector<1x256xf32> to vector<128x256xf32>
    %29 = arith.addf %25, %28 : vector<128x256xf32>
    %30 = arith.truncf %29 : vector<128x256xf32> to vector<128x256xbf16>
    %c0_13 = arith.constant 0 : index
    %c0_14 = arith.constant 0 : index
    %31 = vector.load %arg7[%c0_13, %c0_14] : memref<256x768xbf16, #tpu.memory_space<vmem>>, vector<256x768xbf16>
    %cst_15 = arith.constant dense<0.000000e+00> : vector<128x768xf32>
    %32 = tpu.matmul %30, %31, %cst_15 {dimension_numbers = #tpu.dot_dimension_numbers<[1], [0], [0], [1], [0, 0, 1, 1], [], []>} : vector<128x256xbf16>, vector<256x768xbf16>, vector<128x768xf32> -> vector<128x768xf32>
    %c0_16 = arith.constant 0 : index
    %c0_17 = arith.constant 0 : index
    %33 = vector.load %arg8[%c0_16, %c0_17] : memref<1x768xf32, #tpu.memory_space<vmem>>, vector<1x768xf32>
    %34 = vector.broadcast %33 : vector<1x768xf32> to vector<128x768xf32>
    %35 = arith.addf %32, %34 : vector<128x768xf32>
    %36 = vector.extract_strided_slice %35 {offsets = [0, 0], sizes = [128, 256], strides = [1, 1]} : vector<128x768xf32> to vector<128x256xf32>
    %37 = vector.extract_strided_slice %35 {offsets = [0, 256], sizes = [128, 256], strides = [1, 1]} : vector<128x768xf32> to vector<128x256xf32>
    %38 = vector.extract_strided_slice %35 {offsets = [0, 512], sizes = [128, 256], strides = [1, 1]} : vector<128x768xf32> to vector<128x256xf32>
    %c0_18 = arith.constant 0 : index
    %c0_19 = arith.constant 0 : index
    %39 = vector.load %arg5[%c0_18, %c0_19] : memref<128x128xf32, #tpu.memory_space<vmem>>, vector<128x128xf32>
    %40 = tpu.concatenate %39, %39 in 1 : vector<128x128xf32>, vector<128x128xf32> -> vector<128x256xf32>
    %c0_20 = arith.constant 0 : index
    %c0_21 = arith.constant 0 : index
    %41 = vector.load %arg6[%c0_20, %c0_21] : memref<128x128xf32, #tpu.memory_space<vmem>>, vector<128x128xf32>
    %42 = tpu.concatenate %41, %41 in 1 : vector<128x128xf32>, vector<128x128xf32> -> vector<128x256xf32>
    %43 = tpu.iota {dimensions = array<i32: 1>} : vector<128x256xi32>
    %c128_i32 = arith.constant 128 : i32
    %c0_i32 = arith.constant 0 : i32
    %44 = arith.cmpi eq, %c128_i32, %c0_i32 : i32
    %c1_i32 = arith.constant 1 : i32
    %45 = arith.select %44, %c1_i32, %c128_i32 : i32
    %46 = vector.broadcast %45 : i32 to vector<128x256xi32>
    %47 = arith.remsi %43, %46 : vector<128x256xi32>
    %c0_i32_22 = arith.constant 0 : i32
    %48 = vector.broadcast %c0_i32_22 : i32 to vector<128x256xi32>
    %49 = arith.cmpi ne, %47, %48 : vector<128x256xi32>
    %c0_i32_23 = arith.constant 0 : i32
    %50 = vector.broadcast %c0_i32_23 : i32 to vector<128x256xi32>
    %51 = arith.cmpi slt, %47, %50 : vector<128x256xi32>
    %c0_i32_24 = arith.constant 0 : i32
    %52 = arith.cmpi slt, %45, %c0_i32_24 : i32
    %53 = vector.broadcast %52 : i1 to vector<128x256xi1>
    %54 = vector.broadcast %53 : vector<128x256xi1> to vector<128x256xi1>
    %55 = arith.xori %51, %54 : vector<128x256xi1>
    %56 = arith.andi %55, %49 : vector<128x256xi1>
    %57 = vector.broadcast %45 : i32 to vector<128x256xi32>
    %58 = arith.addi %47, %57 : vector<128x256xi32>
    %59 = arith.select %56, %58, %47 : vector<128x256xi1>, vector<128x256xi32>
    %c64_i32 = arith.constant 64 : i32
    %60 = vector.broadcast %c64_i32 : i32 to vector<128x256xi32>
    %61 = arith.cmpi slt, %59, %60 : vector<128x256xi32>
    %c64_i32_25 = arith.constant 64 : i32
    %62 = tpu.dynamic_rotate %36 by %c64_i32_25 dim 1 : vector<128x256xf32>, i32 -> vector<128x256xf32>
    %c192_i32 = arith.constant 192 : i32
    %63 = tpu.dynamic_rotate %36 by %c192_i32 dim 1 : vector<128x256xf32>, i32 -> vector<128x256xf32>
    %64 = arith.mulf %36, %40 : vector<128x256xf32>
    %65 = arith.select %61, %63, %62 : vector<128x256xi1>, vector<128x256xf32>
    %66 = arith.mulf %65, %42 : vector<128x256xf32>
    %67 = arith.addf %64, %66 : vector<128x256xf32>
    %68 = arith.truncf %67 : vector<128x256xf32> to vector<128x256xbf16>
    %c0_26 = arith.constant 0 : index
    %c0_27 = arith.constant 0 : index
    %c0_28 = arith.constant 0 : index
    %69 = vector.load %arg9[%c0_26, %c0_27, %c0_28] : memref<1x128x256xbf16, #tpu.memory_space<vmem>>, vector<1x128x256xbf16>
    %70 = vector.shape_cast %69 : vector<1x128x256xbf16> to vector<128x256xbf16>
    %71 = vector.shape_cast %68 : vector<128x256xbf16> to vector<1x128x256xbf16>
    tpu.vector_store %arg9[%c0_26, %c0_27, %c0_28], %71 {strides = array<i32>} : memref<1x128x256xbf16, #tpu.memory_space<vmem>>, vector<1x128x256xbf16>,
    %c64_i32_29 = arith.constant 64 : i32
    %72 = tpu.dynamic_rotate %37 by %c64_i32_29 dim 1 : vector<128x256xf32>, i32 -> vector<128x256xf32>
    %c192_i32_30 = arith.constant 192 : i32
    %73 = tpu.dynamic_rotate %37 by %c192_i32_30 dim 1 : vector<128x256xf32>, i32 -> vector<128x256xf32>
    %74 = arith.mulf %37, %40 : vector<128x256xf32>
    %75 = arith.select %61, %73, %72 : vector<128x256xi1>, vector<128x256xf32>
    %76 = arith.mulf %75, %42 : vector<128x256xf32>
    %77 = arith.addf %74, %76 : vector<128x256xf32>
    %78 = arith.truncf %77 : vector<128x256xf32> to vector<128x256xbf16>
    %c0_31 = arith.constant 0 : index
    %c0_32 = arith.constant 0 : index
    %c0_33 = arith.constant 0 : index
    %79 = vector.load %arg10[%c0_31, %c0_32, %c0_33] : memref<1x128x256xbf16, #tpu.memory_space<vmem>>, vector<1x128x256xbf16>
    %80 = vector.shape_cast %79 : vector<1x128x256xbf16> to vector<128x256xbf16>
    %81 = vector.shape_cast %78 : vector<128x256xbf16> to vector<1x128x256xbf16>
    tpu.vector_store %arg10[%c0_31, %c0_32, %c0_33], %81 {strides = array<i32>} : memref<1x128x256xbf16, #tpu.memory_space<vmem>>, vector<1x128x256xbf16>,
    %82 = arith.truncf %38 : vector<128x256xf32> to vector<128x256xbf16>
    %c0_34 = arith.constant 0 : index
    %c0_35 = arith.constant 0 : index
    %c0_36 = arith.constant 0 : index
    %83 = vector.load %arg11[%c0_34, %c0_35, %c0_36] : memref<1x128x256xbf16, #tpu.memory_space<vmem>>, vector<1x128x256xbf16>
    %84 = vector.shape_cast %83 : vector<1x128x256xbf16> to vector<128x256xbf16>
    %85 = vector.shape_cast %82 : vector<128x256xbf16> to vector<1x128x256xbf16>
    tpu.vector_store %arg11[%c0_34, %c0_35, %c0_36], %85 {strides = array<i32>} : memref<1x128x256xbf16, #tpu.memory_space<vmem>>, vector<1x128x256xbf16>,
    return
  }
  func.func @transform_0(%arg0: i32, %arg1: i32) -> (i32, i32, i32) {
    %c0_i32 = arith.constant 0 : i32
    %c0_i32_0 = arith.constant 0 : i32
    return %arg0, %arg1, %c0_i32 : i32, i32, i32
  }
  func.func @transform_1(%arg0: i32, %arg1: i32) -> (i32, i32, i32) {
    %c0_i32 = arith.constant 0 : i32
    %c0_i32_0 = arith.constant 0 : i32
    %c0_i32_1 = arith.constant 0 : i32
    return %arg0, %c0_i32, %c0_i32_0 : i32, i32, i32
  }
  func.func @transform_2(%arg0: i32, %arg1: i32) -> (i32, i32, i32) {
    %c0_i32 = arith.constant 0 : i32
    %c0_i32_0 = arith.constant 0 : i32
    %c0_i32_1 = arith.constant 0 : i32
    return %arg0, %c0_i32, %c0_i32_0 : i32, i32, i32
  }
  func.func @transform_3(%arg0: i32, %arg1: i32) -> (i32, i32) {
    %c0_i32 = arith.constant 0 : i32
    %c0_i32_0 = arith.constant 0 : i32
    return %arg1, %c0_i32 : i32, i32
  }
  func.func @transform_4(%arg0: i32, %arg1: i32) -> (i32, i32) {
    %c0_i32 = arith.constant 0 : i32
    %c0_i32_0 = arith.constant 0 : i32
    return %arg1, %c0_i32 : i32, i32
  }
  func.func @transform_5(%arg0: i32, %arg1: i32) -> (i32, i32) {
    %c0_i32 = arith.constant 0 : i32
    %c0_i32_0 = arith.constant 0 : i32
    %c0_i32_1 = arith.constant 0 : i32
    return %c0_i32, %c0_i32_0 : i32, i32
  }
  func.func @transform_6(%arg0: i32, %arg1: i32) -> (i32, i32) {
    %c0_i32 = arith.constant 0 : i32
    %c0_i32_0 = arith.constant 0 : i32
    %c0_i32_1 = arith.constant 0 : i32
    return %c0_i32, %c0_i32_0 : i32, i32
  }
  func.func @transform_7(%arg0: i32, %arg1: i32) -> (i32, i32, i32) {
    %c0_i32 = arith.constant 0 : i32
    %c0_i32_0 = arith.constant 0 : i32
    return %arg0, %arg1, %c0_i32 : i32, i32, i32
  }
  func.func @transform_8(%arg0: i32, %arg1: i32) -> (i32, i32, i32) {
    %c0_i32 = arith.constant 0 : i32
    %c0_i32_0 = arith.constant 0 : i32
    return %arg0, %arg1, %c0_i32 : i32, i32, i32
  }
  func.func @transform_9(%arg0: i32, %arg1: i32) -> (i32, i32, i32) {
    %c0_i32 = arith.constant 0 : i32
    %c0_i32_0 = arith.constant 0 : i32
    return %arg0, %arg1, %c0_i32 : i32, i32, i32
  }
}

module attributes {stable_mosaic.version = 11 : i64} {
  func.func @_adaln_qkv_rope_kernel(%arg0: i32, %arg1: i32, %arg2: memref<1x128x256xf32, #tpu.memory_space<vmem>>, %arg3: memref<1x1x256xf32, #tpu.memory_space<vmem>>, %arg4: memref<1x1x256xf32, #tpu.memory_space<vmem>>, %arg5: memref<128x128xf32, #tpu.memory_space<vmem>>, %arg6: memref<128x128xf32, #tpu.memory_space<vmem>>, %arg7: memref<256x768xbf16, #tpu.memory_space<vmem>>, %arg8: memref<1x768xf32, #tpu.memory_space<vmem>>, %arg9: memref<1x128x256xbf16, #tpu.memory_space<vmem>>, %arg10: memref<1x128x256xbf16, #tpu.memory_space<vmem>>, %arg11: memref<1x128x256xbf16, #tpu.memory_space<vmem>>) attributes {dimension_semantics = [#tpu.dimension_semantics<parallel>, #tpu.dimension_semantics<parallel>], iteration_bounds = array<i64: 2, 1>, scalar_prefetch = 0 : i64, scratch_operands = 0 : i64, tpu.core_type = #tpu.core_type<tc>, window_params = [{transform_indices = @transform_0, window_bounds = array<i64: 1, 128, 256>}, {transform_indices = @transform_1, window_bounds = array<i64: 1, 1, 256>}, {transform_indices = @transform_2, window_bounds = array<i64: 1, 1, 256>}, {transform_indices = @transform_3, window_bounds = array<i64: 128, 128>}, {transform_indices = @transform_4, window_bounds = array<i64: 128, 128>}, {pipeline_mode = #tpu.pipeline_mode<synchronous>, transform_indices = @transform_5, window_bounds = array<i64: 256, 768>}, {pipeline_mode = #tpu.pipeline_mode<synchronous>, transform_indices = @transform_6, window_bounds = array<i64: 1, 768>}, {transform_indices = @transform_7, window_bounds = array<i64: 1, 128, 256>}, {transform_indices = @transform_8, window_bounds = array<i64: 1, 128, 256>}, {transform_indices = @transform_9, window_bounds = array<i64: 1, 128, 256>}]} {
    %c0 = arith.constant 0 : index
    %c0_0 = arith.constant 0 : index
    %c0_1 = arith.constant 0 : index
    %0 = vector.load %arg2[%c0, %c0_0, %c0_1] : memref<1x128x256xf32, #tpu.memory_space<vmem>>, vector<1x128x256xf32>
    %1 = vector.shape_cast %0 : vector<1x128x256xf32> to vector<128x256xf32>
    %cst = arith.constant dense<0.000000e+00> : vector<128xf32>
    %2 = vector.multi_reduction <add>, %1, %cst [1] : vector<128x256xf32> to vector<128xf32>
    %3 = vector.shape_cast %2 : vector<128xf32> to vector<128x1xf32>
    %cst_2 = arith.constant 2.560000e+02 : f32
    %4 = vector.broadcast %cst_2 : f32 to vector<128x1xf32>
    %5 = arith.divf %3, %4 : vector<128x1xf32>
    %6 = arith.mulf %1, %1 : vector<128x256xf32>
    %cst_3 = arith.constant dense<0.000000e+00> : vector<128xf32>
    %7 = vector.multi_reduction <add>, %6, %cst_3 [1] : vector<128x256xf32> to vector<128xf32>
    %8 = vector.shape_cast %7 : vector<128xf32> to vector<128x1xf32>
    %cst_4 = arith.constant 2.560000e+02 : f32
    %9 = vector.broadcast %cst_4 : f32 to vector<128x1xf32>
    %10 = arith.divf %8, %9 : vector<128x1xf32>
    %11 = arith.mulf %5, %5 : vector<128x1xf32>
    %12 = arith.subf %10, %11 : vector<128x1xf32>
    %13 = vector.broadcast %5 : vector<128x1xf32> to vector<128x256xf32>
    %14 = arith.subf %1, %13 : vector<128x256xf32>
    %cst_5 = arith.constant 9.99999974E-6 : f32
    %15 = vector.broadcast %cst_5 : f32 to vector<128x1xf32>
    %16 = arith.addf %12, %15 : vector<128x1xf32>
    %17 = math.rsqrt %16 : vector<128x1xf32>
    %18 = vector.broadcast %17 : vector<128x1xf32> to vector<128x256xf32>
    %19 = arith.mulf %14, %18 : vector<128x256xf32>
    %c0_6 = arith.constant 0 : index
    %c0_7 = arith.constant 0 : index
    %c0_8 = arith.constant 0 : index
    %20 = vector.load %arg4[%c0_6, %c0_7, %c0_8] : memref<1x1x256xf32, #tpu.memory_space<vmem>>, vector<1x1x256xf32>
    %21 = vector.shape_cast %20 : vector<1x1x256xf32> to vector<1x256xf32>
    %cst_9 = arith.constant 1.000000e+00 : f32
    %22 = vector.broadcast %cst_9 : f32 to vector<1x256xf32>
    %23 = arith.addf %22, %21 : vector<1x256xf32>
    %24 = vector.broadcast %23 : vector<1x256xf32> to vector<128x256xf32>
    %25 = arith.mulf %19, %24 : vector<128x256xf32>
    %c0_10 = arith.constant 0 : index
    %c0_11 = arith.constant 0 : index
    %c0_12 = arith.constant 0 : index
    %26 = vector.load %arg3[%c0_10, %c0_11, %c0_12] : memref<1x1x256xf32, #tpu.memory_space<vmem>>, vector<1x1x256xf32>
    %27 = vector.shape_cast %26 : vector<1x1x256xf32> to vector<1x256xf32>
    %28 = vector.broadcast %27 : vector<1x256xf32> to vector<128x256xf32>
    %29 = arith.addf %25, %28 : vector<128x256xf32>
    %30 = arith.truncf %29 : vector<128x256xf32> to vector<128x256xbf16>
    %c0_13 = arith.constant 0 : index
    %c0_14 = arith.constant 0 : index
    %31 = vector.load %arg7[%c0_13, %c0_14] : memref<256x768xbf16, #tpu.memory_space<vmem>>, vector<256x768xbf16>
    %cst_15 = arith.constant dense<0.000000e+00> : vector<128x768xf32>
    %32 = tpu.matmul %30, %31, %cst_15 {dimension_numbers = #tpu.dot_dimension_numbers<[1], [0], [0], [1], [0, 0, 1, 1], [], []>} : vector<128x256xbf16>, vector<256x768xbf16>, vector<128x768xf32> -> vector<128x768xf32>
    %c0_16 = arith.constant 0 : index
    %c0_17 = arith.constant 0 : index
    %33 = vector.load %arg8[%c0_16, %c0_17] : memref<1x768xf32, #tpu.memory_space<vmem>>, vector<1x768xf32>
    %34 = vector.broadcast %33 : vector<1x768xf32> to vector<128x768xf32>
    %35 = arith.addf %32, %34 : vector<128x768xf32>
    %36 = vector.extract_strided_slice %35 {offsets = [0, 0], sizes = [128, 256], strides = [1, 1]} : vector<128x768xf32> to vector<128x256xf32>
    %37 = vector.extract_strided_slice %35 {offsets = [0, 256], sizes = [128, 256], strides = [1, 1]} : vector<128x768xf32> to vector<128x256xf32>
    %38 = vector.extract_strided_slice %35 {offsets = [0, 512], sizes = [128, 256], strides = [1, 1]} : vector<128x768xf32> to vector<128x256xf32>
    %c0_18 = arith.constant 0 : index
    %c0_19 = arith.constant 0 : index
    %39 = vector.load %arg5[%c0_18, %c0_19] : memref<128x128xf32, #tpu.memory_space<vmem>>, vector<128x128xf32>
    %40 = tpu.concatenate %39, %39 in 1 : vector<128x128xf32>, vector<128x128xf32> -> vector<128x256xf32>
    %c0_20 = arith.constant 0 : index
    %c0_21 = arith.constant 0 : index
    %41 = vector.load %arg6[%c0_20, %c0_21] : memref<128x128xf32, #tpu.memory_space<vmem>>, vector<128x128xf32>
    %42 = tpu.concatenate %41, %41 in 1 : vector<128x128xf32>, vector<128x128xf32> -> vector<128x256xf32>
    %43 = tpu.iota {dimensions = array<i32: 1>} : vector<128x256xi32>
    %c128_i32 = arith.constant 128 : i32
    %c0_i32 = arith.constant 0 : i32
    %44 = arith.cmpi eq, %c128_i32, %c0_i32 : i32
    %c1_i32 = arith.constant 1 : i32
    %45 = arith.select %44, %c1_i32, %c128_i32 : i32
    %46 = vector.broadcast %45 : i32 to vector<128x256xi32>
    %47 = arith.remsi %43, %46 : vector<128x256xi32>
    %c0_i32_22 = arith.constant 0 : i32
    %48 = vector.broadcast %c0_i32_22 : i32 to vector<128x256xi32>
    %49 = arith.cmpi ne, %47, %48 : vector<128x256xi32>
    %c0_i32_23 = arith.constant 0 : i32
    %50 = vector.broadcast %c0_i32_23 : i32 to vector<128x256xi32>
    %51 = arith.cmpi slt, %47, %50 : vector<128x256xi32>
    %c0_i32_24 = arith.constant 0 : i32
    %52 = arith.cmpi slt, %45, %c0_i32_24 : i32
    %53 = vector.broadcast %52 : i1 to vector<128x256xi1>
    %54 = vector.broadcast %53 : vector<128x256xi1> to vector<128x256xi1>
    %55 = arith.xori %51, %54 : vector<128x256xi1>
    %56 = arith.andi %55, %49 : vector<128x256xi1>
    %57 = vector.broadcast %45 : i32 to vector<128x256xi32>
    %58 = arith.addi %47, %57 : vector<128x256xi32>
    %59 = arith.select %56, %58, %47 : vector<128x256xi1>, vector<128x256xi32>
    %c64_i32 = arith.constant 64 : i32
    %60 = vector.broadcast %c64_i32 : i32 to vector<128x256xi32>
    %61 = arith.cmpi slt, %59, %60 : vector<128x256xi32>
    %c64_i32_25 = arith.constant 64 : i32
    %62 = tpu.dynamic_rotate %36 by %c64_i32_25 dim 1 : vector<128x256xf32>, i32 -> vector<128x256xf32>
    %c192_i32 = arith.constant 192 : i32
    %63 = tpu.dynamic_rotate %36 by %c192_i32 dim 1 : vector<128x256xf32>, i32 -> vector<128x256xf32>
    %64 = arith.mulf %36, %40 : vector<128x256xf32>
    %65 = arith.select %61, %63, %62 : vector<128x256xi1>, vector<128x256xf32>
    %66 = arith.mulf %65, %42 : vector<128x256xf32>
    %67 = arith.addf %64, %66 : vector<128x256xf32>
    %68 = arith.truncf %67 : vector<128x256xf32> to vector<128x256xbf16>
    %c0_26 = arith.constant 0 : index
    %c0_27 = arith.constant 0 : index
    %c0_28 = arith.constant 0 : index
    %69 = vector.load %arg9[%c0_26, %c0_27, %c0_28] : memref<1x128x256xbf16, #tpu.memory_space<vmem>>, vector<1x128x256xbf16>
    %70 = vector.shape_cast %69 : vector<1x128x256xbf16> to vector<128x256xbf16>
    %71 = vector.shape_cast %68 : vector<128x256xbf16> to vector<1x128x256xbf16>
    tpu.vector_store %arg9[%c0_26, %c0_27, %c0_28], %71 {strides = array<i32>} : memref<1x128x256xbf16, #tpu.memory_space<vmem>>, vector<1x128x256xbf16>,
    %c64_i32_29 = arith.constant 64 : i32
    %72 = tpu.dynamic_rotate %37 by %c64_i32_29 dim 1 : vector<128x256xf32>, i32 -> vector<128x256xf32>
    %c192_i32_30 = arith.constant 192 : i32
    %73 = tpu.dynamic_rotate %37 by %c192_i32_30 dim 1 : vector<128x256xf32>, i32 -> vector<128x256xf32>
    %74 = arith.mulf %37, %40 : vector<128x256xf32>
    %75 = arith.select %61, %73, %72 : vector<128x256xi1>, vector<128x256xf32>
    %76 = arith.mulf %75, %42 : vector<128x256xf32>
    %77 = arith.addf %74, %76 : vector<128x256xf32>
    %78 = arith.truncf %77 : vector<128x256xf32> to vector<128x256xbf16>
    %c0_31 = arith.constant 0 : index
    %c0_32 = arith.constant 0 : index
    %c0_33 = arith.constant 0 : index
    %79 = vector.load %arg10[%c0_31, %c0_32, %c0_33] : memref<1x128x256xbf16, #tpu.memory_space<vmem>>, vector<1x128x256xbf16>
    %80 = vector.shape_cast %79 : vector<1x128x256xbf16> to vector<128x256xbf16>
    %81 = vector.shape_cast %78 : vector<128x256xbf16> to vector<1x128x256xbf16>
    tpu.vector_store %arg10[%c0_31, %c0_32, %c0_33], %81 {strides = array<i32>} : memref<1x128x256xbf16, #tpu.memory_space<vmem>>, vector<1x128x256xbf16>,
    %82 = arith.truncf %38 : vector<128x256xf32> to vector<128x256xbf16>
    %c0_34 = arith.constant 0 : index
    %c0_35 = arith.constant 0 : index
    %c0_36 = arith.constant 0 : index
    %83 = vector.load %arg11[%c0_34, %c0_35, %c0_36] : memref<1x128x256xbf16, #tpu.memory_space<vmem>>, vector<1x128x256xbf16>
    %84 = vector.shape_cast %83 : vector<1x128x256xbf16> to vector<128x256xbf16>
    %85 = vector.shape_cast %82 : vector<128x256xbf16> to vector<1x128x256xbf16>
    tpu.vector_store %arg11[%c0_34, %c0_35, %c0_36], %85 {strides = array<i32>} : memref<1x128x256xbf16, #tpu.memory_space<vmem>>, vector<1x128x256xbf16>,
    return
  }
  func.func @transform_0(%arg0: i32, %arg1: i32) -> (i32, i32, i32) {
    %c0_i32 = arith.constant 0 : i32
    %c0_i32_0 = arith.constant 0 : i32
    return %arg0, %arg1, %c0_i32 : i32, i32, i32
  }
  func.func @transform_1(%arg0: i32, %arg1: i32) -> (i32, i32, i32) {
    %c0_i32 = arith.constant 0 : i32
    %c0_i32_0 = arith.constant 0 : i32
    %c0_i32_1 = arith.constant 0 : i32
    return %arg0, %c0_i32, %c0_i32_0 : i32, i32, i32
  }
  func.func @transform_2(%arg0: i32, %arg1: i32) -> (i32, i32, i32) {
    %c0_i32 = arith.constant 0 : i32
    %c0_i32_0 = arith.constant 0 : i32
    %c0_i32_1 = arith.constant 0 : i32
    return %arg0, %c0_i32, %c0_i32_0 : i32, i32, i32
  }
  func.func @transform_3(%arg0: i32, %arg1: i32) -> (i32, i32) {
    %c0_i32 = arith.constant 0 : i32
    %c0_i32_0 = arith.constant 0 : i32
    return %arg1, %c0_i32 : i32, i32
  }
  func.func @transform_4(%arg0: i32, %arg1: i32) -> (i32, i32) {
    %c0_i32 = arith.constant 0 : i32
    %c0_i32_0 = arith.constant 0 : i32
    return %arg1, %c0_i32 : i32, i32
  }
  func.func @transform_5(%arg0: i32, %arg1: i32) -> (i32, i32) {
    %c0_i32 = arith.constant 0 : i32
    %c0_i32_0 = arith.constant 0 : i32
    %c0_i32_1 = arith.constant 0 : i32
    return %c0_i32, %c0_i32_0 : i32, i32
  }
  func.func @transform_6(%arg0: i32, %arg1: i32) -> (i32, i32) {
    %c0_i32 = arith.constant 0 : i32
    %c0_i32_0 = arith.constant 0 : i32
    %c0_i32_1 = arith.constant 0 : i32
    return %c0_i32, %c0_i32_0 : i32, i32
  }
  func.func @transform_7(%arg0: i32, %arg1: i32) -> (i32, i32, i32) {
    %c0_i32 = arith.constant 0 : i32
    %c0_i32_0 = arith.constant 0 : i32
    return %arg0, %arg1, %c0_i32 : i32, i32, i32
  }
  func.func @transform_8(%arg0: i32, %arg1: i32) -> (i32, i32, i32) {
    %c0_i32 = arith.constant 0 : i32
    %c0_i32_0 = arith.constant 0 : i32
    return %arg0, %arg1, %c0_i32 : i32, i32, i32
  }
  func.func @transform_9(%arg0: i32, %arg1: i32) -> (i32, i32, i32) {
    %c0_i32 = arith.constant 0 : i32
    %c0_i32_0 = arith.constant 0 : i32
    return %arg0, %arg1, %c0_i32 : i32, i32, i32
  }
}

</mosaic_0001>

<llo_original>
// kernel: tpu_custom_call.1
$region0: #{tpu_custom_call.1}
  #allocation0 [shape = 'u32[]', space=smem, size = 0x4, offset = 0x4, fixed_abs, tag = 'smem constant byte address 0x4 - core index']
  #allocation1 [shape = 'u32[144,128]{1,0:T(1,128)}', space=vmem, size = 0x12000, scoped, tag = 'internal scratch']
  %s0 = inlined_call_operand.hbm [shape: f32[2,128,256], index: 0, kind: input, shape index: {}]
  %s1 = inlined_call_operand.hbm [shape: f32[2,1,256], index: 1, kind: input, shape index: {}]
  %s2 = inlined_call_operand.hbm [shape: f32[2,1,256], index: 2, kind: input, shape index: {}]
  %s3 = inlined_call_operand.hbm [shape: f32[128,128], index: 3, kind: input, shape index: {}]
  %s4 = inlined_call_operand.hbm [shape: f32[128,128], index: 4, kind: input, shape index: {}]
  %s5 = inlined_call_operand.hbm [shape: bf16[256,768], index: 5, kind: input, shape index: {}]
  %s6 = inlined_call_operand.vmem [shape: f32[1,768], index: 6, kind: input, shape index: {}]
  %s7 = inlined_call_operand.hbm [shape: bf16[2,128,256], index: 7, kind: output, shape index: {0}]
  %s8 = inlined_call_operand.hbm [shape: bf16[2,128,256], index: 8, kind: output, shape index: {1}]
  %s9 = inlined_call_operand.hbm [shape: bf16[2,128,256], index: 9, kind: output, shape index: {2}]
  %10 = xla_tuple %s7, %s8, %s9
  %s11 = sld [smem:[#allocation0]]
  $region101: #{tpu_custom_call.1} parent=0
    _
  %s13 = ssub.s32 1, %s11
  %s14 = scalar_select 0, %s13, %s11
  $region1: #{tpu_custom_call.1} parent=0
    #allocation2 [shape = 'u8[262144]{0}', space=vmem, size = 0x40000, scoped, tag = 'input window, operand 0']
    #allocation3 [shape = 's32[2]{0}', space=sflag, size = 0x8, scoped, tag = 'scoped memory for tpu_custom_call.1']
    #allocation4 [shape = 's32[2]{0}', space=sflag, size = 0x8, scoped, tag = 'scoped memory for tpu_custom_call.1']
    #allocation5 [shape = 'u8[2048]{0}', space=vmem, size = 0x800, scoped, tag = 'input window, operand 1']
    #allocation6 [shape = 's32[2]{0}', space=sflag, size = 0x8, scoped, tag = 'scoped memory for tpu_custom_call.1']
    #allocation7 [shape = 'u8[2048]{0}', space=vmem, size = 0x800, scoped, tag = 'input window, operand 2']
    #allocation8 [shape = 'u8[65536]{0}', space=vmem, size = 0x10000, scoped, tag = 'input window, operand 3, single buffered']
    #allocation9 [shape = 's32[1]{0}', space=sflag, size = 0x4, scoped, tag = 'scoped memory for tpu_custom_call.1']
    #allocation10 [shape = 'u8[65536]{0}', space=vmem, size = 0x10000, scoped, tag = 'input window, operand 4, single buffered']
    #allocation11 [shape = 'u8[393216]{0}', space=vmem, size = 0x60000, scoped, tag = 'input window, operand 5, single buffered']
    #allocation12 [shape = 's32[1]{0}', space=sflag, size = 0x4, scoped, tag = 'scoped memory for tpu_custom_call.1']
    #allocation13 [shape = 'u8[131072]{0}', space=vmem, size = 0x20000, scoped, tag = 'output window, operand 0']
    #allocation14 [shape = 'u8[131072]{0}', space=vmem, size = 0x20000, scoped, tag = 'output window, operand 1']
    #allocation15 [shape = 's32[2]{0}', space=sflag, size = 0x8, scoped, tag = 'scoped memory for tpu_custom_call.1']
    #allocation16 [shape = 'u8[131072]{0}', space=vmem, size = 0x20000, scoped, tag = 'output window, operand 2']
    %15 = vsyncpa [#allocation3], 0
    %s16 = scalar_lea.sflag [#allocation3], 1
    %17 = vsyncpa %s16, 0
    %18 = vsyncpa [#allocation6], 0
    %s19 = scalar_lea.sflag [#allocation6], 1
    %20 = vsyncpa %s19, 0
    %21 = vsyncpa [#allocation9], 0
    %22 = vsyncpa [#allocation12], 0
    %23 = vsyncpa [#allocation4], 0
    %s24 = scalar_lea.sflag [#allocation4], 1
    %25 = vsyncpa %s24, 0
    %26 = vsyncpa [#allocation15], 0
    %s27 = scalar_lea.sflag [#allocation15], 1
    %28 = vsyncpa %s27, 0
    loop: start=0, step=1, limit=4
    $region2: #{tpu_custom_call.1} parent=1 // loop_pre_header
      _
    $region3: #{tpu_custom_call.1} parent=1 // loop_header
      %s30 = sphi 0, %s34
      %p31 = scmp.ge.s32.totalorder %s30, 4
      %s37 = sphi 0, %s49
      %s38 = sphi 0, %s45
      %s39 = sphi 0, %s37
      %s40 = sphi 0, %s38
      %s41 = sphi 0, %s39
      %s42 = sphi 0, %s40
      %s54 = sphi 0, %s56
      %s57 = sphi 0, %s54
      %s58 = sphi 0, %s57
      %s74 = sphi 0, %s58
      %s80 = sphi 0, %s82
      %s83 = sphi 0, %s80
      %s84 = sphi 0, %s83
      %s100 = sphi 0, %s84
      %s106 = sphi 0, %s108
      %s109 = sphi 0, %s106
      %s110 = sphi 0, %s109
      %s126 = sphi 0, %s110
      %s132 = sphi 0, %s134
      %s135 = sphi 0, %s132
      %s136 = sphi 0, %s135
      %s152 = sphi 0, %s136
      %s158 = sphi 0, %s160
      %s161 = sphi 0, %s158
      %s162 = sphi 0, %s161
      %s178 = sphi 0, %s162
      %s182 = sphi 0, %s182
      %s184 = sphi 0, %s182
      %s185 = sphi 0, %s184
      %s199 = sphi 0, %s185
      %s203 = sphi 0, %s203
      %s205 = sphi 0, %s203
      %s206 = sphi 0, %s205
      %s220 = sphi 0, %s206
      %s228 = sphi 0, %s230
      %s231 = sphi 0, %s228
      %s232 = sphi 0, %s231
      %s248 = sphi 0, %s232
      %s256 = sphi 0, %s258
      %s259 = sphi 0, %s256
      %s260 = sphi 0, %s259
      %s276 = sphi 0, %s260
      %s284 = sphi 0, %s286
      %s287 = sphi 0, %s284
      %s288 = sphi 0, %s287
      %s304 = sphi 0, %s288
    $region4: #{tpu_custom_call.1} parent=1 // loop_header_branch
      %33 = sbr.rel (%p31) target = $region8
    $region5: #{tpu_custom_call.1} parent=1 // loop_body
      %s35 = ssub.s32 %s30, 1
      %s36 = ssub.s32 %s30, 2
      %s43 = sadd.s32 1, %s38
      %p44 = scmp.ge.s32.totalorder %s43, 1
      %s45 = scalar_select %p44, 0, %s43
      %s46 = sadd.s32 1, %s37
      %s47 = scalar_select %p44, %s46, %s37
      %p48 = scmp.ge.s32.totalorder %s47, 2
      %s49 = scalar_select %p48, 0, %s47
      %s50 = ssub.s32 %s37, %s49
      %s51 = ssub.s32 %s38, %s45
      %s52 = sor.u32 %s50, %s51
      %p53 = scmp.eq.s32.totalorder %s52, 0
      %s55 = sadd.s32 %s54, 1
      %s56 = scalar_select %p53, %s54, %s55
      %p59 = pneg %p53
      %p60 = scmp.eq.s32.totalorder %s30, 1
      %p61 = por %p59, %p60
      %p62 = scmp.ne.s32.totalorder %s54, %s57
      %p63 = scmp.eq.s32.totalorder %s30, 0
      %p64 = por %p62, %p63
      %p65 = scmp.ne.s32.totalorder %s54, %s57
      %p66 = scmp.eq.s32.totalorder %s35, 1
      %p67 = por %p65, %p66
      %p68 = scmp.ne.s32.totalorder %s57, %s58
      %p69 = scmp.eq.s32.totalorder %s35, 0
      %p70 = por %p68, %p69
      %p71 = scmp.ne.s32.totalorder %s57, %s58
      %p72 = scmp.eq.s32.totalorder %s36, 1
      %p73 = por %p71, %p72
      %p75 = scmp.ne.s32.totalorder %s58, %s74
      %p76 = scmp.eq.s32.totalorder %s36, 0
      %p77 = por %p75, %p76
      %s78 = ssub.s32 %s37, %s49
      %p79 = scmp.eq.s32.totalorder %s78, 0
      %s81 = sadd.s32 %s80, 1
      %s82 = scalar_select %p79, %s80, %s81
      %p85 = pneg %p79
      %p86 = scmp.eq.s32.totalorder %s30, 1
      %p87 = por %p85, %p86
      %p88 = scmp.ne.s32.totalorder %s80, %s83
      %p89 = scmp.eq.s32.totalorder %s30, 0
      %p90 = por %p88, %p89
      %p91 = scmp.ne.s32.totalorder %s80, %s83
      %p92 = scmp.eq.s32.totalorder %s35, 1
      %p93 = por %p91, %p92
      %p94 = scmp.ne.s32.totalorder %s83, %s84
      %p95 = scmp.eq.s32.totalorder %s35, 0
      %p96 = por %p94, %p95
      %p97 = scmp.ne.s32.totalorder %s83, %s84
      %p98 = scmp.eq.s32.totalorder %s36, 1
      %p99 = por %p97, %p98
      %p101 = scmp.ne.s32.totalorder %s84, %s100
      %p102 = scmp.eq.s32.totalorder %s36, 0
      %p103 = por %p101, %p102
      %s104 = ssub.s32 %s37, %s49
      %p105 = scmp.eq.s32.totalorder %s104, 0
      %s107 = sadd.s32 %s106, 1
      %s108 = scalar_select %p105, %s106, %s107
      %p111 = pneg %p105
      %p112 = scmp.eq.s32.totalorder %s30, 1
      %p113 = por %p111, %p112
      %p114 = scmp.ne.s32.totalorder %s106, %s109
      %p115 = scmp.eq.s32.totalorder %s30, 0
      %p116 = por %p114, %p115
      %p117 = scmp.ne.s32.totalorder %s106, %s109
      %p118 = scmp.eq.s32.totalorder %s35, 1
      %p119 = por %p117, %p118
      %p120 = scmp.ne.s32.totalorder %s109, %s110
      %p121 = scmp.eq.s32.totalorder %s35, 0
      %p122 = por %p120, %p121
      %p123 = scmp.ne.s32.totalorder %s109, %s110
      %p124 = scmp.eq.s32.totalorder %s36, 1
      %p125 = por %p123, %p124
      %p127 = scmp.ne.s32.totalorder %s110, %s126
      %p128 = scmp.eq.s32.totalorder %s36, 0
      %p129 = por %p127, %p128
      %s130 = ssub.s32 %s38, %s45
      %p131 = scmp.eq.s32.totalorder %s130, 0
      %s133 = sadd.s32 %s132, 1
      %s134 = scalar_select %p131, %s132, %s133
      %p137 = pneg %p131
      %p138 = scmp.eq.s32.totalorder %s30, 1
      %p139 = por %p137, %p138
      %p140 = scmp.ne.s32.totalorder %s132, %s135
      %p141 = scmp.eq.s32.totalorder %s30, 0
      %p142 = por %p140, %p141
      %p143 = scmp.ne.s32.totalorder %s132, %s135
      %p144 = scmp.eq.s32.totalorder %s35, 1
      %p145 = por %p143, %p144
      %p146 = scmp.ne.s32.totalorder %s135, %s136
      %p147 = scmp.eq.s32.totalorder %s35, 0
      %p148 = por %p146, %p147
      %p149 = scmp.ne.s32.totalorder %s135, %s136
      %p150 = scmp.eq.s32.totalorder %s36, 1
      %p151 = por %p149, %p150
      %p153 = scmp.ne.s32.totalorder %s136, %s152
      %p154 = scmp.eq.s32.totalorder %s36, 0
      %p155 = por %p153, %p154
      %s156 = ssub.s32 %s38, %s45
      %p157 = scmp.eq.s32.totalorder %s156, 0
      %s159 = sadd.s32 %s158, 1
      %s160 = scalar_select %p157, %s158, %s159
      %p163 = pneg %p157
      %p164 = scmp.eq.s32.totalorder %s30, 1
      %p165 = por %p163, %p164
      %p166 = scmp.ne.s32.totalorder %s158, %s161
      %p167 = scmp.eq.s32.totalorder %s30, 0
      %p168 = por %p166, %p167
      %p169 = scmp.ne.s32.totalorder %s158, %s161
      %p170 = scmp.eq.s32.totalorder %s35, 1
      %p171 = por %p169, %p170
      %p172 = scmp.ne.s32.totalorder %s161, %s162
      %p173 = scmp.eq.s32.totalorder %s35, 0
      %p174 = por %p172, %p173
      %p175 = scmp.ne.s32.totalorder %s161, %s162
      %p176 = scmp.eq.s32.totalorder %s36, 1
      %p177 = por %p175, %p176
      %p179 = scmp.ne.s32.totalorder %s162, %s178
      %p180 = scmp.eq.s32.totalorder %s36, 0
      %p181 = por %p179, %p180
      %s183 = sadd.s32 %s182, 1
      %p186 = scmp.eq.s32.totalorder %s30, 1
      %p187 = scmp.ne.s32.totalorder %s182, %s184
      %p188 = scmp.eq.s32.totalorder %s30, 0
      %p189 = por %p187, %p188
      %p190 = scmp.ne.s32.totalorder %s182, %s184
      %p191 = scmp.eq.s32.totalorder %s35, 1
      %p192 = por %p190, %p191
      %p193 = scmp.ne.s32.totalorder %s184, %s185
      %p194 = scmp.eq.s32.totalorder %s35, 0
      %p195 = por %p193, %p194
      %p196 = scmp.ne.s32.totalorder %s184, %s185
      %p197 = scmp.eq.s32.totalorder %s36, 1
      %p198 = por %p196, %p197
      %p200 = scmp.ne.s32.totalorder %s185, %s199
      %p201 = scmp.eq.s32.totalorder %s36, 0
      %p202 = por %p200, %p201
      %s204 = sadd.s32 %s203, 1
      %p207 = scmp.eq.s32.totalorder %s30, 1
      %p208 = scmp.ne.s32.totalorder %s203, %s205
      %p209 = scmp.eq.s32.totalorder %s30, 0
      %p210 = por %p208, %p209
      %p211 = scmp.ne.s32.totalorder %s203, %s205
      %p212 = scmp.eq.s32.totalorder %s35, 1
      %p213 = por %p211, %p212
      %p214 = scmp.ne.s32.totalorder %s205, %s206
      %p215 = scmp.eq.s32.totalorder %s35, 0
      %p216 = por %p214, %p215
      %p217 = scmp.ne.s32.totalorder %s205, %s206
      %p218 = scmp.eq.s32.totalorder %s36, 1
      %p219 = por %p217, %p218
      %p221 = scmp.ne.s32.totalorder %s206, %s220
      %p222 = scmp.eq.s32.totalorder %s36, 0
      %p223 = por %p221, %p222
      %s224 = ssub.s32 %s37, %s49
      %s225 = ssub.s32 %s38, %s45
      %s226 = sor.u32 %s224, %s225
      %p227 = scmp.eq.s32.totalorder %s226, 0
      %s229 = sadd.s32 %s228, 1
      %s230 = scalar_select %p227, %s228, %s229
      %p233 = pneg %p227
      %p234 = scmp.eq.s32.totalorder %s30, 1
      %p235 = por %p233, %p234
      %p236 = scmp.ne.s32.totalorder %s228, %s231
      %p237 = scmp.eq.s32.totalorder %s30, 0
      %p238 = por %p236, %p237
      %p239 = scmp.ne.s32.totalorder %s228, %s231
      %p240 = scmp.eq.s32.totalorder %s35, 1
      %p241 = por %p239, %p240
      %p242 = scmp.ne.s32.totalorder %s231, %s232
      %p243 = scmp.eq.s32.totalorder %s35, 0
      %p244 = por %p242, %p243
      %p245 = scmp.ne.s32.totalorder %s231, %s232
      %p246 = scmp.eq.s32.totalorder %s36, 1
      %p247 = por %p245, %p246
      %p249 = scmp.ne.s32.totalorder %s232, %s248
      %p250 = scmp.eq.s32.totalorder %s36, 0
      %p251 = por %p249, %p250
      %s252 = ssub.s32 %s37, %s49
      %s253 = ssub.s32 %s38, %s45
      %s254 = sor.u32 %s252, %s253
      %p255 = scmp.eq.s32.totalorder %s254, 0
      %s257 = sadd.s32 %s256, 1
      %s258 = scalar_select %p255, %s256, %s257
      %p261 = pneg %p255
      %p262 = scmp.eq.s32.totalorder %s30, 1
      %p263 = por %p261, %p262
      %p264 = scmp.ne.s32.totalorder %s256, %s259
      %p265 = scmp.eq.s32.totalorder %s30, 0
      %p266 = por %p264, %p265
      %p267 = scmp.ne.s32.totalorder %s256, %s259
      %p268 = scmp.eq.s32.totalorder %s35, 1
      %p269 = por %p267, %p268
      %p270 = scmp.ne.s32.totalorder %s259, %s260
      %p271 = scmp.eq.s32.totalorder %s35, 0
      %p272 = por %p270, %p271
      %p273 = scmp.ne.s32.totalorder %s259, %s260
      %p274 = scmp.eq.s32.totalorder %s36, 1
      %p275 = por %p273, %p274
      %p277 = scmp.ne.s32.totalorder %s260, %s276
      %p278 = scmp.eq.s32.totalorder %s36, 0
      %p279 = por %p277, %p278
      %s280 = ssub.s32 %s37, %s49
      %s281 = ssub.s32 %s38, %s45
      %s282 = sor.u32 %s280, %s281
      %p283 = scmp.eq.s32.totalorder %s282, 0
      %s285 = sadd.s32 %s284, 1
      %s286 = scalar_select %p283, %s284, %s285
      %p289 = pneg %p283
      %p290 = scmp.eq.s32.totalorder %s30, 1
      %p291 = por %p289, %p290
      %p292 = scmp.ne.s32.totalorder %s284, %s287
      %p293 = scmp.eq.s32.totalorder %s30, 0
      %p294 = por %p292, %p293
      %p295 = scmp.ne.s32.totalorder %s284, %s287
      %p296 = scmp.eq.s32.totalorder %s35, 1
      %p297 = por %p295, %p296
      %p298 = scmp.ne.s32.totalorder %s287, %s288
      %p299 = scmp.eq.s32.totalorder %s35, 0
      %p300 = por %p298, %p299
      %p301 = scmp.ne.s32.totalorder %s287, %s288
      %p302 = scmp.eq.s32.totalorder %s36, 1
      %p303 = por %p301, %p302
      %p305 = scmp.ne.s32.totalorder %s288, %s304
      %p306 = scmp.eq.s32.totalorder %s36, 0
      %p307 = por %p305, %p306
      %p308 = scmp.le.s32.totalorder 1, %s30
      %p309 = scmp.lt.s32.totalorder %s30, 3
      %p310 = pnand %p308, %p309
      %p311 = pneg %p310
      // Predicated region
      $region9: #{tpu_custom_call.1} parent=5 // pred_check
        _
      $region10: #{tpu_custom_call.1} parent=5 // pred_check_branch
        %313 = sbr.rel (%p310) target = $region12
      $region11: #{tpu_custom_call.1} parent=5 // pred_region
        %s314 = ssub.s32 %s30, 1
        // Predicated region
        $region13: #{tpu_custom_call.1} parent=11 // pred_check
          %p315 = pneg %p148
        $region14: #{tpu_custom_call.1} parent=11 // pred_check_branch
          %317 = sbr.rel (%p315) target = $region16
        $region15: #{tpu_custom_call.1} parent=11 // pred_region
          %s318 = smul.u32 16, %s40
          %s320 = ssub.s32 2048, 2048
          %321 = vsyncadd [#allocation9], %s320
          %s322 = smul.addr %s318, 128
          %s323 = scalar_lea.hbm %s3, %s322
          %s324 = sshll.u32 [#allocation8], 4
          %s325 = int_to_ptr.vmem [resolvable:$true] %s324
          %330 = dma.hbm_to_vmem [thread:$0]  %s323, 2048, %s325, [#allocation9], 128, 128, 8
        $region16: #{tpu_custom_call.1} parent=11 // pred_fallthru
          _
        // Predicated region
        $region17: #{tpu_custom_call.1} parent=11 // pred_check
          %p331 = pneg %p174
        $region18: #{tpu_custom_call.1} parent=11 // pred_check_branch
          %333 = sbr.rel (%p331) target = $region20
        $region19: #{tpu_custom_call.1} parent=11 // pred_region
          %s334 = smul.u32 16, %s40
          %s336 = ssub.s32 2048, 2048
          %337 = vsyncadd [#allocation9], %s336
          %s338 = smul.addr %s334, 128
          %s339 = scalar_lea.hbm %s4, %s338
          %s340 = sshll.u32 [#allocation10], 4
          %s341 = int_to_ptr.vmem [resolvable:$true] %s340
          %346 = dma.hbm_to_vmem [thread:$0]  %s339, 2048, %s341, [#allocation9], 128, 128, 8
        $region20: #{tpu_custom_call.1} parent=11 // pred_fallthru
          _
        // Predicated region
        $region21: #{tpu_custom_call.1} parent=11 // pred_check
          %p347 = pneg %p195
        $region22: #{tpu_custom_call.1} parent=11 // pred_check_branch
          %349 = sbr.rel (%p347) target = $region24
        $region23: #{tpu_custom_call.1} parent=11 // pred_region
          %s351 = ssub.s32 12288, 12288
          %352 = vsyncadd [#allocation12], %s351
          %s353 = sshll.u32 [#allocation11], 4
          %s354 = int_to_ptr.vmem [resolvable:$true] %s353
          %359 = dma.hbm_to_vmem [thread:$0]  %s5, 12288, %s354, [#allocation12], 384, 384, 24
        $region24: #{tpu_custom_call.1} parent=11 // pred_fallthru
          _
        // Predicated region
        $region25: #{tpu_custom_call.1} parent=11 // pred_check
          %p360 = pneg %p216
        $region26: #{tpu_custom_call.1} parent=11 // pred_check_branch
          %362 = sbr.rel (%p360) target = $region28
        $region27: #{tpu_custom_call.1} parent=11 // pred_region
          _
        $region28: #{tpu_custom_call.1} parent=11 // pred_fallthru
          _
      $region12: #{tpu_custom_call.1} parent=5 // pred_fallthru
        _
      %p363 = scmp.lt.s32.totalorder %s30, 2
      // Predicated region
      $region29: #{tpu_custom_call.1} parent=5 // pred_check
        %p364 = pneg %p363
      $region30: #{tpu_custom_call.1} parent=5 // pred_check_branch
        %366 = sbr.rel (%p364) target = $region32
      $region31: #{tpu_custom_call.1} parent=5 // pred_region
        // Predicated region
        $region33: #{tpu_custom_call.1} parent=31 // pred_check
          %p367 = pneg %p64
        $region34: #{tpu_custom_call.1} parent=31 // pred_check_branch
          %369 = sbr.rel (%p367) target = $region36
        $region35: #{tpu_custom_call.1} parent=31 // pred_region
          %s370 = sand.u32 %s54, 1
          %s371 = scalar_lea.sflag [#allocation3], %s370
          %s372 = sand.u32 %s54, 1
          %s373 = smul.addr %s372, 256
          %s374 = scalar_lea.vmem [#allocation2], %s373
          %s375 = smul.u32 16, %s38
          %s377 = ssub.s32 4096, 4096
          %378 = vsyncadd %s371, %s377
          %s379 = smul.addr %s375, 2
          %s380 = smul.addr %s37, 32
          %s381 = sadd.s32 %s379, %s380
          %s382 = smul.addr %s381, 128
          %s383 = scalar_lea.hbm %s0, %s382
          %s384 = sshll.u32 %s374, 4
          %s385 = int_to_ptr.vmem [resolvable:$true] %s384
          %390 = dma.hbm_to_vmem [thread:$0]  %s383, 4096, %s385, %s371, 256, 256, 16
        $region36: #{tpu_custom_call.1} parent=31 // pred_fallthru
          _
        // Predicated region
        $region37: #{tpu_custom_call.1} parent=31 // pred_check
          %p391 = pneg %p90
        $region38: #{tpu_custom_call.1} parent=31 // pred_check_branch
          %393 = sbr.rel (%p391) target = $region40
        $region39: #{tpu_custom_call.1} parent=31 // pred_region
          %s394 = sand.u32 %s30, 1
          %s395 = scalar_lea.sflag [#allocation6], %s394
          %s396 = sand.u32 %s80, 1
          %s397 = smul.addr %s396, 2
          %s398 = scalar_lea.vmem [#allocation5], %s397
          %s400 = ssub.s32 32, 32
          %401 = vsyncadd %s395, %s400
          %s402 = smul.addr %s37, 2
          %s403 = smul.addr %s402, 16
          %s404 = scalar_lea.hbm %s1, %s403
          %s406 = sshll.u32 %s398, 4
          %s407 = int_to_ptr.vmem [resolvable:$true] %s406
          %409 = dma.hbm_to_vmem [thread:$0]  %s404, 32, %s407, %s395
        $region40: #{tpu_custom_call.1} parent=31 // pred_fallthru
          _
        // Predicated region
        $region41: #{tpu_custom_call.1} parent=31 // pred_check
          %p410 = pneg %p116
        $region42: #{tpu_custom_call.1} parent=31 // pred_check_branch
          %412 = sbr.rel (%p410) target = $region44
        $region43: #{tpu_custom_call.1} parent=31 // pred_region
          %s413 = sand.u32 %s30, 1
          %s414 = scalar_lea.sflag [#allocation6], %s413
          %s415 = sand.u32 %s106, 1
          %s416 = smul.addr %s415, 2
          %s417 = scalar_lea.vmem [#allocation7], %s416
          %s419 = ssub.s32 32, 32
          %420 = vsyncadd %s414, %s419
          %s421 = smul.addr %s37, 2
          %s422 = smul.addr %s421, 16
          %s423 = scalar_lea.hbm %s2, %s422
          %s425 = sshll.u32 %s417, 4
          %s426 = int_to_ptr.vmem [resolvable:$true] %s425
          %428 = dma.hbm_to_vmem [thread:$0]  %s423, 32, %s426, %s414
        $region44: #{tpu_custom_call.1} parent=31 // pred_fallthru
          _
      $region32: #{tpu_custom_call.1} parent=5 // pred_fallthru
        _
      %p429 = scmp.le.s32.totalorder 1, %s30
      %p430 = scmp.lt.s32.totalorder %s30, 3
      %p431 = pnand %p429, %p430
      %p432 = pneg %p431
      // Predicated region
      $region45: #{tpu_custom_call.1} parent=5 // pred_check
        _
      $region46: #{tpu_custom_call.1} parent=5 // pred_check_branch
        %434 = sbr.rel (%p431) target = $region48
      $region47: #{tpu_custom_call.1} parent=5 // pred_region
        %s435 = ssub.s32 %s30, 1
        %s436 = sand.u32 %s57, 1
        %s437 = scalar_lea.sflag [#allocation3], %s436
        %s438 = sand.u32 %s57, 1
        %s439 = smul.addr %s438, 256
        %s440 = scalar_lea.vmem [#allocation2], %s439
        // Predicated region
        $region49: #{tpu_custom_call.1} parent=47 // pred_check
          %p441 = pneg %p70
        $region50: #{tpu_custom_call.1} parent=47 // pred_check_branch
          %443 = sbr.rel (%p441) target = $region52
        $region51: #{tpu_custom_call.1} parent=47 // pred_region
          %444 = dma.done %s437, 4096
        $region52: #{tpu_custom_call.1} parent=47 // pred_fallthru
          _
        %s445 = sand.u32 %s35, 1
        %s446 = scalar_lea.sflag [#allocation6], %s445
        %s447 = sand.u32 %s83, 1
        %s448 = smul.addr %s447, 2
        %s449 = scalar_lea.vmem [#allocation5], %s448
        // Predicated region
        $region53: #{tpu_custom_call.1} parent=47 // pred_check
          %p450 = pneg %p96
        $region54: #{tpu_custom_call.1} parent=47 // pred_check_branch
          %452 = sbr.rel (%p450) target = $region56
        $region55: #{tpu_custom_call.1} parent=47 // pred_region
          %453 = dma.done %s446, 32
        $region56: #{tpu_custom_call.1} parent=47 // pred_fallthru
          _
        %s454 = sand.u32 %s35, 1
        %s455 = scalar_lea.sflag [#allocation6], %s454
        %s456 = sand.u32 %s109, 1
        %s457 = smul.addr %s456, 2
        %s458 = scalar_lea.vmem [#allocation7], %s457
        // Predicated region
        $region57: #{tpu_custom_call.1} parent=47 // pred_check
          %p459 = pneg %p122
        $region58: #{tpu_custom_call.1} parent=47 // pred_check_branch
          %461 = sbr.rel (%p459) target = $region60
        $region59: #{tpu_custom_call.1} parent=47 // pred_region
          %462 = dma.done %s455, 32
        $region60: #{tpu_custom_call.1} parent=47 // pred_fallthru
          _
        // Predicated region
        $region61: #{tpu_custom_call.1} parent=47 // pred_check
          %p463 = pneg %p148
        $region62: #{tpu_custom_call.1} parent=47 // pred_check_branch
          %465 = sbr.rel (%p463) target = $region64
        $region63: #{tpu_custom_call.1} parent=47 // pred_region
          %466 = dma.done [#allocation9], 2048
        $region64: #{tpu_custom_call.1} parent=47 // pred_fallthru
          _
        // Predicated region
        $region65: #{tpu_custom_call.1} parent=47 // pred_check
          %p467 = pneg %p174
        $region66: #{tpu_custom_call.1} parent=47 // pred_check_branch
          %469 = sbr.rel (%p467) target = $region68
        $region67: #{tpu_custom_call.1} parent=47 // pred_region
          %470 = dma.done [#allocation9], 2048
        $region68: #{tpu_custom_call.1} parent=47 // pred_fallthru
          _
        // Predicated region
        $region69: #{tpu_custom_call.1} parent=47 // pred_check
          %p471 = pneg %p195
        $region70: #{tpu_custom_call.1} parent=47 // pred_check_branch
          %473 = sbr.rel (%p471) target = $region72
        $region71: #{tpu_custom_call.1} parent=47 // pred_region
          %474 = dma.done [#allocation12], 12288
        $region72: #{tpu_custom_call.1} parent=47 // pred_fallthru
          _
        %s475 = sand.u32 %s57, 1
        %s476 = scalar_lea.sflag [#allocation3], %s475
        %s477 = sand.u32 %s57, 1
        %s478 = smul.addr %s477, 256
        %s479 = scalar_lea.vmem [#allocation2], %s478
        %p480 = pneg %p70
        %p481 = pneg %p67
        %s482 = sand.u32 %s35, 1
        %s483 = scalar_lea.sflag [#allocation6], %s482
        %s484 = sand.u32 %s83, 1
        %s485 = smul.addr %s484, 2
        %s486 = scalar_lea.vmem [#allocation5], %s485
        %p487 = pneg %p96
        %p488 = pneg %p93
        %s489 = sand.u32 %s35, 1
        %s490 = scalar_lea.sflag [#allocation6], %s489
        %s491 = sand.u32 %s109, 1
        %s492 = smul.addr %s491, 2
        %s493 = scalar_lea.vmem [#allocation7], %s492
        %p494 = pneg %p122
        %p495 = pneg %p119
        %p496 = pneg %p148
        %p497 = pneg %p145
        %p498 = pneg %p174
        %p499 = pneg %p171
        %p500 = pneg %p195
        %p501 = pneg %p192
        %p502 = pneg %p216
        %p503 = pneg %p213
        %p504 = pneg %p244
        %p505 = pneg %p241
        %s506 = sand.u32 %s231, 1
        %s507 = scalar_lea.sflag [#allocation4], %s506
        %s508 = sand.u32 %s231, 1
        %s509 = smul.addr %s508, 128
        %s510 = scalar_lea.vmem [#allocation13], %s509
        %p511 = pneg %p272
        %p512 = pneg %p269
        %s513 = sand.u32 %s35, 1
        %s514 = scalar_lea.sflag [#allocation15], %s513
        %s515 = sand.u32 %s259, 1
        %s516 = smul.addr %s515, 128
        %s517 = scalar_lea.vmem [#allocation14], %s516
        %p518 = pneg %p300
        %p519 = pneg %p297
        %s520 = sand.u32 %s35, 1
        %s521 = scalar_lea.sflag [#allocation15], %s520
        %s522 = sand.u32 %s287, 1
        %s523 = smul.addr %s522, 128
        %s524 = scalar_lea.vmem [#allocation16], %s523
        %s525 = smul.u32 16, %s40
        %s526 = smul.u32 16, %s40
        %s527 = smul.u32 16, %s40
        %s528 = smul.u32 16, %s40
        %s529 = smul.u32 16, %s40
        %s530 = smul.u32 16, %s40
        %v531 = vld [vmem:[%s440] sm:$0xff]
        %v532 = vld [vmem:[%s440 + $0x8] sm:$0xff]
        %v533 = vld [vmem:[%s440 + $0x10] sm:$0xff]
        %v534 = vld [vmem:[%s440 + $0x18] sm:$0xff]
        %v535 = vld [vmem:[%s440 + $0x20] sm:$0xff]
        %v536 = vld [vmem:[%s440 + $0x28] sm:$0xff]
        %v537 = vld [vmem:[%s440 + $0x30] sm:$0xff]
        %v538 = vld [vmem:[%s440 + $0x38] sm:$0xff]
        %v539 = vld [vmem:[%s440 + $0x40] sm:$0xff]
        %v540 = vld [vmem:[%s440 + $0x48] sm:$0xff]
        %v541 = vld [vmem:[%s440 + $0x50] sm:$0xff]
        %v542 = vld [vmem:[%s440 + $0x58] sm:$0xff]
        %v543 = vld [vmem:[%s440 + $0x60] sm:$0xff]
        %v544 = vld [vmem:[%s440 + $0x68] sm:$0xff]
        %v545 = vld [vmem:[%s440 + $0x70] sm:$0xff]
        %v546 = vld [vmem:[%s440 + $0x78] sm:$0xff]
        %v547 = vld [vmem:[%s440 + $0x80] sm:$0xff]
        %v548 = vld [vmem:[%s440 + $0x88] sm:$0xff]
        %v549 = vld [vmem:[%s440 + $0x90] sm:$0xff]
        %v550 = vld [vmem:[%s440 + $0x98] sm:$0xff]
        %v551 = vld [vmem:[%s440 + $0xa0] sm:$0xff]
        %v552 = vld [vmem:[%s440 + $0xa8] sm:$0xff]
        %v553 = vld [vmem:[%s440 + $0xb0] sm:$0xff]
        %v554 = vld [vmem:[%s440 + $0xb8] sm:$0xff]
        %v555 = vld [vmem:[%s440 + $0xc0] sm:$0xff]
        %v556 = vld [vmem:[%s440 + $0xc8] sm:$0xff]
        %v557 = vld [vmem:[%s440 + $0xd0] sm:$0xff]
        %v558 = vld [vmem:[%s440 + $0xd8] sm:$0xff]
        %v559 = vld [vmem:[%s440 + $0xe0] sm:$0xff]
        %v560 = vld [vmem:[%s440 + $0xe8] sm:$0xff]
        %v561 = vld [vmem:[%s440 + $0xf0] sm:$0xff]
        %v562 = vld [vmem:[%s440 + $0xf8] sm:$0xff]
        %v563 = vadd.f32 %v531, %v532
        %564 = vadd.xlane.f32.xlu0 %v563
        %v565 = vpop.xlane.xlu0 %564
        %v566 = vadd.f32 %v533, %v534
        %567 = vadd.xlane.f32.xlu0 %v566
        %v568 = vpop.xlane.xlu0 %567
        %v569 = vadd.f32 %v535, %v536
        %570 = vadd.xlane.f32.xlu0 %v569
        %v571 = vpop.xlane.xlu0 %570
        %v572 = vadd.f32 %v537, %v538
        %573 = vadd.xlane.f32.xlu0 %v572
        %v574 = vpop.xlane.xlu0 %573
        %v575 = vadd.f32 %v539, %v540
        %576 = vadd.xlane.f32.xlu0 %v575
        %v577 = vpop.xlane.xlu0 %576
        %v578 = vadd.f32 %v541, %v542
        %579 = vadd.xlane.f32.xlu0 %v578
        %v580 = vpop.xlane.xlu0 %579
        %v581 = vadd.f32 %v543, %v544
        %582 = vadd.xlane.f32.xlu0 %v581
        %v583 = vpop.xlane.xlu0 %582
        %v584 = vadd.f32 %v545, %v546
        %585 = vadd.xlane.f32.xlu0 %v584
        %v586 = vpop.xlane.xlu0 %585
        %v587 = vadd.f32 %v547, %v548
        %588 = vadd.xlane.f32.xlu0 %v587
        %v589 = vpop.xlane.xlu0 %588
        %v590 = vadd.f32 %v549, %v550
        %591 = vadd.xlane.f32.xlu0 %v590
        %v592 = vpop.xlane.xlu0 %591
        %v593 = vadd.f32 %v551, %v552
        %594 = vadd.xlane.f32.xlu0 %v593
        %v595 = vpop.xlane.xlu0 %594
        %v596 = vadd.f32 %v553, %v554
        %597 = vadd.xlane.f32.xlu0 %v596
        %v598 = vpop.xlane.xlu0 %597
        %v599 = vadd.f32 %v555, %v556
        %600 = vadd.xlane.f32.xlu0 %v599
        %v601 = vpop.xlane.xlu0 %600
        %v602 = vadd.f32 %v557, %v558
        %603 = vadd.xlane.f32.xlu0 %v602
        %v604 = vpop.xlane.xlu0 %603
        %v605 = vadd.f32 %v559, %v560
        %606 = vadd.xlane.f32.xlu0 %v605
        %v607 = vpop.xlane.xlu0 %606
        %v608 = vadd.f32 %v561, %v562
        %609 = vadd.xlane.f32.xlu0 %v608
        %v610 = vpop.xlane.xlu0 %609
        %v611 = vrcp.pop 256.0
        %v612 = vmul.f32 %v565, %v611
        %v613 = vmul.f32 %v568, %v611
        %v614 = vmul.f32 %v571, %v611
        %v615 = vmul.f32 %v574, %v611
        %v616 = vmul.f32 %v577, %v611
        %v617 = vmul.f32 %v580, %v611
        %v618 = vmul.f32 %v583, %v611
        %v619 = vmul.f32 %v586, %v611
        %v620 = vmul.f32 %v589, %v611
        %v621 = vmul.f32 %v592, %v611
        %v622 = vmul.f32 %v595, %v611
        %v623 = vmul.f32 %v598, %v611
        %v624 = vmul.f32 %v601, %v611
        %v625 = vmul.f32 %v604, %v611
        %v626 = vmul.f32 %v607, %v611
        %v627 = vmul.f32 %v610, %v611
        %v628 = vmul.f32 %v531, %v531
        %v629 = vmul.f32 %v532, %v532
        %v630 = vmul.f32 %v533, %v533
        %v631 = vmul.f32 %v534, %v534
        %v632 = vmul.f32 %v535, %v535
        %v633 = vmul.f32 %v536, %v536
        %v634 = vmul.f32 %v537, %v537
        %v635 = vmul.f32 %v538, %v538
        %v636 = vmul.f32 %v539, %v539
        %v637 = vmul.f32 %v540, %v540
        %v638 = vmul.f32 %v541, %v541
        %v639 = vmul.f32 %v542, %v542
        %v640 = vmul.f32 %v543, %v543
        %v641 = vmul.f32 %v544, %v544
        %v642 = vmul.f32 %v545, %v545
        %v643 = vmul.f32 %v546, %v546
        %v644 = vmul.f32 %v547, %v547
        %v645 = vmul.f32 %v548, %v548
        %v646 = vmul.f32 %v549, %v549
        %v647 = vmul.f32 %v550, %v550
        %v648 = vmul.f32 %v551, %v551
        %v649 = vmul.f32 %v552, %v552
        %v650 = vmul.f32 %v553, %v553
        %v651 = vmul.f32 %v554, %v554
        %v652 = vmul.f32 %v555, %v555
        %v653 = vmul.f32 %v556, %v556
        %v654 = vmul.f32 %v557, %v557
        %v655 = vmul.f32 %v558, %v558
        %v656 = vmul.f32 %v559, %v559
        %v657 = vmul.f32 %v560, %v560
        %v658 = vmul.f32 %v561, %v561
        %v659 = vmul.f32 %v562, %v562
        %v660 = vadd.f32 %v628, %v629
        %661 = vadd.xlane.f32.xlu0 %v660
        %v662 = vpop.xlane.xlu0 %661
        %v663 = vadd.f32 %v630, %v631
        %664 = vadd.xlane.f32.xlu0 %v663
        %v665 = vpop.xlane.xlu0 %664
        %v666 = vadd.f32 %v632, %v633
        %667 = vadd.xlane.f32.xlu0 %v666
        %v668 = vpop.xlane.xlu0 %667
        %v669 = vadd.f32 %v634, %v635
        %670 = vadd.xlane.f32.xlu0 %v669
        %v671 = vpop.xlane.xlu0 %670
        %v672 = vadd.f32 %v636, %v637
        %673 = vadd.xlane.f32.xlu0 %v672
        %v674 = vpop.xlane.xlu0 %673
        %v675 = vadd.f32 %v638, %v639
        %676 = vadd.xlane.f32.xlu0 %v675
        %v677 = vpop.xlane.xlu0 %676
        %v678 = vadd.f32 %v640, %v641
        %679 = vadd.xlane.f32.xlu0 %v678
        %v680 = vpop.xlane.xlu0 %679
        %v681 = vadd.f32 %v642, %v643
        %682 = vadd.xlane.f32.xlu0 %v681
        %v683 = vpop.xlane.xlu0 %682
        %v684 = vadd.f32 %v644, %v645
        %685 = vadd.xlane.f32.xlu0 %v684
        %v686 = vpop.xlane.xlu0 %685
        %v687 = vadd.f32 %v646, %v647
        %688 = vadd.xlane.f32.xlu0 %v687
        %v689 = vpop.xlane.xlu0 %688
        %v690 = vadd.f32 %v648, %v649
        %691 = vadd.xlane.f32.xlu0 %v690
        %v692 = vpop.xlane.xlu0 %691
        %v693 = vadd.f32 %v650, %v651
        %694 = vadd.xlane.f32.xlu0 %v693
        %v695 = vpop.xlane.xlu0 %694
        %v696 = vadd.f32 %v652, %v653
        %697 = vadd.xlane.f32.xlu0 %v696
        %v698 = vpop.xlane.xlu0 %697
        %v699 = vadd.f32 %v654, %v655
        %700 = vadd.xlane.f32.xlu0 %v699
        %v701 = vpop.xlane.xlu0 %700
        %v702 = vadd.f32 %v656, %v657
        %703 = vadd.xlane.f32.xlu0 %v702
        %v704 = vpop.xlane.xlu0 %703
        %v705 = vadd.f32 %v658, %v659
        %706 = vadd.xlane.f32.xlu0 %v705
        %v707 = vpop.xlane.xlu0 %706
        %v708 = vmul.f32 %v662, %v611
        %v709 = vmul.f32 %v665, %v611
        %v710 = vmul.f32 %v668, %v611
        %v711 = vmul.f32 %v671, %v611
        %v712 = vmul.f32 %v674, %v611
        %v713 = vmul.f32 %v677, %v611
        %v714 = vmul.f32 %v680, %v611
        %v715 = vmul.f32 %v683, %v611
        %v716 = vmul.f32 %v686, %v611
        %v717 = vmul.f32 %v689, %v611
        %v718 = vmul.f32 %v692, %v611
        %v719 = vmul.f32 %v695, %v611
        %v720 = vmul.f32 %v698, %v611
        %v721 = vmul.f32 %v701, %v611
        %v722 = vmul.f32 %v704, %v611
        %v723 = vmul.f32 %v707, %v611
        %v724 = vmul.f32 %v612, %v612
        %v725 = vmul.f32 %v613, %v613
        %v726 = vmul.f32 %v614, %v614
        %v727 = vmul.f32 %v615, %v615
        %v728 = vmul.f32 %v616, %v616
        %v729 = vmul.f32 %v617, %v617
        %v730 = vmul.f32 %v618, %v618
        %v731 = vmul.f32 %v619, %v619
        %v732 = vmul.f32 %v620, %v620
        %v733 = vmul.f32 %v621, %v621
        %v734 = vmul.f32 %v622, %v622
        %v735 = vmul.f32 %v623, %v623
        %v736 = vmul.f32 %v624, %v624
        %v737 = vmul.f32 %v625, %v625
        %v738 = vmul.f32 %v626, %v626
        %v739 = vmul.f32 %v627, %v627
        %v740 = vsub.f32 %v708, %v724
        %v741 = vsub.f32 %v709, %v725
        %v742 = vsub.f32 %v710, %v726
        %v743 = vsub.f32 %v711, %v727
        %v744 = vsub.f32 %v712, %v728
        %v745 = vsub.f32 %v713, %v729
        %v746 = vsub.f32 %v714, %v730
        %v747 = vsub.f32 %v715, %v731
        %v748 = vsub.f32 %v716, %v732
        %v749 = vsub.f32 %v717, %v733
        %v750 = vsub.f32 %v718, %v734
        %v751 = vsub.f32 %v719, %v735
        %v752 = vsub.f32 %v720, %v736
        %v753 = vsub.f32 %v721, %v737
        %v754 = vsub.f32 %v722, %v738
        %v755 = vsub.f32 %v723, %v739
        %v756 = vsub.f32 %v531, %v612
        %v757 = vsub.f32 %v532, %v612
        %v758 = vsub.f32 %v533, %v613
        %v759 = vsub.f32 %v534, %v613
        %v760 = vsub.f32 %v535, %v614
        %v761 = vsub.f32 %v536, %v614
        %v762 = vsub.f32 %v537, %v615
        %v763 = vsub.f32 %v538, %v615
        %v764 = vsub.f32 %v539, %v616
        %v765 = vsub.f32 %v540, %v616
        %v766 = vsub.f32 %v541, %v617
        %v767 = vsub.f32 %v542, %v617
        %v768 = vsub.f32 %v543, %v618
        %v769 = vsub.f32 %v544, %v618
        %v770 = vsub.f32 %v545, %v619
        %v771 = vsub.f32 %v546, %v619
        %v772 = vsub.f32 %v547, %v620
        %v773 = vsub.f32 %v548, %v620
        %v774 = vsub.f32 %v549, %v621
        %v775 = vsub.f32 %v550, %v621
        %v776 = vsub.f32 %v551, %v622
        %v777 = vsub.f32 %v552, %v622
        %v778 = vsub.f32 %v553, %v623
        %v779 = vsub.f32 %v554, %v623
        %v780 = vsub.f32 %v555, %v624
        %v781 = vsub.f32 %v556, %v624
        %v782 = vsub.f32 %v557, %v625
        %v783 = vsub.f32 %v558, %v625
        %v784 = vsub.f32 %v559, %v626
        %v785 = vsub.f32 %v560, %v626
        %v786 = vsub.f32 %v561, %v627
        %v787 = vsub.f32 %v562, %v627
        %v788 = vadd.f32 %v740, 1e-05
        %v789 = vadd.f32 %v741, 1e-05
        %v790 = vadd.f32 %v742, 1e-05
        %v791 = vadd.f32 %v743, 1e-05
        %v792 = vadd.f32 %v744, 1e-05
        %v793 = vadd.f32 %v745, 1e-05
        %v794 = vadd.f32 %v746, 1e-05
        %v795 = vadd.f32 %v747, 1e-05
        %v796 = vadd.f32 %v748, 1e-05
        %v797 = vadd.f32 %v749, 1e-05
        %v798 = vadd.f32 %v750, 1e-05
        %v799 = vadd.f32 %v751, 1e-05
        %v800 = vadd.f32 %v752, 1e-05
        %v801 = vadd.f32 %v753, 1e-05
        %v802 = vadd.f32 %v754, 1e-05
        %v803 = vadd.f32 %v755, 1e-05
        %v804 = vrsqrt.pop %v788
        %v805 = vrsqrt.pop %v789
        %v806 = vrsqrt.pop %v790
        %v807 = vrsqrt.pop %v791
        %v808 = vrsqrt.pop %v792
        %v809 = vrsqrt.pop %v793
        %v810 = vrsqrt.pop %v794
        %v811 = vrsqrt.pop %v795
        %v812 = vrsqrt.pop %v796
        %v813 = vrsqrt.pop %v797
        %v814 = vrsqrt.pop %v798
        %v815 = vrsqrt.pop %v799
        %v816 = vrsqrt.pop %v800
        %v817 = vrsqrt.pop %v801
        %v818 = vrsqrt.pop %v802
        %v819 = vrsqrt.pop %v803
        %v820 = vmul.f32 %v756, %v804
        %v821 = vmul.f32 %v757, %v804
        %v822 = vmul.f32 %v758, %v805
        %v823 = vmul.f32 %v759, %v805
        %v824 = vmul.f32 %v760, %v806
        %v825 = vmul.f32 %v761, %v806
        %v826 = vmul.f32 %v762, %v807
        %v827 = vmul.f32 %v763, %v807
        %v828 = vmul.f32 %v764, %v808
        %v829 = vmul.f32 %v765, %v808
        %v830 = vmul.f32 %v766, %v809
        %v831 = vmul.f32 %v767, %v809
        %v832 = vmul.f32 %v768, %v810
        %v833 = vmul.f32 %v769, %v810
        %v834 = vmul.f32 %v770, %v811
        %v835 = vmul.f32 %v771, %v811
        %v836 = vmul.f32 %v772, %v812
        %v837 = vmul.f32 %v773, %v812
        %v838 = vmul.f32 %v774, %v813
        %v839 = vmul.f32 %v775, %v813
        %v840 = vmul.f32 %v776, %v814
        %v841 = vmul.f32 %v777, %v814
        %v842 = vmul.f32 %v778, %v815
        %v843 = vmul.f32 %v779, %v815
        %v844 = vmul.f32 %v780, %v816
        %v845 = vmul.f32 %v781, %v816
        %v846 = vmul.f32 %v782, %v817
        %v847 = vmul.f32 %v783, %v817
        %v848 = vmul.f32 %v784, %v818
        %v849 = vmul.f32 %v785, %v818
        %v850 = vmul.f32 %v786, %v819
        %v851 = vmul.f32 %v787, %v819
        %v852 = vld [vmem:[%s458] sm:$0x3]
        %v853 = vadd.f32 %v852, 1.0
        %v855 = vlaneseq
        %v856 = vshrl.u32 %v855, 7
        %v857 = vsub.s32 0, %v856
        %v858 = vrot.slane %v853, %v857
        %v859 = vlaneseq
        %v860 = vshrl.u32 %v859, 7
        %v861 = vsub.s32 1, %v860
        %v862 = vrot.slane %v853, %v861
        %v865 = vmul.f32 %v820, %v858
        %v866 = vmul.f32 %v821, %v862
        %v867 = vmul.f32 %v822, %v858
        %v868 = vmul.f32 %v823, %v862
        %v869 = vmul.f32 %v824, %v858
        %v870 = vmul.f32 %v825, %v862
        %v871 = vmul.f32 %v826, %v858
        %v872 = vmul.f32 %v827, %v862
        %v873 = vmul.f32 %v828, %v858
        %v874 = vmul.f32 %v829, %v862
        %v875 = vmul.f32 %v830, %v858
        %v876 = vmul.f32 %v831, %v862
        %v877 = vmul.f32 %v832, %v858
        %v878 = vmul.f32 %v833, %v862
        %v879 = vmul.f32 %v834, %v858
        %v880 = vmul.f32 %v835, %v862
        %v881 = vmul.f32 %v836, %v858
        %v882 = vmul.f32 %v837, %v862
        %v883 = vmul.f32 %v838, %v858
        %v884 = vmul.f32 %v839, %v862
        %v885 = vmul.f32 %v840, %v858
        %v886 = vmul.f32 %v841, %v862
        %v887 = vmul.f32 %v842, %v858
        %v888 = vmul.f32 %v843, %v862
        %v889 = vmul.f32 %v844, %v858
        %v890 = vmul.f32 %v845, %v862
        %v891 = vmul.f32 %v846, %v858
        %v892 = vmul.f32 %v847, %v862
        %v893 = vmul.f32 %v848, %v858
        %v894 = vmul.f32 %v849, %v862
        %v895 = vmul.f32 %v850, %v858
        %v896 = vmul.f32 %v851, %v862
        %v897 = vld [vmem:[%s449] sm:$0x3]
        %v899 = vlaneseq
        %v900 = vshrl.u32 %v899, 7
        %v901 = vsub.s32 0, %v900
        %v902 = vrot.slane %v897, %v901
        %v903 = vlaneseq
        %v904 = vshrl.u32 %v903, 7
        %v905 = vsub.s32 1, %v904
        %v906 = vrot.slane %v897, %v905
        %v909 = vadd.f32 %v865, %v902
        %v910 = vadd.f32 %v866, %v906
        %v911 = vadd.f32 %v867, %v902
        %v912 = vadd.f32 %v868, %v906
        %v913 = vadd.f32 %v869, %v902
        %v914 = vadd.f32 %v870, %v906
        %v915 = vadd.f32 %v871, %v902
        %v916 = vadd.f32 %v872, %v906
        %v917 = vadd.f32 %v873, %v902
        %v918 = vadd.f32 %v874, %v906
        %v919 = vadd.f32 %v875, %v902
        %v920 = vadd.f32 %v876, %v906
        %v921 = vadd.f32 %v877, %v902
        %v922 = vadd.f32 %v878, %v906
        %v923 = vadd.f32 %v879, %v902
        %v924 = vadd.f32 %v880, %v906
        %v925 = vadd.f32 %v881, %v902
        %v926 = vadd.f32 %v882, %v906
        %v927 = vadd.f32 %v883, %v902
        %v928 = vadd.f32 %v884, %v906
        %v929 = vadd.f32 %v885, %v902
        %v930 = vadd.f32 %v886, %v906
        %v931 = vadd.f32 %v887, %v902
        %v932 = vadd.f32 %v888, %v906
        %v933 = vadd.f32 %v889, %v902
        %v934 = vadd.f32 %v890, %v906
        %v935 = vadd.f32 %v891, %v902
        %v936 = vadd.f32 %v892, %v906
        %v937 = vadd.f32 %v893, %v902
        %v938 = vadd.f32 %v894, %v906
        %v939 = vadd.f32 %v895, %v902
        %v940 = vadd.f32 %v896, %v906
        %v941 = vpack.c.bf16 %v911, %v909
        %v942 = vpack.c.bf16 %v912, %v910
        %v943 = vpack.c.bf16 %v915, %v913
        %v944 = vpack.c.bf16 %v916, %v914
        %v945 = vpack.c.bf16 %v919, %v917
        %v946 = vpack.c.bf16 %v920, %v918
        %v947 = vpack.c.bf16 %v923, %v921
        %v948 = vpack.c.bf16 %v924, %v922
        %v949 = vpack.c.bf16 %v927, %v925
        %v950 = vpack.c.bf16 %v928, %v926
        %v951 = vpack.c.bf16 %v931, %v929
        %v952 = vpack.c.bf16 %v932, %v930
        %v953 = vpack.c.bf16 %v935, %v933
        %v954 = vpack.c.bf16 %v936, %v934
        %v955 = vpack.c.bf16 %v939, %v937
        %v956 = vpack.c.bf16 %v940, %v938
        %v957 = vld [vmem:[#allocation11] sm:$0xff]
        %v958 = vld [vmem:[#allocation11 + $0x8] sm:$0xff]
        %v959 = vld [vmem:[#allocation11 + $0x10] sm:$0xff]
        %v960 = vld [vmem:[#allocation11 + $0x18] sm:$0xff]
        %v961 = vld [vmem:[#allocation11 + $0x20] sm:$0xff]
        %v962 = vld [vmem:[#allocation11 + $0x28] sm:$0xff]
        %v963 = vld [vmem:[#allocation11 + $0x30] sm:$0xff]
        %v964 = vld [vmem:[#allocation11 + $0x38] sm:$0xff]
        %v965 = vld [vmem:[#allocation11 + $0x40] sm:$0xff]
        %v966 = vld [vmem:[#allocation11 + $0x48] sm:$0xff]
        %v967 = vld [vmem:[#allocation11 + $0x50] sm:$0xff]
        %v968 = vld [vmem:[#allocation11 + $0x58] sm:$0xff]
        %v969 = vld [vmem:[#allocation11 + $0x60] sm:$0xff]
        %v970 = vld [vmem:[#allocation11 + $0x68] sm:$0xff]
        %v971 = vld [vmem:[#allocation11 + $0x70] sm:$0xff]
        %v972 = vld [vmem:[#allocation11 + $0x78] sm:$0xff]
        %v973 = vld [vmem:[#allocation11 + $0x80] sm:$0xff]
        %v974 = vld [vmem:[#allocation11 + $0x88] sm:$0xff]
        %v975 = vld [vmem:[#allocation11 + $0x90] sm:$0xff]
        %v976 = vld [vmem:[#allocation11 + $0x98] sm:$0xff]
        %v977 = vld [vmem:[#allocation11 + $0xa0] sm:$0xff]
        %v978 = vld [vmem:[#allocation11 + $0xa8] sm:$0xff]
        %v979 = vld [vmem:[#allocation11 + $0xb0] sm:$0xff]
        %v980 = vld [vmem:[#allocation11 + $0xb8] sm:$0xff]
        %v981 = vld [vmem:[#allocation11 + $0xc0] sm:$0xff]
        %v982 = vld [vmem:[#allocation11 + $0xc8] sm:$0xff]
        %v983 = vld [vmem:[#allocation11 + $0xd0] sm:$0xff]
        %v984 = vld [vmem:[#allocation11 + $0xd8] sm:$0xff]
        %v985 = vld [vmem:[#allocation11 + $0xe0] sm:$0xff]
        %v986 = vld [vmem:[#allocation11 + $0xe8] sm:$0xff]
        %v987 = vld [vmem:[#allocation11 + $0xf0] sm:$0xff]
        %v988 = vld [vmem:[#allocation11 + $0xf8] sm:$0xff]
        %v989 = vld [vmem:[#allocation11 + $0x100] sm:$0xff]
        %v990 = vld [vmem:[#allocation11 + $0x108] sm:$0xff]
        %v991 = vld [vmem:[#allocation11 + $0x110] sm:$0xff]
        %v992 = vld [vmem:[#allocation11 + $0x118] sm:$0xff]
        %v993 = vld [vmem:[#allocation11 + $0x120] sm:$0xff]
        %v994 = vld [vmem:[#allocation11 + $0x128] sm:$0xff]
        %v995 = vld [vmem:[#allocation11 + $0x130] sm:$0xff]
        %v996 = vld [vmem:[#allocation11 + $0x138] sm:$0xff]
        %v997 = vld [vmem:[#allocation11 + $0x140] sm:$0xff]
        %v998 = vld [vmem:[#allocation11 + $0x148] sm:$0xff]
        %v999 = vld [vmem:[#allocation11 + $0x150] sm:$0xff]
        %v1000 = vld [vmem:[#allocation11 + $0x158] sm:$0xff]
        %v1001 = vld [vmem:[#allocation11 + $0x160] sm:$0xff]
        %v1002 = vld [vmem:[#allocation11 + $0x168] sm:$0xff]
        %v1003 = vld [vmem:[#allocation11 + $0x170] sm:$0xff]
        %v1004 = vld [vmem:[#allocation11 + $0x178] sm:$0xff]
        %v1005 = vld [vmem:[#allocation11 + $0x180] sm:$0xff]
        %v1006 = vld [vmem:[#allocation11 + $0x188] sm:$0xff]
        %v1007 = vld [vmem:[#allocation11 + $0x190] sm:$0xff]
        %v1008 = vld [vmem:[#allocation11 + $0x198] sm:$0xff]
        %v1009 = vld [vmem:[#allocation11 + $0x1a0] sm:$0xff]
        %v1010 = vld [vmem:[#allocation11 + $0x1a8] sm:$0xff]
        %v1011 = vld [vmem:[#allocation11 + $0x1b0] sm:$0xff]
        %v1012 = vld [vmem:[#allocation11 + $0x1b8] sm:$0xff]
        %v1013 = vld [vmem:[#allocation11 + $0x1c0] sm:$0xff]
        %v1014 = vld [vmem:[#allocation11 + $0x1c8] sm:$0xff]
        %v1015 = vld [vmem:[#allocation11 + $0x1d0] sm:$0xff]
        %v1016 = vld [vmem:[#allocation11 + $0x1d8] sm:$0xff]
        %v1017 = vld [vmem:[#allocation11 + $0x1e0] sm:$0xff]
        %v1018 = vld [vmem:[#allocation11 + $0x1e8] sm:$0xff]
        %v1019 = vld [vmem:[#allocation11 + $0x1f0] sm:$0xff]
        %v1020 = vld [vmem:[#allocation11 + $0x1f8] sm:$0xff]
        %v1021 = vld [vmem:[#allocation11 + $0x200] sm:$0xff]
        %v1022 = vld [vmem:[#allocation11 + $0x208] sm:$0xff]
        %v1023 = vld [vmem:[#allocation11 + $0x210] sm:$0xff]
        %v1024 = vld [vmem:[#allocation11 + $0x218] sm:$0xff]
        %v1025 = vld [vmem:[#allocation11 + $0x220] sm:$0xff]
        %v1026 = vld [vmem:[#allocation11 + $0x228] sm:$0xff]
        %v1027 = vld [vmem:[#allocation11 + $0x230] sm:$0xff]
        %v1028 = vld [vmem:[#allocation11 + $0x238] sm:$0xff]
        %v1029 = vld [vmem:[#allocation11 + $0x240] sm:$0xff]
        %v1030 = vld [vmem:[#allocation11 + $0x248] sm:$0xff]
        %v1031 = vld [vmem:[#allocation11 + $0x250] sm:$0xff]
        %v1032 = vld [vmem:[#allocation11 + $0x258] sm:$0xff]
        %v1033 = vld [vmem:[#allocation11 + $0x260] sm:$0xff]
        %v1034 = vld [vmem:[#allocation11 + $0x268] sm:$0xff]
        %v1035 = vld [vmem:[#allocation11 + $0x270] sm:$0xff]
        %v1036 = vld [vmem:[#allocation11 + $0x278] sm:$0xff]
        %v1037 = vld [vmem:[#allocation11 + $0x280] sm:$0xff]
        %v1038 = vld [vmem:[#allocation11 + $0x288] sm:$0xff]
        %v1039 = vld [vmem:[#allocation11 + $0x290] sm:$0xff]
        %v1040 = vld [vmem:[#allocation11 + $0x298] sm:$0xff]
        %v1041 = vld [vmem:[#allocation11 + $0x2a0] sm:$0xff]
        %v1042 = vld [vmem:[#allocation11 + $0x2a8] sm:$0xff]
        %v1043 = vld [vmem:[#allocation11 + $0x2b0] sm:$0xff]
        %v1044 = vld [vmem:[#allocation11 + $0x2b8] sm:$0xff]
        %v1045 = vld [vmem:[#allocation11 + $0x2c0] sm:$0xff]
        %v1046 = vld [vmem:[#allocation11 + $0x2c8] sm:$0xff]
        %v1047 = vld [vmem:[#allocation11 + $0x2d0] sm:$0xff]
        %v1048 = vld [vmem:[#allocation11 + $0x2d8] sm:$0xff]
        %v1049 = vld [vmem:[#allocation11 + $0x2e0] sm:$0xff]
        %v1050 = vld [vmem:[#allocation11 + $0x2e8] sm:$0xff]
        %v1051 = vld [vmem:[#allocation11 + $0x2f0] sm:$0xff]
        %v1052 = vld [vmem:[#allocation11 + $0x2f8] sm:$0xff]
        %v1053 = vld [vmem:[%s6] sm:$0x3f]
        %v1055 = vlaneseq
        %v1056 = vshrl.u32 %v1055, 7
        %v1057 = vsub.s32 0, %v1056
        %v1058 = vrot.slane %v1053, %v1057
        %v1059 = vlaneseq
        %v1060 = vshrl.u32 %v1059, 7
        %v1061 = vsub.s32 1, %v1060
        %v1062 = vrot.slane %v1053, %v1061
        %v1063 = vlaneseq
        %v1064 = vshrl.u32 %v1063, 7
        %v1065 = vsub.s32 2, %v1064
        %v1066 = vrot.slane %v1053, %v1065
        %v1067 = vlaneseq
        %v1068 = vshrl.u32 %v1067, 7
        %v1069 = vsub.s32 3, %v1068
        %v1070 = vrot.slane %v1053, %v1069
        %v1071 = vlaneseq
        %v1072 = vshrl.u32 %v1071, 7
        %v1073 = vsub.s32 4, %v1072
        %v1074 = vrot.slane %v1053, %v1073
        %v1075 = vlaneseq
        %v1076 = vshrl.u32 %v1075, 7
        %v1077 = vsub.s32 5, %v1076
        %v1078 = vrot.slane %v1053, %v1077
        %v1181 = vunpack.c.l.b16 %v957
        %v1182 = vunpack.c.h.b16 %v957
        %v1183 = vunpack.c.l.b16 %v958
        %v1184 = vunpack.c.h.b16 %v958
        %v1185 = vunpack.c.l.b16 %v959
        %v1186 = vunpack.c.h.b16 %v959
        %v1187 = vunpack.c.l.b16 %v960
        %v1188 = vunpack.c.h.b16 %v960
        %v1189 = vunpack.c.l.b16 %v961
        %v1190 = vunpack.c.h.b16 %v961
        %v1191 = vunpack.c.l.b16 %v962
        %v1192 = vunpack.c.h.b16 %v962
        %v1193 = vunpack.c.l.b16 %v963
        %v1194 = vunpack.c.h.b16 %v963
        %v1195 = vunpack.c.l.b16 %v964
        %v1196 = vunpack.c.h.b16 %v964
        %v1197 = vunpack.c.l.b16 %v965
        %v1198 = vunpack.c.h.b16 %v965
        %v1199 = vunpack.c.l.b16 %v966
        %v1200 = vunpack.c.h.b16 %v966
        %v1201 = vunpack.c.l.b16 %v967
        %v1202 = vunpack.c.h.b16 %v967
        %v1203 = vunpack.c.l.b16 %v968
        %v1204 = vunpack.c.h.b16 %v968
        %v1205 = vunpack.c.l.b16 %v969
        %v1206 = vunpack.c.h.b16 %v969
        %v1207 = vunpack.c.l.b16 %v970
        %v1208 = vunpack.c.h.b16 %v970
        %v1209 = vunpack.c.l.b16 %v971
        %v1210 = vunpack.c.h.b16 %v971
        %v1211 = vunpack.c.l.b16 %v972
        %v1212 = vunpack.c.h.b16 %v972
        %v1213 = vunpack.c.l.b16 %v973
        %v1214 = vunpack.c.h.b16 %v973
        %v1215 = vunpack.c.l.b16 %v974
        %v1216 = vunpack.c.h.b16 %v974
        %v1217 = vunpack.c.l.b16 %v975
        %v1218 = vunpack.c.h.b16 %v975
        %v1219 = vunpack.c.l.b16 %v976
        %v1220 = vunpack.c.h.b16 %v976
        %v1221 = vunpack.c.l.b16 %v977
        %v1222 = vunpack.c.h.b16 %v977
        %v1223 = vunpack.c.l.b16 %v978
        %v1224 = vunpack.c.h.b16 %v978
        %v1225 = vunpack.c.l.b16 %v979
        %v1226 = vunpack.c.h.b16 %v979
        %v1227 = vunpack.c.l.b16 %v980
        %v1228 = vunpack.c.h.b16 %v980
        %v1229 = vunpack.c.l.b16 %v981
        %v1230 = vunpack.c.h.b16 %v981
        %v1231 = vunpack.c.l.b16 %v982
        %v1232 = vunpack.c.h.b16 %v982
        %v1233 = vunpack.c.l.b16 %v983
        %v1234 = vunpack.c.h.b16 %v983
        %v1235 = vunpack.c.l.b16 %v984
        %v1236 = vunpack.c.h.b16 %v984
        %v1237 = vunpack.c.l.b16 %v985
        %v1238 = vunpack.c.h.b16 %v985
        %v1239 = vunpack.c.l.b16 %v986
        %v1240 = vunpack.c.h.b16 %v986
        %v1241 = vunpack.c.l.b16 %v987
        %v1242 = vunpack.c.h.b16 %v987
        %v1243 = vunpack.c.l.b16 %v988
        %v1244 = vunpack.c.h.b16 %v988
        %v1245 = vunpack.c.l.b16 %v989
        %v1246 = vunpack.c.h.b16 %v989
        %v1247 = vunpack.c.l.b16 %v990
        %v1248 = vunpack.c.h.b16 %v990
        %v1249 = vunpack.c.l.b16 %v991
        %v1250 = vunpack.c.h.b16 %v991
        %v1251 = vunpack.c.l.b16 %v992
        %v1252 = vunpack.c.h.b16 %v992
        %v1253 = vunpack.c.l.b16 %v993
        %v1254 = vunpack.c.h.b16 %v993
        %v1255 = vunpack.c.l.b16 %v994
        %v1256 = vunpack.c.h.b16 %v994
        %v1257 = vunpack.c.l.b16 %v995
        %v1258 = vunpack.c.h.b16 %v995
        %v1259 = vunpack.c.l.b16 %v996
        %v1260 = vunpack.c.h.b16 %v996
        %v1261 = vunpack.c.l.b16 %v997
        %v1262 = vunpack.c.h.b16 %v997
        %v1263 = vunpack.c.l.b16 %v998
        %v1264 = vunpack.c.h.b16 %v998
        %v1265 = vunpack.c.l.b16 %v999
        %v1266 = vunpack.c.h.b16 %v999
        %v1267 = vunpack.c.l.b16 %v1000
        %v1268 = vunpack.c.h.b16 %v1000
        %v1269 = vunpack.c.l.b16 %v1001
        %v1270 = vunpack.c.h.b16 %v1001
        %v1271 = vunpack.c.l.b16 %v1002
        %v1272 = vunpack.c.h.b16 %v1002
        %v1273 = vunpack.c.l.b16 %v1003
        %v1274 = vunpack.c.h.b16 %v1003
        %v1275 = vunpack.c.l.b16 %v1004
        %v1276 = vunpack.c.h.b16 %v1004
        %v1277 = vunpack.c.l.b16 %v1005
        %v1278 = vunpack.c.h.b16 %v1005
        %v1279 = vunpack.c.l.b16 %v1006
        %v1280 = vunpack.c.h.b16 %v1006
        %v1281 = vunpack.c.l.b16 %v1007
        %v1282 = vunpack.c.h.b16 %v1007
        %v1283 = vunpack.c.l.b16 %v1008
        %v1284 = vunpack.c.h.b16 %v1008
        %v1285 = vunpack.c.l.b16 %v1009
        %v1286 = vunpack.c.h.b16 %v1009
        %v1287 = vunpack.c.l.b16 %v1010
        %v1288 = vunpack.c.h.b16 %v1010
        %v1289 = vunpack.c.l.b16 %v1011
        %v1290 = vunpack.c.h.b16 %v1011
        %v1291 = vunpack.c.l.b16 %v1012
        %v1292 = vunpack.c.h.b16 %v1012
        %v1293 = vunpack.c.l.b16 %v1013
        %v1294 = vunpack.c.h.b16 %v1013
        %v1295 = vunpack.c.l.b16 %v1014
        %v1296 = vunpack.c.h.b16 %v1014
        %v1297 = vunpack.c.l.b16 %v1015
        %v1298 = vunpack.c.h.b16 %v1015
        %v1299 = vunpack.c.l.b16 %v1016
        %v1300 = vunpack.c.h.b16 %v1016
        %v1301 = vunpack.c.l.b16 %v1017
        %v1302 = vunpack.c.h.b16 %v1017
        %v1303 = vunpack.c.l.b16 %v1018
        %v1304 = vunpack.c.h.b16 %v1018
        %v1305 = vunpack.c.l.b16 %v1019
        %v1306 = vunpack.c.h.b16 %v1019
        %v1307 = vunpack.c.l.b16 %v1020
        %v1308 = vunpack.c.h.b16 %v1020
        %v1309 = vunpack.c.l.b16 %v1021
        %v1310 = vunpack.c.h.b16 %v1021
        %v1311 = vunpack.c.l.b16 %v1022
        %v1312 = vunpack.c.h.b16 %v1022
        %v1313 = vunpack.c.l.b16 %v1023
        %v1314 = vunpack.c.h.b16 %v1023
        %v1315 = vunpack.c.l.b16 %v1024
        %v1316 = vunpack.c.h.b16 %v1024
        %v1317 = vunpack.c.l.b16 %v1025
        %v1318 = vunpack.c.h.b16 %v1025
        %v1319 = vunpack.c.l.b16 %v1026
        %v1320 = vunpack.c.h.b16 %v1026
        %v1321 = vunpack.c.l.b16 %v1027
        %v1322 = vunpack.c.h.b16 %v1027
        %v1323 = vunpack.c.l.b16 %v1028
        %v1324 = vunpack.c.h.b16 %v1028
        %v1325 = vunpack.c.l.b16 %v1029
        %v1326 = vunpack.c.h.b16 %v1029
        %v1327 = vunpack.c.l.b16 %v1030
        %v1328 = vunpack.c.h.b16 %v1030
        %v1329 = vunpack.c.l.b16 %v1031
        %v1330 = vunpack.c.h.b16 %v1031
        %v1331 = vunpack.c.l.b16 %v1032
        %v1332 = vunpack.c.h.b16 %v1032
        %v1333 = vunpack.c.l.b16 %v1033
        %v1334 = vunpack.c.h.b16 %v1033
        %v1335 = vunpack.c.l.b16 %v1034
        %v1336 = vunpack.c.h.b16 %v1034
        %v1337 = vunpack.c.l.b16 %v1035
        %v1338 = vunpack.c.h.b16 %v1035
        %v1339 = vunpack.c.l.b16 %v1036
        %v1340 = vunpack.c.h.b16 %v1036
        %v1341 = vunpack.c.l.b16 %v1037
        %v1342 = vunpack.c.h.b16 %v1037
        %v1343 = vunpack.c.l.b16 %v1038
        %v1344 = vunpack.c.h.b16 %v1038
        %v1345 = vunpack.c.l.b16 %v1039
        %v1346 = vunpack.c.h.b16 %v1039
        %v1347 = vunpack.c.l.b16 %v1040
        %v1348 = vunpack.c.h.b16 %v1040
        %v1349 = vunpack.c.l.b16 %v1041
        %v1350 = vunpack.c.h.b16 %v1041
        %v1351 = vunpack.c.l.b16 %v1042
        %v1352 = vunpack.c.h.b16 %v1042
        %v1353 = vunpack.c.l.b16 %v1043
        %v1354 = vunpack.c.h.b16 %v1043
        %v1355 = vunpack.c.l.b16 %v1044
        %v1356 = vunpack.c.h.b16 %v1044
        %v1357 = vunpack.c.l.b16 %v1045
        %v1358 = vunpack.c.h.b16 %v1045
        %v1359 = vunpack.c.l.b16 %v1046
        %v1360 = vunpack.c.h.b16 %v1046
        %v1361 = vunpack.c.l.b16 %v1047
        %v1362 = vunpack.c.h.b16 %v1047
        %v1363 = vunpack.c.l.b16 %v1048
        %v1364 = vunpack.c.h.b16 %v1048
        %v1365 = vunpack.c.l.b16 %v1049
        %v1366 = vunpack.c.h.b16 %v1049
        %v1367 = vunpack.c.l.b16 %v1050
        %v1368 = vunpack.c.h.b16 %v1050
        %v1369 = vunpack.c.l.b16 %v1051
        %v1370 = vunpack.c.h.b16 %v1051
        %v1371 = vunpack.c.l.b16 %v1052
        %v1372 = vunpack.c.h.b16 %v1052
        %v1373 = vpack.c.b16 %v1187, %v1181
        %v1374 = vpack.c.b16 %v1188, %v1182
        %v1375 = vpack.c.b16 %v1189, %v1183
        %v1376 = vpack.c.b16 %v1190, %v1184
        %v1377 = vpack.c.b16 %v1191, %v1185
        %v1378 = vpack.c.b16 %v1192, %v1186
        %v1379 = vpack.c.b16 %v1199, %v1193
        %v1380 = vpack.c.b16 %v1200, %v1194
        %v1381 = vpack.c.b16 %v1201, %v1195
        %v1382 = vpack.c.b16 %v1202, %v1196
        %v1383 = vpack.c.b16 %v1203, %v1197
        %v1384 = vpack.c.b16 %v1204, %v1198
        %v1385 = vpack.c.b16 %v1211, %v1205
        %v1386 = vpack.c.b16 %v1212, %v1206
        %v1387 = vpack.c.b16 %v1213, %v1207
        %v1388 = vpack.c.b16 %v1214, %v1208
        %v1389 = vpack.c.b16 %v1215, %v1209
        %v1390 = vpack.c.b16 %v1216, %v1210
        %v1391 = vpack.c.b16 %v1223, %v1217
        %v1392 = vpack.c.b16 %v1224, %v1218
        %v1393 = vpack.c.b16 %v1225, %v1219
        %v1394 = vpack.c.b16 %v1226, %v1220
        %v1395 = vpack.c.b16 %v1227, %v1221
        %v1396 = vpack.c.b16 %v1228, %v1222
        %v1397 = vpack.c.b16 %v1235, %v1229
        %v1398 = vpack.c.b16 %v1236, %v1230
        %v1399 = vpack.c.b16 %v1237, %v1231
        %v1400 = vpack.c.b16 %v1238, %v1232
        %v1401 = vpack.c.b16 %v1239, %v1233
        %v1402 = vpack.c.b16 %v1240, %v1234
        %v1403 = vpack.c.b16 %v1247, %v1241
        %v1404 = vpack.c.b16 %v1248, %v1242
        %v1405 = vpack.c.b16 %v1249, %v1243
        %v1406 = vpack.c.b16 %v1250, %v1244
        %v1407 = vpack.c.b16 %v1251, %v1245
        %v1408 = vpack.c.b16 %v1252, %v1246
        %v1409 = vpack.c.b16 %v1259, %v1253
        %v1410 = vpack.c.b16 %v1260, %v1254
        %v1411 = vpack.c.b16 %v1261, %v1255
        %v1412 = vpack.c.b16 %v1262, %v1256
        %v1413 = vpack.c.b16 %v1263, %v1257
        %v1414 = vpack.c.b16 %v1264, %v1258
        %v1415 = vpack.c.b16 %v1271, %v1265
        %v1416 = vpack.c.b16 %v1272, %v1266
        %v1417 = vpack.c.b16 %v1273, %v1267
        %v1418 = vpack.c.b16 %v1274, %v1268
        %v1419 = vpack.c.b16 %v1275, %v1269
        %v1420 = vpack.c.b16 %v1276, %v1270
        %v1421 = vpack.c.b16 %v1283, %v1277
        %v1422 = vpack.c.b16 %v1284, %v1278
        %v1423 = vpack.c.b16 %v1285, %v1279
        %v1424 = vpack.c.b16 %v1286, %v1280
        %v1425 = vpack.c.b16 %v1287, %v1281
        %v1426 = vpack.c.b16 %v1288, %v1282
        %v1427 = vpack.c.b16 %v1295, %v1289
        %v1428 = vpack.c.b16 %v1296, %v1290
        %v1429 = vpack.c.b16 %v1297, %v1291
        %v1430 = vpack.c.b16 %v1298, %v1292
        %v1431 = vpack.c.b16 %v1299, %v1293
        %v1432 = vpack.c.b16 %v1300, %v1294
        %v1433 = vpack.c.b16 %v1307, %v1301
        %v1434 = vpack.c.b16 %v1308, %v1302
        %v1435 = vpack.c.b16 %v1309, %v1303
        %v1436 = vpack.c.b16 %v1310, %v1304
        %v1437 = vpack.c.b16 %v1311, %v1305
        %v1438 = vpack.c.b16 %v1312, %v1306
        %v1439 = vpack.c.b16 %v1319, %v1313
        %v1440 = vpack.c.b16 %v1320, %v1314
        %v1441 = vpack.c.b16 %v1321, %v1315
        %v1442 = vpack.c.b16 %v1322, %v1316
        %v1443 = vpack.c.b16 %v1323, %v1317
        %v1444 = vpack.c.b16 %v1324, %v1318
        %v1445 = vpack.c.b16 %v1331, %v1325
        %v1446 = vpack.c.b16 %v1332, %v1326
        %v1447 = vpack.c.b16 %v1333, %v1327
        %v1448 = vpack.c.b16 %v1334, %v1328
        %v1449 = vpack.c.b16 %v1335, %v1329
        %v1450 = vpack.c.b16 %v1336, %v1330
        %v1451 = vpack.c.b16 %v1343, %v1337
        %v1452 = vpack.c.b16 %v1344, %v1338
        %v1453 = vpack.c.b16 %v1345, %v1339
        %v1454 = vpack.c.b16 %v1346, %v1340
        %v1455 = vpack.c.b16 %v1347, %v1341
        %v1456 = vpack.c.b16 %v1348, %v1342
        %v1457 = vpack.c.b16 %v1355, %v1349
        %v1458 = vpack.c.b16 %v1356, %v1350
        %v1459 = vpack.c.b16 %v1357, %v1351
        %v1460 = vpack.c.b16 %v1358, %v1352
        %v1461 = vpack.c.b16 %v1359, %v1353
        %v1462 = vpack.c.b16 %v1360, %v1354
        %v1463 = vpack.c.b16 %v1367, %v1361
        %v1464 = vpack.c.b16 %v1368, %v1362
        %v1465 = vpack.c.b16 %v1369, %v1363
        %v1466 = vpack.c.b16 %v1370, %v1364
        %v1467 = vpack.c.b16 %v1371, %v1365
        %v1468 = vpack.c.b16 %v1372, %v1366
        %1565 = vmatprep.subr.bf16.mxu0 %v1416
        %1566 = vmatpush1.bf16.msra.mxu0 %v1415
        %1567 = vmatprep.subr.bf16.mxu0 %v1410
        %1568 = vmatpush1.bf16.msra.mxu0 %v1409
        %1569 = vmatprep.subr.bf16.mxu0 %v1404
        %1570 = vmatpush1.bf16.msra.mxu0 %v1403
        %1571 = vmatprep.subr.bf16.mxu0 %v1398
        %1572 = vmatpush1.bf16.msra.mxu0 %v1397
        %1573 = vmatprep.subr.bf16.mxu0 %v1392
        %1574 = vmatpush1.bf16.msra.mxu0 %v1391
        %1575 = vmatprep.subr.bf16.mxu0 %v1386
        %1576 = vmatpush1.bf16.msra.mxu0 %v1385
        %1577 = vmatprep.subr.bf16.mxu0 %v1380
        %1578 = vmatpush1.bf16.msra.mxu0 %v1379
        %1579 = vmatprep.subr.bf16.mxu0 %v1374
        %1580 = vmatpush1.bf16.msra.mxu0 %v1373
        %1581 = vmatprep.subr.bf16.mxu0 %v1464
        %1582 = vmatpush2.bf16.msra.mxu0 %v1463
        %1583 = vmatprep.subr.bf16.mxu0 %v1458
        %1584 = vmatpush2.bf16.msra.mxu0 %v1457
        %1585 = vmatprep.subr.bf16.mxu0 %v1452
        %1586 = vmatpush2.bf16.msra.mxu0 %v1451
        %1587 = vmatprep.subr.bf16.mxu0 %v1446
        %1588 = vmatpush2.bf16.msra.mxu0 %v1445
        %1589 = vmatprep.subr.bf16.mxu0 %v1440
        %1590 = vmatpush2.bf16.msra.mxu0 %v1439
        %1591 = vmatprep.subr.bf16.mxu0 %v1434
        %1592 = vmatpush2.bf16.msra.mxu0 %v1433
        %1593 = vmatprep.subr.bf16.mxu0 %v1428
        %1594 = vmatpush2.bf16.msra.mxu0 %v1427
        %1595 = vmatprep.subr.bf16.mxu0 %v1422
        %1596 = vmatpush2.bf16.msra.mxu0 %v1421
        %1597 = vmatprep.mubr.bf16.mxu0 %v942
        %1598 = vmatmul.mubr.bf16.gmra.mxu0 %v941
        %v1599 = vpop.f32.mrf.mxu0
        %v1600 = vadd.f32 %v1058, %v1599
        %v1601 = vpop.f32.mrf.mxu0
        %v1602 = vadd.f32 %v1062, %v1601
        %v1603 = vpop.f32.mrf.mxu0
        %v1604 = vadd.f32 %v1058, %v1603
        %v1605 = vpop.f32.mrf.mxu0
        %v1606 = vadd.f32 %v1062, %v1605
        %1607 = vmatprep.mubr.bf16.mxu0 %v944
        %1608 = vmatmul.mubr.bf16.gmra.mxu0 %v943
        %v1609 = vpop.f32.mrf.mxu0
        %v1610 = vadd.f32 %v1058, %v1609
        %v1611 = vpop.f32.mrf.mxu0
        %v1612 = vadd.f32 %v1062, %v1611
        %v1613 = vpop.f32.mrf.mxu0
        %v1614 = vadd.f32 %v1058, %v1613
        %v1615 = vpop.f32.mrf.mxu0
        %v1616 = vadd.f32 %v1062, %v1615
        %1617 = vmatprep.mubr.bf16.mxu0 %v946
        %1618 = vmatmul.mubr.bf16.gmra.mxu0 %v945
        %v1619 = vpop.f32.mrf.mxu0
        %v1620 = vadd.f32 %v1058, %v1619
        %v1621 = vpop.f32.mrf.mxu0
        %v1622 = vadd.f32 %v1062, %v1621
        %v1623 = vpop.f32.mrf.mxu0
        %v1624 = vadd.f32 %v1058, %v1623
        %v1625 = vpop.f32.mrf.mxu0
        %v1626 = vadd.f32 %v1062, %v1625
        %1627 = vmatprep.mubr.bf16.mxu0 %v948
        %1628 = vmatmul.mubr.bf16.gmra.mxu0 %v947
        %v1629 = vpop.f32.mrf.mxu0
        %v1630 = vadd.f32 %v1058, %v1629
        %v1631 = vpop.f32.mrf.mxu0
        %v1632 = vadd.f32 %v1062, %v1631
        %v1633 = vpop.f32.mrf.mxu0
        %v1634 = vadd.f32 %v1058, %v1633
        %v1635 = vpop.f32.mrf.mxu0
        %v1636 = vadd.f32 %v1062, %v1635
        %1637 = vmatprep.mubr.bf16.mxu0 %v950
        %1638 = vmatmul.mubr.bf16.gmra.mxu0 %v949
        %v1639 = vpop.f32.mrf.mxu0
        %v1640 = vadd.f32 %v1058, %v1639
        %v1641 = vpop.f32.mrf.mxu0
        %v1642 = vadd.f32 %v1062, %v1641
        %v1643 = vpop.f32.mrf.mxu0
        %v1644 = vadd.f32 %v1058, %v1643
        %v1645 = vpop.f32.mrf.mxu0
        %v1646 = vadd.f32 %v1062, %v1645
        %1647 = vmatprep.mubr.bf16.mxu0 %v952
        %1648 = vmatmul.mubr.bf16.gmra.mxu0 %v951
        %v1649 = vpop.f32.mrf.mxu0
        %v1650 = vadd.f32 %v1058, %v1649
        %v1651 = vpop.f32.mrf.mxu0
        %v1652 = vadd.f32 %v1062, %v1651
        %v1653 = vpop.f32.mrf.mxu0
        %v1654 = vadd.f32 %v1058, %v1653
        %v1655 = vpop.f32.mrf.mxu0
        %v1656 = vadd.f32 %v1062, %v1655
        %1657 = vmatprep.mubr.bf16.mxu0 %v954
        %1658 = vmatmul.mubr.bf16.gmra.mxu0 %v953
        %v1659 = vpop.f32.mrf.mxu0
        %v1660 = vadd.f32 %v1058, %v1659
        %v1661 = vpop.f32.mrf.mxu0
        %v1662 = vadd.f32 %v1062, %v1661
        %v1663 = vpop.f32.mrf.mxu0
        %v1664 = vadd.f32 %v1058, %v1663
        %v1665 = vpop.f32.mrf.mxu0
        %v1666 = vadd.f32 %v1062, %v1665
        %1667 = vmatprep.mubr.bf16.mxu0 %v956
        %1668 = vmatmul.mubr.bf16.gmra.mxu0 %v955
        %v1669 = vpop.f32.mrf.mxu0
        %v1670 = vadd.f32 %v1058, %v1669
        %v1671 = vpop.f32.mrf.mxu0
        %v1672 = vadd.f32 %v1062, %v1671
        %v1673 = vpop.f32.mrf.mxu0
        %v1674 = vadd.f32 %v1058, %v1673
        %v1675 = vpop.f32.mrf.mxu0
        %v1676 = vadd.f32 %v1062, %v1675
        %1677 = vdwg.mxu0
        %1678 = vmatprep.subr.bf16.mxu0 %v1418
        %1679 = vmatpush1.bf16.msra.mxu0 %v1417
        %1680 = vmatprep.subr.bf16.mxu0 %v1412
        %1681 = vmatpush1.bf16.msra.mxu0 %v1411
        %1682 = vmatprep.subr.bf16.mxu0 %v1406
        %1683 = vmatpush1.bf16.msra.mxu0 %v1405
        %1684 = vmatprep.subr.bf16.mxu0 %v1400
        %1685 = vmatpush1.bf16.msra.mxu0 %v1399
        %1686 = vmatprep.subr.bf16.mxu0 %v1394
        %1687 = vmatpush1.bf16.msra.mxu0 %v1393
        %1688 = vmatprep.subr.bf16.mxu0 %v1388
        %1689 = vmatpush1.bf16.msra.mxu0 %v1387
        %1690 = vmatprep.subr.bf16.mxu0 %v1382
        %1691 = vmatpush1.bf16.msra.mxu0 %v1381
        %1692 = vmatprep.subr.bf16.mxu0 %v1376
        %1693 = vmatpush1.bf16.msra.mxu0 %v1375
        %1694 = vmatprep.subr.bf16.mxu0 %v1466
        %1695 = vmatpush2.bf16.msra.mxu0 %v1465
        %1696 = vmatprep.subr.bf16.mxu0 %v1460
        %1697 = vmatpush2.bf16.msra.mxu0 %v1459
        %1698 = vmatprep.subr.bf16.mxu0 %v1454
        %1699 = vmatpush2.bf16.msra.mxu0 %v1453
        %1700 = vmatprep.subr.bf16.mxu0 %v1448
        %1701 = vmatpush2.bf16.msra.mxu0 %v1447
        %1702 = vmatprep.subr.bf16.mxu0 %v1442
        %1703 = vmatpush2.bf16.msra.mxu0 %v1441
        %1704 = vmatprep.subr.bf16.mxu0 %v1436
        %1705 = vmatpush2.bf16.msra.mxu0 %v1435
        %1706 = vmatprep.subr.bf16.mxu0 %v1430
        %1707 = vmatpush2.bf16.msra.mxu0 %v1429
        %1708 = vmatprep.subr.bf16.mxu0 %v1424
        %1709 = vmatpush2.bf16.msra.mxu0 %v1423
        %1710 = vmatprep.mubr.bf16.mxu0 %v942
        %1711 = vmatmul.mubr.bf16.gmra.mxu0 %v941
        %v1712 = vpop.f32.mrf.mxu0
        %v1713 = vadd.f32 %v1066, %v1712
        %v1714 = vpop.f32.mrf.mxu0
        %v1715 = vadd.f32 %v1070, %v1714
        %v1716 = vpop.f32.mrf.mxu0
        %v1717 = vadd.f32 %v1066, %v1716
        %v1718 = vpop.f32.mrf.mxu0
        %v1719 = vadd.f32 %v1070, %v1718
        %1720 = vmatprep.mubr.bf16.mxu0 %v944
        %1721 = vmatmul.mubr.bf16.gmra.mxu0 %v943
        %v1722 = vpop.f32.mrf.mxu0
        %v1723 = vadd.f32 %v1066, %v1722
        %v1724 = vpop.f32.mrf.mxu0
        %v1725 = vadd.f32 %v1070, %v1724
        %v1726 = vpop.f32.mrf.mxu0
        %v1727 = vadd.f32 %v1066, %v1726
        %v1728 = vpop.f32.mrf.mxu0
        %v1729 = vadd.f32 %v1070, %v1728
        %1730 = vmatprep.mubr.bf16.mxu0 %v946
        %1731 = vmatmul.mubr.bf16.gmra.mxu0 %v945
        %v1732 = vpop.f32.mrf.mxu0
        %v1733 = vadd.f32 %v1066, %v1732
        %v1734 = vpop.f32.mrf.mxu0
        %v1735 = vadd.f32 %v1070, %v1734
        %v1736 = vpop.f32.mrf.mxu0
        %v1737 = vadd.f32 %v1066, %v1736
        %v1738 = vpop.f32.mrf.mxu0
        %v1739 = vadd.f32 %v1070, %v1738
        %1740 = vmatprep.mubr.bf16.mxu0 %v948
        %1741 = vmatmul.mubr.bf16.gmra.mxu0 %v947
        %v1742 = vpop.f32.mrf.mxu0
        %v1743 = vadd.f32 %v1066, %v1742
        %v1744 = vpop.f32.mrf.mxu0
        %v1745 = vadd.f32 %v1070, %v1744
        %v1746 = vpop.f32.mrf.mxu0
        %v1747 = vadd.f32 %v1066, %v1746
        %v1748 = vpop.f32.mrf.mxu0
        %v1749 = vadd.f32 %v1070, %v1748
        %1750 = vmatprep.mubr.bf16.mxu0 %v950
        %1751 = vmatmul.mubr.bf16.gmra.mxu0 %v949
        %v1752 = vpop.f32.mrf.mxu0
        %v1753 = vadd.f32 %v1066, %v1752
        %v1754 = vpop.f32.mrf.mxu0
        %v1755 = vadd.f32 %v1070, %v1754
        %v1756 = vpop.f32.mrf.mxu0
        %v1757 = vadd.f32 %v1066, %v1756
        %v1758 = vpop.f32.mrf.mxu0
        %v1759 = vadd.f32 %v1070, %v1758
        %1760 = vmatprep.mubr.bf16.mxu0 %v952
        %1761 = vmatmul.mubr.bf16.gmra.mxu0 %v951
        %v1762 = vpop.f32.mrf.mxu0
        %v1763 = vadd.f32 %v1066, %v1762
        %v1764 = vpop.f32.mrf.mxu0
        %v1765 = vadd.f32 %v1070, %v1764
        %v1766 = vpop.f32.mrf.mxu0
        %v1767 = vadd.f32 %v1066, %v1766
        %v1768 = vpop.f32.mrf.mxu0
        %v1769 = vadd.f32 %v1070, %v1768
        %1770 = vmatprep.mubr.bf16.mxu0 %v954
        %1771 = vmatmul.mubr.bf16.gmra.mxu0 %v953
        %v1772 = vpop.f32.mrf.mxu0
        %v1773 = vadd.f32 %v1066, %v1772
        %v1774 = vpop.f32.mrf.mxu0
        %v1775 = vadd.f32 %v1070, %v1774
        %v1776 = vpop.f32.mrf.mxu0
        %v1777 = vadd.f32 %v1066, %v1776
        %v1778 = vpop.f32.mrf.mxu0
        %v1779 = vadd.f32 %v1070, %v1778
        %1780 = vmatprep.mubr.bf16.mxu0 %v956
        %1781 = vmatmul.mubr.bf16.gmra.mxu0 %v955
        %v1782 = vpop.f32.mrf.mxu0
        %v1783 = vadd.f32 %v1066, %v1782
        %v1784 = vpop.f32.mrf.mxu0
        %v1785 = vadd.f32 %v1070, %v1784
        %v1786 = vpop.f32.mrf.mxu0
        %v1787 = vadd.f32 %v1066, %v1786
        %v1788 = vpop.f32.mrf.mxu0
        %v1789 = vadd.f32 %v1070, %v1788
        %1790 = vdwg.mxu0
        %1791 = vmatprep.subr.bf16.mxu0 %v1420
        %1792 = vmatpush1.bf16.msra.mxu0 %v1419
        %1793 = vmatprep.subr.bf16.mxu0 %v1414
        %1794 = vmatpush1.bf16.msra.mxu0 %v1413
        %1795 = vmatprep.subr.bf16.mxu0 %v1408
        %1796 = vmatpush1.bf16.msra.mxu0 %v1407
        %1797 = vmatprep.subr.bf16.mxu0 %v1402
        %1798 = vmatpush1.bf16.msra.mxu0 %v1401
        %1799 = vmatprep.subr.bf16.mxu0 %v1396
        %1800 = vmatpush1.bf16.msra.mxu0 %v1395
        %1801 = vmatprep.subr.bf16.mxu0 %v1390
        %1802 = vmatpush1.bf16.msra.mxu0 %v1389
        %1803 = vmatprep.subr.bf16.mxu0 %v1384
        %1804 = vmatpush1.bf16.msra.mxu0 %v1383
        %1805 = vmatprep.subr.bf16.mxu0 %v1378
        %1806 = vmatpush1.bf16.msra.mxu0 %v1377
        %1807 = vmatprep.subr.bf16.mxu0 %v1468
        %1808 = vmatpush2.bf16.msra.mxu0 %v1467
        %1809 = vmatprep.subr.bf16.mxu0 %v1462
        %1810 = vmatpush2.bf16.msra.mxu0 %v1461
        %1811 = vmatprep.subr.bf16.mxu0 %v1456
        %1812 = vmatpush2.bf16.msra.mxu0 %v1455
        %1813 = vmatprep.subr.bf16.mxu0 %v1450
        %1814 = vmatpush2.bf16.msra.mxu0 %v1449
        %1815 = vmatprep.subr.bf16.mxu0 %v1444
        %1816 = vmatpush2.bf16.msra.mxu0 %v1443
        %1817 = vmatprep.subr.bf16.mxu0 %v1438
        %1818 = vmatpush2.bf16.msra.mxu0 %v1437
        %1819 = vmatprep.subr.bf16.mxu0 %v1432
        %1820 = vmatpush2.bf16.msra.mxu0 %v1431
        %1821 = vmatprep.subr.bf16.mxu0 %v1426
        %1822 = vmatpush2.bf16.msra.mxu0 %v1425
        %1823 = vmatprep.mubr.bf16.mxu0 %v942
        %1824 = vmatmul.mubr.bf16.gmra.mxu0 %v941
        %v1825 = vpop.f32.mrf.mxu0
        %v1826 = vadd.f32 %v1074, %v1825
        %v1827 = vpop.f32.mrf.mxu0
        %v1828 = vadd.f32 %v1078, %v1827
        %v1829 = vpop.f32.mrf.mxu0
        %v1830 = vadd.f32 %v1074, %v1829
        %v1831 = vpop.f32.mrf.mxu0
        %v1832 = vadd.f32 %v1078, %v1831
        %1833 = vmatprep.mubr.bf16.mxu0 %v944
        %1834 = vmatmul.mubr.bf16.gmra.mxu0 %v943
        %v1835 = vpop.f32.mrf.mxu0
        %v1836 = vadd.f32 %v1074, %v1835
        %v1837 = vpop.f32.mrf.mxu0
        %v1838 = vadd.f32 %v1078, %v1837
        %v1839 = vpop.f32.mrf.mxu0
        %v1840 = vadd.f32 %v1074, %v1839
        %v1841 = vpop.f32.mrf.mxu0
        %v1842 = vadd.f32 %v1078, %v1841
        %1843 = vmatprep.mubr.bf16.mxu0 %v946
        %1844 = vmatmul.mubr.bf16.gmra.mxu0 %v945
        %v1845 = vpop.f32.mrf.mxu0
        %v1846 = vadd.f32 %v1074, %v1845
        %v1847 = vpop.f32.mrf.mxu0
        %v1848 = vadd.f32 %v1078, %v1847
        %v1849 = vpop.f32.mrf.mxu0
        %v1850 = vadd.f32 %v1074, %v1849
        %v1851 = vpop.f32.mrf.mxu0
        %v1852 = vadd.f32 %v1078, %v1851
        %1853 = vmatprep.mubr.bf16.mxu0 %v948
        %1854 = vmatmul.mubr.bf16.gmra.mxu0 %v947
        %v1855 = vpop.f32.mrf.mxu0
        %v1856 = vadd.f32 %v1074, %v1855
        %v1857 = vpop.f32.mrf.mxu0
        %v1858 = vadd.f32 %v1078, %v1857
        %v1859 = vpop.f32.mrf.mxu0
        %v1860 = vadd.f32 %v1074, %v1859
        %v1861 = vpop.f32.mrf.mxu0
        %v1862 = vadd.f32 %v1078, %v1861
        %1863 = vmatprep.mubr.bf16.mxu0 %v950
        %1864 = vmatmul.mubr.bf16.gmra.mxu0 %v949
        %v1865 = vpop.f32.mrf.mxu0
        %v1866 = vadd.f32 %v1074, %v1865
        %v1867 = vpop.f32.mrf.mxu0
        %v1868 = vadd.f32 %v1078, %v1867
        %v1869 = vpop.f32.mrf.mxu0
        %v1870 = vadd.f32 %v1074, %v1869
        %v1871 = vpop.f32.mrf.mxu0
        %v1872 = vadd.f32 %v1078, %v1871
        %1873 = vmatprep.mubr.bf16.mxu0 %v952
        %1874 = vmatmul.mubr.bf16.gmra.mxu0 %v951
        %v1875 = vpop.f32.mrf.mxu0
        %v1876 = vadd.f32 %v1074, %v1875
        %v1877 = vpop.f32.mrf.mxu0
        %v1878 = vadd.f32 %v1078, %v1877
        %v1879 = vpop.f32.mrf.mxu0
        %v1880 = vadd.f32 %v1074, %v1879
        %v1881 = vpop.f32.mrf.mxu0
        %v1882 = vadd.f32 %v1078, %v1881
        %1883 = vmatprep.mubr.bf16.mxu0 %v954
        %1884 = vmatmul.mubr.bf16.gmra.mxu0 %v953
        %v1885 = vpop.f32.mrf.mxu0
        %v1886 = vadd.f32 %v1074, %v1885
        %v1887 = vpop.f32.mrf.mxu0
        %v1888 = vadd.f32 %v1078, %v1887
        %v1889 = vpop.f32.mrf.mxu0
        %v1890 = vadd.f32 %v1074, %v1889
        %v1891 = vpop.f32.mrf.mxu0
        %v1892 = vadd.f32 %v1078, %v1891
        %1893 = vmatprep.mubr.bf16.mxu0 %v956
        %1894 = vmatmul.mubr.bf16.gmra.mxu0 %v955
        %v1895 = vpop.f32.mrf.mxu0
        %v1896 = vadd.f32 %v1074, %v1895
        %v1897 = vpop.f32.mrf.mxu0
        %v1898 = vadd.f32 %v1078, %v1897
        %v1899 = vpop.f32.mrf.mxu0
        %v1900 = vadd.f32 %v1074, %v1899
        %v1901 = vpop.f32.mrf.mxu0
        %v1902 = vadd.f32 %v1078, %v1901
        %1903 = vdwg.mxu0
        %v1904 = vld [vmem:[#allocation8] sm:$0xff]
        %v1905 = vld [vmem:[#allocation8 + $0x8] sm:$0xff]
        %v1906 = vld [vmem:[#allocation8 + $0x10] sm:$0xff]
        %v1907 = vld [vmem:[#allocation8 + $0x18] sm:$0xff]
        %v1908 = vld [vmem:[#allocation8 + $0x20] sm:$0xff]
        %v1909 = vld [vmem:[#allocation8 + $0x28] sm:$0xff]
        %v1910 = vld [vmem:[#allocation8 + $0x30] sm:$0xff]
        %v1911 = vld [vmem:[#allocation8 + $0x38] sm:$0xff]
        %v1912 = vld [vmem:[#allocation8 + $0x40] sm:$0xff]
        %v1913 = vld [vmem:[#allocation8 + $0x48] sm:$0xff]
        %v1914 = vld [vmem:[#allocation8 + $0x50] sm:$0xff]
        %v1915 = vld [vmem:[#allocation8 + $0x58] sm:$0xff]
        %v1916 = vld [vmem:[#allocation8 + $0x60] sm:$0xff]
        %v1917 = vld [vmem:[#allocation8 + $0x68] sm:$0xff]
        %v1918 = vld [vmem:[#allocation8 + $0x70] sm:$0xff]
        %v1919 = vld [vmem:[#allocation8 + $0x78] sm:$0xff]
        %v1920 = vld [vmem:[#allocation10] sm:$0xff]
        %v1921 = vld [vmem:[#allocation10 + $0x8] sm:$0xff]
        %v1922 = vld [vmem:[#allocation10 + $0x10] sm:$0xff]
        %v1923 = vld [vmem:[#allocation10 + $0x18] sm:$0xff]
        %v1924 = vld [vmem:[#allocation10 + $0x20] sm:$0xff]
        %v1925 = vld [vmem:[#allocation10 + $0x28] sm:$0xff]
        %v1926 = vld [vmem:[#allocation10 + $0x30] sm:$0xff]
        %v1927 = vld [vmem:[#allocation10 + $0x38] sm:$0xff]
        %v1928 = vld [vmem:[#allocation10 + $0x40] sm:$0xff]
        %v1929 = vld [vmem:[#allocation10 + $0x48] sm:$0xff]
        %v1930 = vld [vmem:[#allocation10 + $0x50] sm:$0xff]
        %v1931 = vld [vmem:[#allocation10 + $0x58] sm:$0xff]
        %v1932 = vld [vmem:[#allocation10 + $0x60] sm:$0xff]
        %v1933 = vld [vmem:[#allocation10 + $0x68] sm:$0xff]
        %v1934 = vld [vmem:[#allocation10 + $0x70] sm:$0xff]
        %v1935 = vld [vmem:[#allocation10 + $0x78] sm:$0xff]
        %v1936 = vlaneseq
        %v1937 = vand.u32 %v1936, 127
        %v1938 = vadd.s32 %v1937, 128
        %vm1939 = vcmp.lt.s32.totalorder %v1937, 0
        %v1940 = vsub.s32 0, %v1937
        %v1941 = vsel %vm1939, %v1940, %v1937
        %v1942 = vshrl.u32 %v1941, 7
        %v1943 = vand.u32 %v1941, 127
        %v1944 = vsub.s32 0, %v1943
        %v1945 = vsel %vm1939, %v1944, %v1943
        %vm1946 = vcmp.lt.s32.totalorder %v1938, 0
        %v1947 = vsub.s32 0, %v1938
        %v1948 = vsel %vm1946, %v1947, %v1938
        %v1949 = vshrl.u32 %v1948, 7
        %v1950 = vand.u32 %v1948, 127
        %v1951 = vsub.s32 0, %v1950
        %v1952 = vsel %vm1946, %v1951, %v1950
        %vm1953 = vcmp.ne.s32.totalorder %v1945, 0
        %vm1954 = vcmp.ne.s32.totalorder %v1952, 0
        %vm1955 = vcmp.lt.s32.totalorder %v1945, 0
        %vm1956 = vcmp.lt.s32.totalorder %v1952, 0
        %vm1957 = vmand %vm1955, %vm1953
        %vm1958 = vmand %vm1956, %vm1954
        %v1959 = vadd.s32 %v1945, 128
        %v1960 = vadd.s32 %v1952, 128
        %v1961 = vsel %vm1957, %v1959, %v1945
        %v1962 = vsel %vm1958, %v1960, %v1952
        %vm1963 = vcmp.lt.s32.totalorder %v1961, 64
        %vm1964 = vcmp.lt.s32.totalorder %v1962, 64
        %1965 = vrot.lane.b32.xlu0 %v1600, 64
        %v1966 = vpop.permute.xlu0 %1965
        %1967 = vrot.lane.b32.xlu0 %v1604, 64
        %v1968 = vpop.permute.xlu0 %1967
        %1969 = vrot.lane.b32.xlu0 %v1610, 64
        %v1970 = vpop.permute.xlu0 %1969
        %1971 = vrot.lane.b32.xlu0 %v1614, 64
        %v1972 = vpop.permute.xlu0 %1971
        %1973 = vrot.lane.b32.xlu0 %v1620, 64
        %v1974 = vpop.permute.xlu0 %1973
        %1975 = vrot.lane.b32.xlu0 %v1624, 64
        %v1976 = vpop.permute.xlu0 %1975
        %1977 = vrot.lane.b32.xlu0 %v1630, 64
        %v1978 = vpop.permute.xlu0 %1977
        %1979 = vrot.lane.b32.xlu0 %v1634, 64
        %v1980 = vpop.permute.xlu0 %1979
        %1981 = vrot.lane.b32.xlu0 %v1640, 64
        %v1982 = vpop.permute.xlu0 %1981
        %1983 = vrot.lane.b32.xlu0 %v1644, 64
        %v1984 = vpop.permute.xlu0 %1983
        %1985 = vrot.lane.b32.xlu0 %v1650, 64
        %v1986 = vpop.permute.xlu0 %1985
        %1987 = vrot.lane.b32.xlu0 %v1654, 64
        %v1988 = vpop.permute.xlu0 %1987
        %1989 = vrot.lane.b32.xlu0 %v1660, 64
        %v1990 = vpop.permute.xlu0 %1989
        %1991 = vrot.lane.b32.xlu0 %v1664, 64
        %v1992 = vpop.permute.xlu0 %1991
        %1993 = vrot.lane.b32.xlu0 %v1670, 64
        %v1994 = vpop.permute.xlu0 %1993
        %1995 = vrot.lane.b32.xlu0 %v1674, 64
        %v1996 = vpop.permute.xlu0 %1995
        %1997 = vrot.lane.b32.xlu0 %v1602, 64
        %v1998 = vpop.permute.xlu0 %1997
        %1999 = vrot.lane.b32.xlu0 %v1606, 64
        %v2000 = vpop.permute.xlu0 %1999
        %2001 = vrot.lane.b32.xlu0 %v1612, 64
        %v2002 = vpop.permute.xlu0 %2001
        %2003 = vrot.lane.b32.xlu0 %v1616, 64
        %v2004 = vpop.permute.xlu0 %2003
        %2005 = vrot.lane.b32.xlu0 %v1622, 64
        %v2006 = vpop.permute.xlu0 %2005
        %2007 = vrot.lane.b32.xlu0 %v1626, 64
        %v2008 = vpop.permute.xlu0 %2007
        %2009 = vrot.lane.b32.xlu0 %v1632, 64
        %v2010 = vpop.permute.xlu0 %2009
        %2011 = vrot.lane.b32.xlu0 %v1636, 64
        %v2012 = vpop.permute.xlu0 %2011
        %2013 = vrot.lane.b32.xlu0 %v1642, 64
        %v2014 = vpop.permute.xlu0 %2013
        %2015 = vrot.lane.b32.xlu0 %v1646, 64
        %v2016 = vpop.permute.xlu0 %2015
        %2017 = vrot.lane.b32.xlu0 %v1652, 64
        %v2018 = vpop.permute.xlu0 %2017
        %2019 = vrot.lane.b32.xlu0 %v1656, 64
        %v2020 = vpop.permute.xlu0 %2019
        %2021 = vrot.lane.b32.xlu0 %v1662, 64
        %v2022 = vpop.permute.xlu0 %2021
        %2023 = vrot.lane.b32.xlu0 %v1666, 64
        %v2024 = vpop.permute.xlu0 %2023
        %2025 = vrot.lane.b32.xlu0 %v1672, 64
        %v2026 = vpop.permute.xlu0 %2025
        %2027 = vrot.lane.b32.xlu0 %v1676, 64
        %v2028 = vpop.permute.xlu0 %2027
        %vm2029 = vcmp.lt.s32.totalorder %v1937, 64
        %v2030 = vsel %vm2029, %v1966, %v1998
        %v2031 = vsel %vm2029, %v1968, %v2000
        %v2032 = vsel %vm2029, %v1970, %v2002
        %v2033 = vsel %vm2029, %v1972, %v2004
        %v2034 = vsel %vm2029, %v1974, %v2006
        %v2035 = vsel %vm2029, %v1976, %v2008
        %v2036 = vsel %vm2029, %v1978, %v2010
        %v2037 = vsel %vm2029, %v1980, %v2012
        %v2038 = vsel %vm2029, %v1982, %v2014
        %v2039 = vsel %vm2029, %v1984, %v2016
        %v2040 = vsel %vm2029, %v1986, %v2018
        %v2041 = vsel %vm2029, %v1988, %v2020
        %v2042 = vsel %vm2029, %v1990, %v2022
        %v2043 = vsel %vm2029, %v1992, %v2024
        %v2044 = vsel %vm2029, %v1994, %v2026
        %v2045 = vsel %vm2029, %v1996, %v2028
        %v2046 = vsel %vm2029, %v1998, %v1966
        %v2047 = vsel %vm2029, %v2000, %v1968
        %v2048 = vsel %vm2029, %v2002, %v1970
        %v2049 = vsel %vm2029, %v2004, %v1972
        %v2050 = vsel %vm2029, %v2006, %v1974
        %v2051 = vsel %vm2029, %v2008, %v1976
        %v2052 = vsel %vm2029, %v2010, %v1978
        %v2053 = vsel %vm2029, %v2012, %v1980
        %v2054 = vsel %vm2029, %v2014, %v1982
        %v2055 = vsel %vm2029, %v2016, %v1984
        %v2056 = vsel %vm2029, %v2018, %v1986
        %v2057 = vsel %vm2029, %v2020, %v1988
        %v2058 = vsel %vm2029, %v2022, %v1990
        %v2059 = vsel %vm2029, %v2024, %v1992
        %v2060 = vsel %vm2029, %v2026, %v1994
        %v2061 = vsel %vm2029, %v2028, %v1996
        %v2062 = vmul.f32 %v1600, %v1904
        %v2063 = vmul.f32 %v1602, %v1904
        %v2064 = vmul.f32 %v1604, %v1905
        %v2065 = vmul.f32 %v1606, %v1905
        %v2066 = vmul.f32 %v1610, %v1906
        %v2067 = vmul.f32 %v1612, %v1906
        %v2068 = vmul.f32 %v1614, %v1907
        %v2069 = vmul.f32 %v1616, %v1907
        %v2070 = vmul.f32 %v1620, %v1908
        %v2071 = vmul.f32 %v1622, %v1908
        %v2072 = vmul.f32 %v1624, %v1909
        %v2073 = vmul.f32 %v1626, %v1909
        %v2074 = vmul.f32 %v1630, %v1910
        %v2075 = vmul.f32 %v1632, %v1910
        %v2076 = vmul.f32 %v1634, %v1911
        %v2077 = vmul.f32 %v1636, %v1911
        %v2078 = vmul.f32 %v1640, %v1912
        %v2079 = vmul.f32 %v1642, %v1912
        %v2080 = vmul.f32 %v1644, %v1913
        %v2081 = vmul.f32 %v1646, %v1913
        %v2082 = vmul.f32 %v1650, %v1914
        %v2083 = vmul.f32 %v1652, %v1914
        %v2084 = vmul.f32 %v1654, %v1915
        %v2085 = vmul.f32 %v1656, %v1915
        %v2086 = vmul.f32 %v1660, %v1916
        %v2087 = vmul.f32 %v1662, %v1916
        %v2088 = vmul.f32 %v1664, %v1917
        %v2089 = vmul.f32 %v1666, %v1917
        %v2090 = vmul.f32 %v1670, %v1918
        %v2091 = vmul.f32 %v1672, %v1918
        %v2092 = vmul.f32 %v1674, %v1919
        %v2093 = vmul.f32 %v1676, %v1919
        %v2094 = vsel %vm1963, %v2030, %v2046
        %v2095 = vsel %vm1964, %v2046, %v2030
        %v2096 = vsel %vm1963, %v2031, %v2047
        %v2097 = vsel %vm1964, %v2047, %v2031
        %v2098 = vsel %vm1963, %v2032, %v2048
        %v2099 = vsel %vm1964, %v2048, %v2032
        %v2100 = vsel %vm1963, %v2033, %v2049
        %v2101 = vsel %vm1964, %v2049, %v2033
        %v2102 = vsel %vm1963, %v2034, %v2050
        %v2103 = vsel %vm1964, %v2050, %v2034
        %v2104 = vsel %vm1963, %v2035, %v2051
        %v2105 = vsel %vm1964, %v2051, %v2035
        %v2106 = vsel %vm1963, %v2036, %v2052
        %v2107 = vsel %vm1964, %v2052, %v2036
        %v2108 = vsel %vm1963, %v2037, %v2053
        %v2109 = vsel %vm1964, %v2053, %v2037
        %v2110 = vsel %vm1963, %v2038, %v2054
        %v2111 = vsel %vm1964, %v2054, %v2038
        %v2112 = vsel %vm1963, %v2039, %v2055
        %v2113 = vsel %vm1964, %v2055, %v2039
        %v2114 = vsel %vm1963, %v2040, %v2056
        %v2115 = vsel %vm1964, %v2056, %v2040
        %v2116 = vsel %vm1963, %v2041, %v2057
        %v2117 = vsel %vm1964, %v2057, %v2041
        %v2118 = vsel %vm1963, %v2042, %v2058
        %v2119 = vsel %vm1964, %v2058, %v2042
        %v2120 = vsel %vm1963, %v2043, %v2059
        %v2121 = vsel %vm1964, %v2059, %v2043
        %v2122 = vsel %vm1963, %v2044, %v2060
        %v2123 = vsel %vm1964, %v2060, %v2044
        %v2124 = vsel %vm1963, %v2045, %v2061
        %v2125 = vsel %vm1964, %v2061, %v2045
        %v2126 = vmul.f32 %v2094, %v1920
        %v2127 = vmul.f32 %v2095, %v1920
        %v2128 = vmul.f32 %v2096, %v1921
        %v2129 = vmul.f32 %v2097, %v1921
        %v2130 = vmul.f32 %v2098, %v1922
        %v2131 = vmul.f32 %v2099, %v1922
        %v2132 = vmul.f32 %v2100, %v1923
        %v2133 = vmul.f32 %v2101, %v1923
        %v2134 = vmul.f32 %v2102, %v1924
        %v2135 = vmul.f32 %v2103, %v1924
        %v2136 = vmul.f32 %v2104, %v1925
        %v2137 = vmul.f32 %v2105, %v1925
        %v2138 = vmul.f32 %v2106, %v1926
        %v2139 = vmul.f32 %v2107, %v1926
        %v2140 = vmul.f32 %v2108, %v1927
        %v2141 = vmul.f32 %v2109, %v1927
        %v2142 = vmul.f32 %v2110, %v1928
        %v2143 = vmul.f32 %v2111, %v1928
        %v2144 = vmul.f32 %v2112, %v1929
        %v2145 = vmul.f32 %v2113, %v1929
        %v2146 = vmul.f32 %v2114, %v1930
        %v2147 = vmul.f32 %v2115, %v1930
        %v2148 = vmul.f32 %v2116, %v1931
        %v2149 = vmul.f32 %v2117, %v1931
        %v2150 = vmul.f32 %v2118, %v1932
        %v2151 = vmul.f32 %v2119, %v1932
        %v2152 = vmul.f32 %v2120, %v1933
        %v2153 = vmul.f32 %v2121, %v1933
        %v2154 = vmul.f32 %v2122, %v1934
        %v2155 = vmul.f32 %v2123, %v1934
        %v2156 = vmul.f32 %v2124, %v1935
        %v2157 = vmul.f32 %v2125, %v1935
        %v2158 = vadd.f32 %v2062, %v2126
        %v2159 = vadd.f32 %v2063, %v2127
        %v2160 = vadd.f32 %v2064, %v2128
        %v2161 = vadd.f32 %v2065, %v2129
        %v2162 = vadd.f32 %v2066, %v2130
        %v2163 = vadd.f32 %v2067, %v2131
        %v2164 = vadd.f32 %v2068, %v2132
        %v2165 = vadd.f32 %v2069, %v2133
        %v2166 = vadd.f32 %v2070, %v2134
        %v2167 = vadd.f32 %v2071, %v2135
        %v2168 = vadd.f32 %v2072, %v2136
        %v2169 = vadd.f32 %v2073, %v2137
        %v2170 = vadd.f32 %v2074, %v2138
        %v2171 = vadd.f32 %v2075, %v2139
        %v2172 = vadd.f32 %v2076, %v2140
        %v2173 = vadd.f32 %v2077, %v2141
        %v2174 = vadd.f32 %v2078, %v2142
        %v2175 = vadd.f32 %v2079, %v2143
        %v2176 = vadd.f32 %v2080, %v2144
        %v2177 = vadd.f32 %v2081, %v2145
        %v2178 = vadd.f32 %v2082, %v2146
        %v2179 = vadd.f32 %v2083, %v2147
        %v2180 = vadd.f32 %v2084, %v2148
        %v2181 = vadd.f32 %v2085, %v2149
        %v2182 = vadd.f32 %v2086, %v2150
        %v2183 = vadd.f32 %v2087, %v2151
        %v2184 = vadd.f32 %v2088, %v2152
        %v2185 = vadd.f32 %v2089, %v2153
        %v2186 = vadd.f32 %v2090, %v2154
        %v2187 = vadd.f32 %v2091, %v2155
        %v2188 = vadd.f32 %v2092, %v2156
        %v2189 = vadd.f32 %v2093, %v2157
        %v2190 = vpack.c.bf16 %v2160, %v2158
        %v2191 = vpack.c.bf16 %v2161, %v2159
        %v2192 = vpack.c.bf16 %v2164, %v2162
        %v2193 = vpack.c.bf16 %v2165, %v2163
        %v2194 = vpack.c.bf16 %v2168, %v2166
        %v2195 = vpack.c.bf16 %v2169, %v2167
        %v2196 = vpack.c.bf16 %v2172, %v2170
        %v2197 = vpack.c.bf16 %v2173, %v2171
        %v2198 = vpack.c.bf16 %v2176, %v2174
        %v2199 = vpack.c.bf16 %v2177, %v2175
        %v2200 = vpack.c.bf16 %v2180, %v2178
        %v2201 = vpack.c.bf16 %v2181, %v2179
        %v2202 = vpack.c.bf16 %v2184, %v2182
        %v2203 = vpack.c.bf16 %v2185, %v2183
        %v2204 = vpack.c.bf16 %v2188, %v2186
        %v2205 = vpack.c.bf16 %v2189, %v2187
        %v2222 = vunpack.c.l.b16 %v2190
        %v2223 = vunpack.c.l.b16 %v2191
        %v2224 = vunpack.c.h.b16 %v2190
        %v2225 = vunpack.c.h.b16 %v2191
        %v2226 = vunpack.c.l.b16 %v2192
        %v2227 = vunpack.c.l.b16 %v2193
        %v2228 = vunpack.c.h.b16 %v2192
        %v2229 = vunpack.c.h.b16 %v2193
        %v2230 = vunpack.c.l.b16 %v2194
        %v2231 = vunpack.c.l.b16 %v2195
        %v2232 = vunpack.c.h.b16 %v2194
        %v2233 = vunpack.c.h.b16 %v2195
        %v2234 = vunpack.c.l.b16 %v2196
        %v2235 = vunpack.c.l.b16 %v2197
        %v2236 = vunpack.c.h.b16 %v2196
        %v2237 = vunpack.c.h.b16 %v2197
        %v2238 = vunpack.c.l.b16 %v2198
        %v2239 = vunpack.c.l.b16 %v2199
        %v2240 = vunpack.c.h.b16 %v2198
        %v2241 = vunpack.c.h.b16 %v2199
        %v2242 = vunpack.c.l.b16 %v2200
        %v2243 = vunpack.c.l.b16 %v2201
        %v2244 = vunpack.c.h.b16 %v2200
        %v2245 = vunpack.c.h.b16 %v2201
        %v2246 = vunpack.c.l.b16 %v2202
        %v2247 = vunpack.c.l.b16 %v2203
        %v2248 = vunpack.c.h.b16 %v2202
        %v2249 = vunpack.c.h.b16 %v2203
        %v2250 = vunpack.c.l.b16 %v2204
        %v2251 = vunpack.c.l.b16 %v2205
        %v2252 = vunpack.c.h.b16 %v2204
        %v2253 = vunpack.c.h.b16 %v2205
        %v2254 = vpack.c.b16 %v2223, %v2222
        %v2255 = vpack.c.b16 %v2225, %v2224
        %v2256 = vpack.c.b16 %v2227, %v2226
        %v2257 = vpack.c.b16 %v2229, %v2228
        %v2258 = vpack.c.b16 %v2231, %v2230
        %v2259 = vpack.c.b16 %v2233, %v2232
        %v2260 = vpack.c.b16 %v2235, %v2234
        %v2261 = vpack.c.b16 %v2237, %v2236
        %v2262 = vpack.c.b16 %v2239, %v2238
        %v2263 = vpack.c.b16 %v2241, %v2240
        %v2264 = vpack.c.b16 %v2243, %v2242
        %v2265 = vpack.c.b16 %v2245, %v2244
        %v2266 = vpack.c.b16 %v2247, %v2246
        %v2267 = vpack.c.b16 %v2249, %v2248
        %v2268 = vpack.c.b16 %v2251, %v2250
        %v2269 = vpack.c.b16 %v2253, %v2252
        %2286 = vst [vmem:[%s510] sm:$0xff] %v2254
        %2287 = vst [vmem:[%s510 + $0x8] sm:$0xff] %v2255
        %2288 = vst [vmem:[%s510 + $0x10] sm:$0xff] %v2256
        %2289 = vst [vmem:[%s510 + $0x18] sm:$0xff] %v2257
        %2290 = vst [vmem:[%s510 + $0x20] sm:$0xff] %v2258
        %2291 = vst [vmem:[%s510 + $0x28] sm:$0xff] %v2259
        %2292 = vst [vmem:[%s510 + $0x30] sm:$0xff] %v2260
        %2293 = vst [vmem:[%s510 + $0x38] sm:$0xff] %v2261
        %2294 = vst [vmem:[%s510 + $0x40] sm:$0xff] %v2262
        %2295 = vst [vmem:[%s510 + $0x48] sm:$0xff] %v2263
        %2296 = vst [vmem:[%s510 + $0x50] sm:$0xff] %v2264
        %2297 = vst [vmem:[%s510 + $0x58] sm:$0xff] %v2265
        %2298 = vst [vmem:[%s510 + $0x60] sm:$0xff] %v2266
        %2299 = vst [vmem:[%s510 + $0x68] sm:$0xff] %v2267
        %2300 = vst [vmem:[%s510 + $0x70] sm:$0xff] %v2268
        %2301 = vst [vmem:[%s510 + $0x78] sm:$0xff] %v2269
        %2302 = vrot.lane.b32.xlu0 %v1713, 64
        %v2303 = vpop.permute.xlu0 %2302
        %2304 = vrot.lane.b32.xlu0 %v1717, 64
        %v2305 = vpop.permute.xlu0 %2304
        %2306 = vrot.lane.b32.xlu0 %v1723, 64
        %v2307 = vpop.permute.xlu0 %2306
        %2308 = vrot.lane.b32.xlu0 %v1727, 64
        %v2309 = vpop.permute.xlu0 %2308
        %2310 = vrot.lane.b32.xlu0 %v1733, 64
        %v2311 = vpop.permute.xlu0 %2310
        %2312 = vrot.lane.b32.xlu0 %v1737, 64
        %v2313 = vpop.permute.xlu0 %2312
        %2314 = vrot.lane.b32.xlu0 %v1743, 64
        %v2315 = vpop.permute.xlu0 %2314
        %2316 = vrot.lane.b32.xlu0 %v1747, 64
        %v2317 = vpop.permute.xlu0 %2316
        %2318 = vrot.lane.b32.xlu0 %v1753, 64
        %v2319 = vpop.permute.xlu0 %2318
        %2320 = vrot.lane.b32.xlu0 %v1757, 64
        %v2321 = vpop.permute.xlu0 %2320
        %2322 = vrot.lane.b32.xlu0 %v1763, 64
        %v2323 = vpop.permute.xlu0 %2322
        %2324 = vrot.lane.b32.xlu0 %v1767, 64
        %v2325 = vpop.permute.xlu0 %2324
        %2326 = vrot.lane.b32.xlu0 %v1773, 64
        %v2327 = vpop.permute.xlu0 %2326
        %2328 = vrot.lane.b32.xlu0 %v1777, 64
        %v2329 = vpop.permute.xlu0 %2328
        %2330 = vrot.lane.b32.xlu0 %v1783, 64
        %v2331 = vpop.permute.xlu0 %2330
        %2332 = vrot.lane.b32.xlu0 %v1787, 64
        %v2333 = vpop.permute.xlu0 %2332
        %2334 = vrot.lane.b32.xlu0 %v1715, 64
        %v2335 = vpop.permute.xlu0 %2334
        %2336 = vrot.lane.b32.xlu0 %v1719, 64
        %v2337 = vpop.permute.xlu0 %2336
        %2338 = vrot.lane.b32.xlu0 %v1725, 64
        %v2339 = vpop.permute.xlu0 %2338
        %2340 = vrot.lane.b32.xlu0 %v1729, 64
        %v2341 = vpop.permute.xlu0 %2340
        %2342 = vrot.lane.b32.xlu0 %v1735, 64
        %v2343 = vpop.permute.xlu0 %2342
        %2344 = vrot.lane.b32.xlu0 %v1739, 64
        %v2345 = vpop.permute.xlu0 %2344
        %2346 = vrot.lane.b32.xlu0 %v1745, 64
        %v2347 = vpop.permute.xlu0 %2346
        %2348 = vrot.lane.b32.xlu0 %v1749, 64
        %v2349 = vpop.permute.xlu0 %2348
        %2350 = vrot.lane.b32.xlu0 %v1755, 64
        %v2351 = vpop.permute.xlu0 %2350
        %2352 = vrot.lane.b32.xlu0 %v1759, 64
        %v2353 = vpop.permute.xlu0 %2352
        %2354 = vrot.lane.b32.xlu0 %v1765, 64
        %v2355 = vpop.permute.xlu0 %2354
        %2356 = vrot.lane.b32.xlu0 %v1769, 64
        %v2357 = vpop.permute.xlu0 %2356
        %2358 = vrot.lane.b32.xlu0 %v1775, 64
        %v2359 = vpop.permute.xlu0 %2358
        %2360 = vrot.lane.b32.xlu0 %v1779, 64
        %v2361 = vpop.permute.xlu0 %2360
        %2362 = vrot.lane.b32.xlu0 %v1785, 64
        %v2363 = vpop.permute.xlu0 %2362
        %2364 = vrot.lane.b32.xlu0 %v1789, 64
        %v2365 = vpop.permute.xlu0 %2364
        %v2366 = vsel %vm2029, %v2303, %v2335
        %v2367 = vsel %vm2029, %v2305, %v2337
        %v2368 = vsel %vm2029, %v2307, %v2339
        %v2369 = vsel %vm2029, %v2309, %v2341
        %v2370 = vsel %vm2029, %v2311, %v2343
        %v2371 = vsel %vm2029, %v2313, %v2345
        %v2372 = vsel %vm2029, %v2315, %v2347
        %v2373 = vsel %vm2029, %v2317, %v2349
        %v2374 = vsel %vm2029, %v2319, %v2351
        %v2375 = vsel %vm2029, %v2321, %v2353
        %v2376 = vsel %vm2029, %v2323, %v2355
        %v2377 = vsel %vm2029, %v2325, %v2357
        %v2378 = vsel %vm2029, %v2327, %v2359
        %v2379 = vsel %vm2029, %v2329, %v2361
        %v2380 = vsel %vm2029, %v2331, %v2363
        %v2381 = vsel %vm2029, %v2333, %v2365
        %v2382 = vsel %vm2029, %v2335, %v2303
        %v2383 = vsel %vm2029, %v2337, %v2305
        %v2384 = vsel %vm2029, %v2339, %v2307
        %v2385 = vsel %vm2029, %v2341, %v2309
        %v2386 = vsel %vm2029, %v2343, %v2311
        %v2387 = vsel %vm2029, %v2345, %v2313
        %v2388 = vsel %vm2029, %v2347, %v2315
        %v2389 = vsel %vm2029, %v2349, %v2317
        %v2390 = vsel %vm2029, %v2351, %v2319
        %v2391 = vsel %vm2029, %v2353, %v2321
        %v2392 = vsel %vm2029, %v2355, %v2323
        %v2393 = vsel %vm2029, %v2357, %v2325
        %v2394 = vsel %vm2029, %v2359, %v2327
        %v2395 = vsel %vm2029, %v2361, %v2329
        %v2396 = vsel %vm2029, %v2363, %v2331
        %v2397 = vsel %vm2029, %v2365, %v2333
        %v2398 = vmul.f32 %v1713, %v1904
        %v2399 = vmul.f32 %v1715, %v1904
        %v2400 = vmul.f32 %v1717, %v1905
        %v2401 = vmul.f32 %v1719, %v1905
        %v2402 = vmul.f32 %v1723, %v1906
        %v2403 = vmul.f32 %v1725, %v1906
        %v2404 = vmul.f32 %v1727, %v1907
        %v2405 = vmul.f32 %v1729, %v1907
        %v2406 = vmul.f32 %v1733, %v1908
        %v2407 = vmul.f32 %v1735, %v1908
        %v2408 = vmul.f32 %v1737, %v1909
        %v2409 = vmul.f32 %v1739, %v1909
        %v2410 = vmul.f32 %v1743, %v1910
        %v2411 = vmul.f32 %v1745, %v1910
        %v2412 = vmul.f32 %v1747, %v1911
        %v2413 = vmul.f32 %v1749, %v1911
        %v2414 = vmul.f32 %v1753, %v1912
        %v2415 = vmul.f32 %v1755, %v1912
        %v2416 = vmul.f32 %v1757, %v1913
        %v2417 = vmul.f32 %v1759, %v1913
        %v2418 = vmul.f32 %v1763, %v1914
        %v2419 = vmul.f32 %v1765, %v1914
        %v2420 = vmul.f32 %v1767, %v1915
        %v2421 = vmul.f32 %v1769, %v1915
        %v2422 = vmul.f32 %v1773, %v1916
        %v2423 = vmul.f32 %v1775, %v1916
        %v2424 = vmul.f32 %v1777, %v1917
        %v2425 = vmul.f32 %v1779, %v1917
        %v2426 = vmul.f32 %v1783, %v1918
        %v2427 = vmul.f32 %v1785, %v1918
        %v2428 = vmul.f32 %v1787, %v1919
        %v2429 = vmul.f32 %v1789, %v1919
        %v2430 = vsel %vm1963, %v2366, %v2382
        %v2431 = vsel %vm1964, %v2382, %v2366
        %v2432 = vsel %vm1963, %v2367, %v2383
        %v2433 = vsel %vm1964, %v2383, %v2367
        %v2434 = vsel %vm1963, %v2368, %v2384
        %v2435 = vsel %vm1964, %v2384, %v2368
        %v2436 = vsel %vm1963, %v2369, %v2385
        %v2437 = vsel %vm1964, %v2385, %v2369
        %v2438 = vsel %vm1963, %v2370, %v2386
        %v2439 = vsel %vm1964, %v2386, %v2370
        %v2440 = vsel %vm1963, %v2371, %v2387
        %v2441 = vsel %vm1964, %v2387, %v2371
        %v2442 = vsel %vm1963, %v2372, %v2388
        %v2443 = vsel %vm1964, %v2388, %v2372
        %v2444 = vsel %vm1963, %v2373, %v2389
        %v2445 = vsel %vm1964, %v2389, %v2373
        %v2446 = vsel %vm1963, %v2374, %v2390
        %v2447 = vsel %vm1964, %v2390, %v2374
        %v2448 = vsel %vm1963, %v2375, %v2391
        %v2449 = vsel %vm1964, %v2391, %v2375
        %v2450 = vsel %vm1963, %v2376, %v2392
        %v2451 = vsel %vm1964, %v2392, %v2376
        %v2452 = vsel %vm1963, %v2377, %v2393
        %v2453 = vsel %vm1964, %v2393, %v2377
        %v2454 = vsel %vm1963, %v2378, %v2394
        %v2455 = vsel %vm1964, %v2394, %v2378
        %v2456 = vsel %vm1963, %v2379, %v2395
        %v2457 = vsel %vm1964, %v2395, %v2379
        %v2458 = vsel %vm1963, %v2380, %v2396
        %v2459 = vsel %vm1964, %v2396, %v2380
        %v2460 = vsel %vm1963, %v2381, %v2397
        %v2461 = vsel %vm1964, %v2397, %v2381
        %v2462 = vmul.f32 %v2430, %v1920
        %v2463 = vmul.f32 %v2431, %v1920
        %v2464 = vmul.f32 %v2432, %v1921
        %v2465 = vmul.f32 %v2433, %v1921
        %v2466 = vmul.f32 %v2434, %v1922
        %v2467 = vmul.f32 %v2435, %v1922
        %v2468 = vmul.f32 %v2436, %v1923
        %v2469 = vmul.f32 %v2437, %v1923
        %v2470 = vmul.f32 %v2438, %v1924
        %v2471 = vmul.f32 %v2439, %v1924
        %v2472 = vmul.f32 %v2440, %v1925
        %v2473 = vmul.f32 %v2441, %v1925
        %v2474 = vmul.f32 %v2442, %v1926
        %v2475 = vmul.f32 %v2443, %v1926
        %v2476 = vmul.f32 %v2444, %v1927
        %v2477 = vmul.f32 %v2445, %v1927
        %v2478 = vmul.f32 %v2446, %v1928
        %v2479 = vmul.f32 %v2447, %v1928
        %v2480 = vmul.f32 %v2448, %v1929
        %v2481 = vmul.f32 %v2449, %v1929
        %v2482 = vmul.f32 %v2450, %v1930
        %v2483 = vmul.f32 %v2451, %v1930
        %v2484 = vmul.f32 %v2452, %v1931
        %v2485 = vmul.f32 %v2453, %v1931
        %v2486 = vmul.f32 %v2454, %v1932
        %v2487 = vmul.f32 %v2455, %v1932
        %v2488 = vmul.f32 %v2456, %v1933
        %v2489 = vmul.f32 %v2457, %v1933
        %v2490 = vmul.f32 %v2458, %v1934
        %v2491 = vmul.f32 %v2459, %v1934
        %v2492 = vmul.f32 %v2460, %v1935
        %v2493 = vmul.f32 %v2461, %v1935
        %v2494 = vadd.f32 %v2398, %v2462
        %v2495 = vadd.f32 %v2399, %v2463
        %v2496 = vadd.f32 %v2400, %v2464
        %v2497 = vadd.f32 %v2401, %v2465
        %v2498 = vadd.f32 %v2402, %v2466
        %v2499 = vadd.f32 %v2403, %v2467
        %v2500 = vadd.f32 %v2404, %v2468
        %v2501 = vadd.f32 %v2405, %v2469
        %v2502 = vadd.f32 %v2406, %v2470
        %v2503 = vadd.f32 %v2407, %v2471
        %v2504 = vadd.f32 %v2408, %v2472
        %v2505 = vadd.f32 %v2409, %v2473
        %v2506 = vadd.f32 %v2410, %v2474
        %v2507 = vadd.f32 %v2411, %v2475
        %v2508 = vadd.f32 %v2412, %v2476
        %v2509 = vadd.f32 %v2413, %v2477
        %v2510 = vadd.f32 %v2414, %v2478
        %v2511 = vadd.f32 %v2415, %v2479
        %v2512 = vadd.f32 %v2416, %v2480
        %v2513 = vadd.f32 %v2417, %v2481
        %v2514 = vadd.f32 %v2418, %v2482
        %v2515 = vadd.f32 %v2419, %v2483
        %v2516 = vadd.f32 %v2420, %v2484
        %v2517 = vadd.f32 %v2421, %v2485
        %v2518 = vadd.f32 %v2422, %v2486
        %v2519 = vadd.f32 %v2423, %v2487
        %v2520 = vadd.f32 %v2424, %v2488
        %v2521 = vadd.f32 %v2425, %v2489
        %v2522 = vadd.f32 %v2426, %v2490
        %v2523 = vadd.f32 %v2427, %v2491
        %v2524 = vadd.f32 %v2428, %v2492
        %v2525 = vadd.f32 %v2429, %v2493
        %v2526 = vpack.c.bf16 %v2496, %v2494
        %v2527 = vpack.c.bf16 %v2497, %v2495
        %v2528 = vpack.c.bf16 %v2500, %v2498
        %v2529 = vpack.c.bf16 %v2501, %v2499
        %v2530 = vpack.c.bf16 %v2504, %v2502
        %v2531 = vpack.c.bf16 %v2505, %v2503
        %v2532 = vpack.c.bf16 %v2508, %v2506
        %v2533 = vpack.c.bf16 %v2509, %v2507
        %v2534 = vpack.c.bf16 %v2512, %v2510
        %v2535 = vpack.c.bf16 %v2513, %v2511
        %v2536 = vpack.c.bf16 %v2516, %v2514
        %v2537 = vpack.c.bf16 %v2517, %v2515
        %v2538 = vpack.c.bf16 %v2520, %v2518
        %v2539 = vpack.c.bf16 %v2521, %v2519
        %v2540 = vpack.c.bf16 %v2524, %v2522
        %v2541 = vpack.c.bf16 %v2525, %v2523
        %v2558 = vunpack.c.l.b16 %v2526
        %v2559 = vunpack.c.l.b16 %v2527
        %v2560 = vunpack.c.h.b16 %v2526
        %v2561 = vunpack.c.h.b16 %v2527
        %v2562 = vunpack.c.l.b16 %v2528
        %v2563 = vunpack.c.l.b16 %v2529
        %v2564 = vunpack.c.h.b16 %v2528
        %v2565 = vunpack.c.h.b16 %v2529
        %v2566 = vunpack.c.l.b16 %v2530
        %v2567 = vunpack.c.l.b16 %v2531
        %v2568 = vunpack.c.h.b16 %v2530
        %v2569 = vunpack.c.h.b16 %v2531
        %v2570 = vunpack.c.l.b16 %v2532
        %v2571 = vunpack.c.l.b16 %v2533
        %v2572 = vunpack.c.h.b16 %v2532
        %v2573 = vunpack.c.h.b16 %v2533
        %v2574 = vunpack.c.l.b16 %v2534
        %v2575 = vunpack.c.l.b16 %v2535
        %v2576 = vunpack.c.h.b16 %v2534
        %v2577 = vunpack.c.h.b16 %v2535
        %v2578 = vunpack.c.l.b16 %v2536
        %v2579 = vunpack.c.l.b16 %v2537
        %v2580 = vunpack.c.h.b16 %v2536
        %v2581 = vunpack.c.h.b16 %v2537
        %v2582 = vunpack.c.l.b16 %v2538
        %v2583 = vunpack.c.l.b16 %v2539
        %v2584 = vunpack.c.h.b16 %v2538
        %v2585 = vunpack.c.h.b16 %v2539
        %v2586 = vunpack.c.l.b16 %v2540
        %v2587 = vunpack.c.l.b16 %v2541
        %v2588 = vunpack.c.h.b16 %v2540
        %v2589 = vunpack.c.h.b16 %v2541
        %v2590 = vpack.c.b16 %v2559, %v2558
        %v2591 = vpack.c.b16 %v2561, %v2560
        %v2592 = vpack.c.b16 %v2563, %v2562
        %v2593 = vpack.c.b16 %v2565, %v2564
        %v2594 = vpack.c.b16 %v2567, %v2566
        %v2595 = vpack.c.b16 %v2569, %v2568
        %v2596 = vpack.c.b16 %v2571, %v2570
        %v2597 = vpack.c.b16 %v2573, %v2572
        %v2598 = vpack.c.b16 %v2575, %v2574
        %v2599 = vpack.c.b16 %v2577, %v2576
        %v2600 = vpack.c.b16 %v2579, %v2578
        %v2601 = vpack.c.b16 %v2581, %v2580
        %v2602 = vpack.c.b16 %v2583, %v2582
        %v2603 = vpack.c.b16 %v2585, %v2584
        %v2604 = vpack.c.b16 %v2587, %v2586
        %v2605 = vpack.c.b16 %v2589, %v2588
        %2622 = vst [vmem:[%s517] sm:$0xff] %v2590
        %2623 = vst [vmem:[%s517 + $0x8] sm:$0xff] %v2591
        %2624 = vst [vmem:[%s517 + $0x10] sm:$0xff] %v2592
        %2625 = vst [vmem:[%s517 + $0x18] sm:$0xff] %v2593
        %2626 = vst [vmem:[%s517 + $0x20] sm:$0xff] %v2594
        %2627 = vst [vmem:[%s517 + $0x28] sm:$0xff] %v2595
        %2628 = vst [vmem:[%s517 + $0x30] sm:$0xff] %v2596
        %2629 = vst [vmem:[%s517 + $0x38] sm:$0xff] %v2597
        %2630 = vst [vmem:[%s517 + $0x40] sm:$0xff] %v2598
        %2631 = vst [vmem:[%s517 + $0x48] sm:$0xff] %v2599
        %2632 = vst [vmem:[%s517 + $0x50] sm:$0xff] %v2600
        %2633 = vst [vmem:[%s517 + $0x58] sm:$0xff] %v2601
        %2634 = vst [vmem:[%s517 + $0x60] sm:$0xff] %v2602
        %2635 = vst [vmem:[%s517 + $0x68] sm:$0xff] %v2603
        %2636 = vst [vmem:[%s517 + $0x70] sm:$0xff] %v2604
        %2637 = vst [vmem:[%s517 + $0x78] sm:$0xff] %v2605
        %v2638 = vpack.c.bf16 %v1830, %v1826
        %v2639 = vpack.c.bf16 %v1832, %v1828
        %v2640 = vpack.c.bf16 %v1840, %v1836
        %v2641 = vpack.c.bf16 %v1842, %v1838
        %v2642 = vpack.c.bf16 %v1850, %v1846
        %v2643 = vpack.c.bf16 %v1852, %v1848
        %v2644 = vpack.c.bf16 %v1860, %v1856
        %v2645 = vpack.c.bf16 %v1862, %v1858
        %v2646 = vpack.c.bf16 %v1870, %v1866
        %v2647 = vpack.c.bf16 %v1872, %v1868
        %v2648 = vpack.c.bf16 %v1880, %v1876
        %v2649 = vpack.c.bf16 %v1882, %v1878
        %v2650 = vpack.c.bf16 %v1890, %v1886
        %v2651 = vpack.c.bf16 %v1892, %v1888
        %v2652 = vpack.c.bf16 %v1900, %v1896
        %v2653 = vpack.c.bf16 %v1902, %v1898
        %v2670 = vunpack.c.l.b16 %v2638
        %v2671 = vunpack.c.l.b16 %v2639
        %v2672 = vunpack.c.h.b16 %v2638
        %v2673 = vunpack.c.h.b16 %v2639
        %v2674 = vunpack.c.l.b16 %v2640
        %v2675 = vunpack.c.l.b16 %v2641
        %v2676 = vunpack.c.h.b16 %v2640
        %v2677 = vunpack.c.h.b16 %v2641
        %v2678 = vunpack.c.l.b16 %v2642
        %v2679 = vunpack.c.l.b16 %v2643
        %v2680 = vunpack.c.h.b16 %v2642
        %v2681 = vunpack.c.h.b16 %v2643
        %v2682 = vunpack.c.l.b16 %v2644
        %v2683 = vunpack.c.l.b16 %v2645
        %v2684 = vunpack.c.h.b16 %v2644
        %v2685 = vunpack.c.h.b16 %v2645
        %v2686 = vunpack.c.l.b16 %v2646
        %v2687 = vunpack.c.l.b16 %v2647
        %v2688 = vunpack.c.h.b16 %v2646
        %v2689 = vunpack.c.h.b16 %v2647
        %v2690 = vunpack.c.l.b16 %v2648
        %v2691 = vunpack.c.l.b16 %v2649
        %v2692 = vunpack.c.h.b16 %v2648
        %v2693 = vunpack.c.h.b16 %v2649
        %v2694 = vunpack.c.l.b16 %v2650
        %v2695 = vunpack.c.l.b16 %v2651
        %v2696 = vunpack.c.h.b16 %v2650
        %v2697 = vunpack.c.h.b16 %v2651
        %v2698 = vunpack.c.l.b16 %v2652
        %v2699 = vunpack.c.l.b16 %v2653
        %v2700 = vunpack.c.h.b16 %v2652
        %v2701 = vunpack.c.h.b16 %v2653
        %v2702 = vpack.c.b16 %v2671, %v2670
        %v2703 = vpack.c.b16 %v2673, %v2672
        %v2704 = vpack.c.b16 %v2675, %v2674
        %v2705 = vpack.c.b16 %v2677, %v2676
        %v2706 = vpack.c.b16 %v2679, %v2678
        %v2707 = vpack.c.b16 %v2681, %v2680
        %v2708 = vpack.c.b16 %v2683, %v2682
        %v2709 = vpack.c.b16 %v2685, %v2684
        %v2710 = vpack.c.b16 %v2687, %v2686
        %v2711 = vpack.c.b16 %v2689, %v2688
        %v2712 = vpack.c.b16 %v2691, %v2690
        %v2713 = vpack.c.b16 %v2693, %v2692
        %v2714 = vpack.c.b16 %v2695, %v2694
        %v2715 = vpack.c.b16 %v2697, %v2696
        %v2716 = vpack.c.b16 %v2699, %v2698
        %v2717 = vpack.c.b16 %v2701, %v2700
        %2734 = vst [vmem:[%s524] sm:$0xff] %v2702
        %2735 = vst [vmem:[%s524 + $0x8] sm:$0xff] %v2703
        %2736 = vst [vmem:[%s524 + $0x10] sm:$0xff] %v2704
        %2737 = vst [vmem:[%s524 + $0x18] sm:$0xff] %v2705
        %2738 = vst [vmem:[%s524 + $0x20] sm:$0xff] %v2706
        %2739 = vst [vmem:[%s524 + $0x28] sm:$0xff] %v2707
        %2740 = vst [vmem:[%s524 + $0x30] sm:$0xff] %v2708
        %2741 = vst [vmem:[%s524 + $0x38] sm:$0xff] %v2709
        %2742 = vst [vmem:[%s524 + $0x40] sm:$0xff] %v2710
        %2743 = vst [vmem:[%s524 + $0x48] sm:$0xff] %v2711
        %2744 = vst [vmem:[%s524 + $0x50] sm:$0xff] %v2712
        %2745 = vst [vmem:[%s524 + $0x58] sm:$0xff] %v2713
        %2746 = vst [vmem:[%s524 + $0x60] sm:$0xff] %v2714
        %2747 = vst [vmem:[%s524 + $0x68] sm:$0xff] %v2715
        %2748 = vst [vmem:[%s524 + $0x70] sm:$0xff] %v2716
        %2749 = vst [vmem:[%s524 + $0x78] sm:$0xff] %v2717
        %s2750 = sand.u32 %s231, 1
        %s2751 = scalar_lea.sflag [#allocation4], %s2750
        %s2752 = sand.u32 %s231, 1
        %s2753 = smul.addr %s2752, 128
        %s2754 = scalar_lea.vmem [#allocation13], %s2753
        %s2755 = sand.u32 %s35, 1
        %s2756 = scalar_lea.sflag [#allocation15], %s2755
        %s2757 = sand.u32 %s259, 1
        %s2758 = smul.addr %s2757, 128
        %s2759 = scalar_lea.vmem [#allocation14], %s2758
        %s2760 = sand.u32 %s35, 1
        %s2761 = scalar_lea.sflag [#allocation15], %s2760
        %s2762 = sand.u32 %s287, 1
        %s2763 = smul.addr %s2762, 128
        %s2764 = scalar_lea.vmem [#allocation16], %s2763
        // Predicated region
        $region73: #{tpu_custom_call.1} parent=47 // pred_check
          %p2765 = pneg %p241
        $region74: #{tpu_custom_call.1} parent=47 // pred_check_branch
          %2767 = sbr.rel (%p2765) target = $region76
        $region75: #{tpu_custom_call.1} parent=47 // pred_region
          %s2768 = smul.u32 16, %s40
          %s2770 = ssub.s32 2048, 2048
          %2771 = vsyncadd %s2751, %s2770
          %s2772 = smul.addr %s2768, 2
          %s2773 = smul.addr %s39, 32
          %s2774 = sadd.s32 %s2772, %s2773
          %s2775 = smul.addr %s2774, 64
          %s2776 = scalar_lea.hbm %s7, %s2775
          %s2777 = sshll.u32 %s2754, 4
          %s2778 = int_to_ptr.vmem [resolvable:$true] %s2777
          %2783 = dma.vmem_to_hbm [thread:$0]  %s2778, 2048, %s2776, %s2751, 128, 128, 8
        $region76: #{tpu_custom_call.1} parent=47 // pred_fallthru
          _
        // Predicated region
        $region77: #{tpu_custom_call.1} parent=47 // pred_check
          %p2784 = pneg %p269
        $region78: #{tpu_custom_call.1} parent=47 // pred_check_branch
          %2786 = sbr.rel (%p2784) target = $region80
        $region79: #{tpu_custom_call.1} parent=47 // pred_region
          %s2787 = smul.u32 16, %s40
          %s2789 = ssub.s32 2048, 2048
          %2790 = vsyncadd %s2756, %s2789
          %s2791 = smul.addr %s2787, 2
          %s2792 = smul.addr %s39, 32
          %s2793 = sadd.s32 %s2791, %s2792
          %s2794 = smul.addr %s2793, 64
          %s2795 = scalar_lea.hbm %s8, %s2794
          %s2796 = sshll.u32 %s2759, 4
          %s2797 = int_to_ptr.vmem [resolvable:$true] %s2796
          %2802 = dma.vmem_to_hbm [thread:$0]  %s2797, 2048, %s2795, %s2756, 128, 128, 8
        $region80: #{tpu_custom_call.1} parent=47 // pred_fallthru
          _
        // Predicated region
        $region81: #{tpu_custom_call.1} parent=47 // pred_check
          %p2803 = pneg %p297
        $region82: #{tpu_custom_call.1} parent=47 // pred_check_branch
          %2805 = sbr.rel (%p2803) target = $region84
        $region83: #{tpu_custom_call.1} parent=47 // pred_region
          %s2806 = smul.u32 16, %s40
          %s2808 = ssub.s32 2048, 2048
          %2809 = vsyncadd %s2761, %s2808
          %s2810 = smul.addr %s2806, 2
          %s2811 = smul.addr %s39, 32
          %s2812 = sadd.s32 %s2810, %s2811
          %s2813 = smul.addr %s2812, 64
          %s2814 = scalar_lea.hbm %s9, %s2813
          %s2815 = sshll.u32 %s2764, 4
          %s2816 = int_to_ptr.vmem [resolvable:$true] %s2815
          %2821 = dma.vmem_to_hbm [thread:$0]  %s2816, 2048, %s2814, %s2761, 128, 128, 8
        $region84: #{tpu_custom_call.1} parent=47 // pred_fallthru
          _
      $region48: #{tpu_custom_call.1} parent=5 // pred_fallthru
        _
      %p2822 = scmp.le.s32.totalorder 2, %s30
      // Predicated region
      $region85: #{tpu_custom_call.1} parent=5 // pred_check
        %p2823 = pneg %p2822
      $region86: #{tpu_custom_call.1} parent=5 // pred_check_branch
        %2825 = sbr.rel (%p2823) target = $region88
      $region87: #{tpu_custom_call.1} parent=5 // pred_region
        %s2826 = ssub.s32 %s30, 2
        // Predicated region
        $region89: #{tpu_custom_call.1} parent=87 // pred_check
          %p2827 = pneg %p247
        $region90: #{tpu_custom_call.1} parent=87 // pred_check_branch
          %2829 = sbr.rel (%p2827) target = $region92
        $region91: #{tpu_custom_call.1} parent=87 // pred_region
          %s2830 = sand.u32 %s232, 1
          %s2831 = scalar_lea.sflag [#allocation4], %s2830
          %s2832 = sand.u32 %s232, 1
          %s2833 = smul.addr %s2832, 128
          %s2834 = scalar_lea.vmem [#allocation13], %s2833
          %2835 = dma.done %s2831, 2048
        $region92: #{tpu_custom_call.1} parent=87 // pred_fallthru
          _
        // Predicated region
        $region93: #{tpu_custom_call.1} parent=87 // pred_check
          %p2836 = pneg %p275
        $region94: #{tpu_custom_call.1} parent=87 // pred_check_branch
          %2838 = sbr.rel (%p2836) target = $region96
        $region95: #{tpu_custom_call.1} parent=87 // pred_region
          %s2839 = sand.u32 %s36, 1
          %s2840 = scalar_lea.sflag [#allocation15], %s2839
          %s2841 = sand.u32 %s260, 1
          %s2842 = smul.addr %s2841, 128
          %s2843 = scalar_lea.vmem [#allocation14], %s2842
          %2844 = dma.done %s2840, 2048
        $region96: #{tpu_custom_call.1} parent=87 // pred_fallthru
          _
        // Predicated region
        $region97: #{tpu_custom_call.1} parent=87 // pred_check
          %p2845 = pneg %p303
        $region98: #{tpu_custom_call.1} parent=87 // pred_check_branch
          %2847 = sbr.rel (%p2845) target = $region100
        $region99: #{tpu_custom_call.1} parent=87 // pred_region
          %s2848 = sand.u32 %s36, 1
          %s2849 = scalar_lea.sflag [#allocation15], %s2848
          %s2850 = sand.u32 %s288, 1
          %s2851 = smul.addr %s2850, 128
          %s2852 = scalar_lea.vmem [#allocation16], %s2851
          %2853 = dma.done %s2849, 2048
        $region100: #{tpu_custom_call.1} parent=87 // pred_fallthru
          _
      $region88: #{tpu_custom_call.1} parent=5 // pred_fallthru
        _
    $region6: #{tpu_custom_call.1} parent=1 // loop_footer
      %s34 = sadd.s32 1, %s30
    $region7: #{tpu_custom_call.1} parent=1 // loop_footer_branch
      %29 = sbr.rel target = $region3
    $region8: #{tpu_custom_call.1} parent=1 // loop_exit
      _
    %2854 = vsyncpa [#allocation3], 1
    %s2855 = scalar_lea.sflag [#allocation3], 1
    %2856 = vsyncpa %s2855, 1
    %2857 = vsyncpa [#allocation6], 1
    %s2858 = scalar_lea.sflag [#allocation6], 1
    %2859 = vsyncpa %s2858, 1
    %2860 = vsyncpa [#allocation9], 1
    %2861 = vsyncpa [#allocation12], 1
    %2862 = vsyncpa [#allocation4], 1
    %s2863 = scalar_lea.sflag [#allocation4], 1
    %2864 = vsyncpa %s2863, 1
    %2865 = vsyncpa [#allocation15], 1
    %s2866 = scalar_lea.sflag [#allocation15], 1
    %2867 = vsyncpa %s2866, 1

// kernel: tpu_custom_call.1
$region0: #{tpu_custom_call.1}
  #allocation0 [shape = 'u32[]', space=smem, size = 0x4, offset = 0x4, fixed_abs, tag = 'smem constant byte address 0x4 - core index']
  #allocation1 [shape = 'u32[144,128]{1,0:T(1,128)}', space=vmem, size = 0x12000, scoped, tag = 'internal scratch']
  %s0 = inlined_call_operand.hbm [shape: f32[2,128,256], index: 0, kind: input, shape index: {}]
  %s1 = inlined_call_operand.hbm [shape: f32[2,1,256], index: 1, kind: input, shape index: {}]
  %s2 = inlined_call_operand.hbm [shape: f32[2,1,256], index: 2, kind: input, shape index: {}]
  %s3 = inlined_call_operand.hbm [shape: f32[128,128], index: 3, kind: input, shape index: {}]
  %s4 = inlined_call_operand.hbm [shape: f32[128,128], index: 4, kind: input, shape index: {}]
  %s5 = inlined_call_operand.hbm [shape: bf16[256,768], index: 5, kind: input, shape index: {}]
  %s6 = inlined_call_operand.vmem [shape: f32[1,768], index: 6, kind: input, shape index: {}]
  %s7 = inlined_call_operand.hbm [shape: bf16[2,128,256], index: 7, kind: output, shape index: {0}]
  %s8 = inlined_call_operand.hbm [shape: bf16[2,128,256], index: 8, kind: output, shape index: {1}]
  %s9 = inlined_call_operand.hbm [shape: bf16[2,128,256], index: 9, kind: output, shape index: {2}]
  %10 = xla_tuple %s7, %s8, %s9
  %s11 = sld [smem:[#allocation0]]
  $region101: #{tpu_custom_call.1} parent=0
    _
  %s13 = ssub.s32 1, %s11
  %s14 = scalar_select 0, %s13, %s11
  $region1: #{tpu_custom_call.1} parent=0
    #allocation2 [shape = 'u8[262144]{0}', space=vmem, size = 0x40000, scoped, tag = 'input window, operand 0']
    #allocation3 [shape = 's32[2]{0}', space=sflag, size = 0x8, scoped, tag = 'scoped memory for tpu_custom_call.1']
    #allocation4 [shape = 's32[2]{0}', space=sflag, size = 0x8, scoped, tag = 'scoped memory for tpu_custom_call.1']
    #allocation5 [shape = 'u8[2048]{0}', space=vmem, size = 0x800, scoped, tag = 'input window, operand 1']
    #allocation6 [shape = 's32[2]{0}', space=sflag, size = 0x8, scoped, tag = 'scoped memory for tpu_custom_call.1']
    #allocation7 [shape = 'u8[2048]{0}', space=vmem, size = 0x800, scoped, tag = 'input window, operand 2']
    #allocation8 [shape = 'u8[65536]{0}', space=vmem, size = 0x10000, scoped, tag = 'input window, operand 3, single buffered']
    #allocation9 [shape = 's32[1]{0}', space=sflag, size = 0x4, scoped, tag = 'scoped memory for tpu_custom_call.1']
    #allocation10 [shape = 'u8[65536]{0}', space=vmem, size = 0x10000, scoped, tag = 'input window, operand 4, single buffered']
    #allocation11 [shape = 'u8[393216]{0}', space=vmem, size = 0x60000, scoped, tag = 'input window, operand 5, single buffered']
    #allocation12 [shape = 's32[1]{0}', space=sflag, size = 0x4, scoped, tag = 'scoped memory for tpu_custom_call.1']
    #allocation13 [shape = 'u8[131072]{0}', space=vmem, size = 0x20000, scoped, tag = 'output window, operand 0']
    #allocation14 [shape = 'u8[131072]{0}', space=vmem, size = 0x20000, scoped, tag = 'output window, operand 1']
    #allocation15 [shape = 's32[2]{0}', space=sflag, size = 0x8, scoped, tag = 'scoped memory for tpu_custom_call.1']
    #allocation16 [shape = 'u8[131072]{0}', space=vmem, size = 0x20000, scoped, tag = 'output window, operand 2']
    %15 = vsyncpa [#allocation3], 0
    %s16 = scalar_lea.sflag [#allocation3], 1
    %17 = vsyncpa %s16, 0
    %18 = vsyncpa [#allocation6], 0
    %s19 = scalar_lea.sflag [#allocation6], 1
    %20 = vsyncpa %s19, 0
    %21 = vsyncpa [#allocation9], 0
    %22 = vsyncpa [#allocation12], 0
    %23 = vsyncpa [#allocation4], 0
    %s24 = scalar_lea.sflag [#allocation4], 1
    %25 = vsyncpa %s24, 0
    %26 = vsyncpa [#allocation15], 0
    %s27 = scalar_lea.sflag [#allocation15], 1
    %28 = vsyncpa %s27, 0
    loop: start=0, step=1, limit=4
    $region2: #{tpu_custom_call.1} parent=1 // loop_pre_header
      _
    $region3: #{tpu_custom_call.1} parent=1 // loop_header
      %s30 = sphi 0, %s34
      %p31 = scmp.ge.s32.totalorder %s30, 4
      %s37 = sphi 0, %s49
      %s38 = sphi 0, %s45
      %s39 = sphi 0, %s37
      %s40 = sphi 0, %s38
      %s41 = sphi 0, %s39
      %s42 = sphi 0, %s40
      %s54 = sphi 0, %s56
      %s57 = sphi 0, %s54
      %s58 = sphi 0, %s57
      %s74 = sphi 0, %s58
      %s80 = sphi 0, %s82
      %s83 = sphi 0, %s80
      %s84 = sphi 0, %s83
      %s100 = sphi 0, %s84
      %s106 = sphi 0, %s108
      %s109 = sphi 0, %s106
      %s110 = sphi 0, %s109
      %s126 = sphi 0, %s110
      %s132 = sphi 0, %s134
      %s135 = sphi 0, %s132
      %s136 = sphi 0, %s135
      %s152 = sphi 0, %s136
      %s158 = sphi 0, %s160
      %s161 = sphi 0, %s158
      %s162 = sphi 0, %s161
      %s178 = sphi 0, %s162
      %s182 = sphi 0, %s182
      %s184 = sphi 0, %s182
      %s185 = sphi 0, %s184
      %s199 = sphi 0, %s185
      %s203 = sphi 0, %s203
      %s205 = sphi 0, %s203
      %s206 = sphi 0, %s205
      %s220 = sphi 0, %s206
      %s228 = sphi 0, %s230
      %s231 = sphi 0, %s228
      %s232 = sphi 0, %s231
      %s248 = sphi 0, %s232
      %s256 = sphi 0, %s258
      %s259 = sphi 0, %s256
      %s260 = sphi 0, %s259
      %s276 = sphi 0, %s260
      %s284 = sphi 0, %s286
      %s287 = sphi 0, %s284
      %s288 = sphi 0, %s287
      %s304 = sphi 0, %s288
    $region4: #{tpu_custom_call.1} parent=1 // loop_header_branch
      %33 = sbr.rel (%p31) target = $region8
    $region5: #{tpu_custom_call.1} parent=1 // loop_body
      %s35 = ssub.s32 %s30, 1
      %s36 = ssub.s32 %s30, 2
      %s43 = sadd.s32 1, %s38
      %p44 = scmp.ge.s32.totalorder %s43, 1
      %s45 = scalar_select %p44, 0, %s43
      %s46 = sadd.s32 1, %s37
      %s47 = scalar_select %p44, %s46, %s37
      %p48 = scmp.ge.s32.totalorder %s47, 2
      %s49 = scalar_select %p48, 0, %s47
      %s50 = ssub.s32 %s37, %s49
      %s51 = ssub.s32 %s38, %s45
      %s52 = sor.u32 %s50, %s51
      %p53 = scmp.eq.s32.totalorder %s52, 0
      %s55 = sadd.s32 %s54, 1
      %s56 = scalar_select %p53, %s54, %s55
      %p59 = pneg %p53
      %p60 = scmp.eq.s32.totalorder %s30, 1
      %p61 = por %p59, %p60
      %p62 = scmp.ne.s32.totalorder %s54, %s57
      %p63 = scmp.eq.s32.totalorder %s30, 0
      %p64 = por %p62, %p63
      %p65 = scmp.ne.s32.totalorder %s54, %s57
      %p66 = scmp.eq.s32.totalorder %s35, 1
      %p67 = por %p65, %p66
      %p68 = scmp.ne.s32.totalorder %s57, %s58
      %p69 = scmp.eq.s32.totalorder %s35, 0
      %p70 = por %p68, %p69
      %p71 = scmp.ne.s32.totalorder %s57, %s58
      %p72 = scmp.eq.s32.totalorder %s36, 1
      %p73 = por %p71, %p72
      %p75 = scmp.ne.s32.totalorder %s58, %s74
      %p76 = scmp.eq.s32.totalorder %s36, 0
      %p77 = por %p75, %p76
      %s78 = ssub.s32 %s37, %s49
      %p79 = scmp.eq.s32.totalorder %s78, 0
      %s81 = sadd.s32 %s80, 1
      %s82 = scalar_select %p79, %s80, %s81
      %p85 = pneg %p79
      %p86 = scmp.eq.s32.totalorder %s30, 1
      %p87 = por %p85, %p86
      %p88 = scmp.ne.s32.totalorder %s80, %s83
      %p89 = scmp.eq.s32.totalorder %s30, 0
      %p90 = por %p88, %p89
      %p91 = scmp.ne.s32.totalorder %s80, %s83
      %p92 = scmp.eq.s32.totalorder %s35, 1
      %p93 = por %p91, %p92
      %p94 = scmp.ne.s32.totalorder %s83, %s84
      %p95 = scmp.eq.s32.totalorder %s35, 0
      %p96 = por %p94, %p95
      %p97 = scmp.ne.s32.totalorder %s83, %s84
      %p98 = scmp.eq.s32.totalorder %s36, 1
      %p99 = por %p97, %p98
      %p101 = scmp.ne.s32.totalorder %s84, %s100
      %p102 = scmp.eq.s32.totalorder %s36, 0
      %p103 = por %p101, %p102
      %s104 = ssub.s32 %s37, %s49
      %p105 = scmp.eq.s32.totalorder %s104, 0
      %s107 = sadd.s32 %s106, 1
      %s108 = scalar_select %p105, %s106, %s107
      %p111 = pneg %p105
      %p112 = scmp.eq.s32.totalorder %s30, 1
      %p113 = por %p111, %p112
      %p114 = scmp.ne.s32.totalorder %s106, %s109
      %p115 = scmp.eq.s32.totalorder %s30, 0
      %p116 = por %p114, %p115
      %p117 = scmp.ne.s32.totalorder %s106, %s109
      %p118 = scmp.eq.s32.totalorder %s35, 1
      %p119 = por %p117, %p118
      %p120 = scmp.ne.s32.totalorder %s109, %s110
      %p121 = scmp.eq.s32.totalorder %s35, 0
      %p122 = por %p120, %p121
      %p123 = scmp.ne.s32.totalorder %s109, %s110
      %p124 = scmp.eq.s32.totalorder %s36, 1
      %p125 = por %p123, %p124
      %p127 = scmp.ne.s32.totalorder %s110, %s126
      %p128 = scmp.eq.s32.totalorder %s36, 0
      %p129 = por %p127, %p128
      %s130 = ssub.s32 %s38, %s45
      %p131 = scmp.eq.s32.totalorder %s130, 0
      %s133 = sadd.s32 %s132, 1
      %s134 = scalar_select %p131, %s132, %s133
      %p137 = pneg %p131
      %p138 = scmp.eq.s32.totalorder %s30, 1
      %p139 = por %p137, %p138
      %p140 = scmp.ne.s32.totalorder %s132, %s135
      %p141 = scmp.eq.s32.totalorder %s30, 0
      %p142 = por %p140, %p141
      %p143 = scmp.ne.s32.totalorder %s132, %s135
      %p144 = scmp.eq.s32.totalorder %s35, 1
      %p145 = por %p143, %p144
      %p146 = scmp.ne.s32.totalorder %s135, %s136
      %p147 = scmp.eq.s32.totalorder %s35, 0
      %p148 = por %p146, %p147
      %p149 = scmp.ne.s32.totalorder %s135, %s136
      %p150 = scmp.eq.s32.totalorder %s36, 1
      %p151 = por %p149, %p150
      %p153 = scmp.ne.s32.totalorder %s136, %s152
      %p154 = scmp.eq.s32.totalorder %s36, 0
      %p155 = por %p153, %p154
      %s156 = ssub.s32 %s38, %s45
      %p157 = scmp.eq.s32.totalorder %s156, 0
      %s159 = sadd.s32 %s158, 1
      %s160 = scalar_select %p157, %s158, %s159
      %p163 = pneg %p157
      %p164 = scmp.eq.s32.totalorder %s30, 1
      %p165 = por %p163, %p164
      %p166 = scmp.ne.s32.totalorder %s158, %s161
      %p167 = scmp.eq.s32.totalorder %s30, 0
      %p168 = por %p166, %p167
      %p169 = scmp.ne.s32.totalorder %s158, %s161
      %p170 = scmp.eq.s32.totalorder %s35, 1
      %p171 = por %p169, %p170
      %p172 = scmp.ne.s32.totalorder %s161, %s162
      %p173 = scmp.eq.s32.totalorder %s35, 0
      %p174 = por %p172, %p173
      %p175 = scmp.ne.s32.totalorder %s161, %s162
      %p176 = scmp.eq.s32.totalorder %s36, 1
      %p177 = por %p175, %p176
      %p179 = scmp.ne.s32.totalorder %s162, %s178
      %p180 = scmp.eq.s32.totalorder %s36, 0
      %p181 = por %p179, %p180
      %s183 = sadd.s32 %s182, 1
      %p186 = scmp.eq.s32.totalorder %s30, 1
      %p187 = scmp.ne.s32.totalorder %s182, %s184
      %p188 = scmp.eq.s32.totalorder %s30, 0
      %p189 = por %p187, %p188
      %p190 = scmp.ne.s32.totalorder %s182, %s184
      %p191 = scmp.eq.s32.totalorder %s35, 1
      %p192 = por %p190, %p191
      %p193 = scmp.ne.s32.totalorder %s184, %s185
      %p194 = scmp.eq.s32.totalorder %s35, 0
      %p195 = por %p193, %p194
      %p196 = scmp.ne.s32.totalorder %s184, %s185
      %p197 = scmp.eq.s32.totalorder %s36, 1
      %p198 = por %p196, %p197
      %p200 = scmp.ne.s32.totalorder %s185, %s199
      %p201 = scmp.eq.s32.totalorder %s36, 0
      %p202 = por %p200, %p201
      %s204 = sadd.s32 %s203, 1
      %p207 = scmp.eq.s32.totalorder %s30, 1
      %p208 = scmp.ne.s32.totalorder %s203, %s205
      %p209 = scmp.eq.s32.totalorder %s30, 0
      %p210 = por %p208, %p209
      %p211 = scmp.ne.s32.totalorder %s203, %s205
      %p212 = scmp.eq.s32.totalorder %s35, 1
      %p213 = por %p211, %p212
      %p214 = scmp.ne.s32.totalorder %s205, %s206
      %p215 = scmp.eq.s32.totalorder %s35, 0
      %p216 = por %p214, %p215
      %p217 = scmp.ne.s32.totalorder %s205, %s206
      %p218 = scmp.eq.s32.totalorder %s36, 1
      %p219 = por %p217, %p218
      %p221 = scmp.ne.s32.totalorder %s206, %s220
      %p222 = scmp.eq.s32.totalorder %s36, 0
      %p223 = por %p221, %p222
      %s224 = ssub.s32 %s37, %s49
      %s225 = ssub.s32 %s38, %s45
      %s226 = sor.u32 %s224, %s225
      %p227 = scmp.eq.s32.totalorder %s226, 0
      %s229 = sadd.s32 %s228, 1
      %s230 = scalar_select %p227, %s228, %s229
      %p233 = pneg %p227
      %p234 = scmp.eq.s32.totalorder %s30, 1
      %p235 = por %p233, %p234
      %p236 = scmp.ne.s32.totalorder %s228, %s231
      %p237 = scmp.eq.s32.totalorder %s30, 0
      %p238 = por %p236, %p237
      %p239 = scmp.ne.s32.totalorder %s228, %s231
      %p240 = scmp.eq.s32.totalorder %s35, 1
      %p241 = por %p239, %p240
      %p242 = scmp.ne.s32.totalorder %s231, %s232
      %p243 = scmp.eq.s32.totalorder %s35, 0
      %p244 = por %p242, %p243
      %p245 = scmp.ne.s32.totalorder %s231, %s232
      %p246 = scmp.eq.s32.totalorder %s36, 1
      %p247 = por %p245, %p246
      %p249 = scmp.ne.s32.totalorder %s232, %s248
      %p250 = scmp.eq.s32.totalorder %s36, 0
      %p251 = por %p249, %p250
      %s252 = ssub.s32 %s37, %s49
      %s253 = ssub.s32 %s38, %s45
      %s254 = sor.u32 %s252, %s253
      %p255 = scmp.eq.s32.totalorder %s254, 0
      %s257 = sadd.s32 %s256, 1
      %s258 = scalar_select %p255, %s256, %s257
      %p261 = pneg %p255
      %p262 = scmp.eq.s32.totalorder %s30, 1
      %p263 = por %p261, %p262
      %p264 = scmp.ne.s32.totalorder %s256, %s259
      %p265 = scmp.eq.s32.totalorder %s30, 0
      %p266 = por %p264, %p265
      %p267 = scmp.ne.s32.totalorder %s256, %s259
      %p268 = scmp.eq.s32.totalorder %s35, 1
      %p269 = por %p267, %p268
      %p270 = scmp.ne.s32.totalorder %s259, %s260
      %p271 = scmp.eq.s32.totalorder %s35, 0
      %p272 = por %p270, %p271
      %p273 = scmp.ne.s32.totalorder %s259, %s260
      %p274 = scmp.eq.s32.totalorder %s36, 1
      %p275 = por %p273, %p274
      %p277 = scmp.ne.s32.totalorder %s260, %s276
      %p278 = scmp.eq.s32.totalorder %s36, 0
      %p279 = por %p277, %p278
      %s280 = ssub.s32 %s37, %s49
      %s281 = ssub.s32 %s38, %s45
      %s282 = sor.u32 %s280, %s281
      %p283 = scmp.eq.s32.totalorder %s282, 0
      %s285 = sadd.s32 %s284, 1
      %s286 = scalar_select %p283, %s284, %s285
      %p289 = pneg %p283
      %p290 = scmp.eq.s32.totalorder %s30, 1
      %p291 = por %p289, %p290
      %p292 = scmp.ne.s32.totalorder %s284, %s287
      %p293 = scmp.eq.s32.totalorder %s30, 0
      %p294 = por %p292, %p293
      %p295 = scmp.ne.s32.totalorder %s284, %s287
      %p296 = scmp.eq.s32.totalorder %s35, 1
      %p297 = por %p295, %p296
      %p298 = scmp.ne.s32.totalorder %s287, %s288
      %p299 = scmp.eq.s32.totalorder %s35, 0
      %p300 = por %p298, %p299
      %p301 = scmp.ne.s32.totalorder %s287, %s288
      %p302 = scmp.eq.s32.totalorder %s36, 1
      %p303 = por %p301, %p302
      %p305 = scmp.ne.s32.totalorder %s288, %s304
      %p306 = scmp.eq.s32.totalorder %s36, 0
      %p307 = por %p305, %p306
      %p308 = scmp.le.s32.totalorder 1, %s30
      %p309 = scmp.lt.s32.totalorder %s30, 3
      %p310 = pnand %p308, %p309
      %p311 = pneg %p310
      // Predicated region
      $region9: #{tpu_custom_call.1} parent=5 // pred_check
        _
      $region10: #{tpu_custom_call.1} parent=5 // pred_check_branch
        %313 = sbr.rel (%p310) target = $region12
      $region11: #{tpu_custom_call.1} parent=5 // pred_region
        %s314 = ssub.s32 %s30, 1
        // Predicated region
        $region13: #{tpu_custom_call.1} parent=11 // pred_check
          %p315 = pneg %p148
        $region14: #{tpu_custom_call.1} parent=11 // pred_check_branch
          %317 = sbr.rel (%p315) target = $region16
        $region15: #{tpu_custom_call.1} parent=11 // pred_region
          %s318 = smul.u32 16, %s40
          %s320 = ssub.s32 2048, 2048
          %321 = vsyncadd [#allocation9], %s320
          %s322 = smul.addr %s318, 128
          %s323 = scalar_lea.hbm %s3, %s322
          %s324 = sshll.u32 [#allocation8], 4
          %s325 = int_to_ptr.vmem [resolvable:$true] %s324
          %330 = dma.hbm_to_vmem [thread:$0]  %s323, 2048, %s325, [#allocation9], 128, 128, 8
        $region16: #{tpu_custom_call.1} parent=11 // pred_fallthru
          _
        // Predicated region
        $region17: #{tpu_custom_call.1} parent=11 // pred_check
          %p331 = pneg %p174
        $region18: #{tpu_custom_call.1} parent=11 // pred_check_branch
          %333 = sbr.rel (%p331) target = $region20
        $region19: #{tpu_custom_call.1} parent=11 // pred_region
          %s334 = smul.u32 16, %s40
          %s336 = ssub.s32 2048, 2048
          %337 = vsyncadd [#allocation9], %s336
          %s338 = smul.addr %s334, 128
          %s339 = scalar_lea.hbm %s4, %s338
          %s340 = sshll.u32 [#allocation10], 4
          %s341 = int_to_ptr.vmem [resolvable:$true] %s340
          %346 = dma.hbm_to_vmem [thread:$0]  %s339, 2048, %s341, [#allocation9], 128, 128, 8
        $region20: #{tpu_custom_call.1} parent=11 // pred_fallthru
          _
        // Predicated region
        $region21: #{tpu_custom_call.1} parent=11 // pred_check
          %p347 = pneg %p195
        $region22: #{tpu_custom_call.1} parent=11 // pred_check_branch
          %349 = sbr.rel (%p347) target = $region24
        $region23: #{tpu_custom_call.1} parent=11 // pred_region
          %s351 = ssub.s32 12288, 12288
          %352 = vsyncadd [#allocation12], %s351
          %s353 = sshll.u32 [#allocation11], 4
          %s354 = int_to_ptr.vmem [resolvable:$true] %s353
          %359 = dma.hbm_to_vmem [thread:$0]  %s5, 12288, %s354, [#allocation12], 384, 384, 24
        $region24: #{tpu_custom_call.1} parent=11 // pred_fallthru
          _
        // Predicated region
        $region25: #{tpu_custom_call.1} parent=11 // pred_check
          %p360 = pneg %p216
        $region26: #{tpu_custom_call.1} parent=11 // pred_check_branch
          %362 = sbr.rel (%p360) target = $region28
        $region27: #{tpu_custom_call.1} parent=11 // pred_region
          _
        $region28: #{tpu_custom_call.1} parent=11 // pred_fallthru
          _
      $region12: #{tpu_custom_call.1} parent=5 // pred_fallthru
        _
      %p363 = scmp.lt.s32.totalorder %s30, 2
      // Predicated region
      $region29: #{tpu_custom_call.1} parent=5 // pred_check
        %p364 = pneg %p363
      $region30: #{tpu_custom_call.1} parent=5 // pred_check_branch
        %366 = sbr.rel (%p364) target = $region32
      $region31: #{tpu_custom_call.1} parent=5 // pred_region
        // Predicated region
        $region33: #{tpu_custom_call.1} parent=31 // pred_check
          %p367 = pneg %p64
        $region34: #{tpu_custom_call.1} parent=31 // pred_check_branch
          %369 = sbr.rel (%p367) target = $region36
        $region35: #{tpu_custom_call.1} parent=31 // pred_region
          %s370 = sand.u32 %s54, 1
          %s371 = scalar_lea.sflag [#allocation3], %s370
          %s372 = sand.u32 %s54, 1
          %s373 = smul.addr %s372, 256
          %s374 = scalar_lea.vmem [#allocation2], %s373
          %s375 = smul.u32 16, %s38
          %s377 = ssub.s32 4096, 4096
          %378 = vsyncadd %s371, %s377
          %s379 = smul.addr %s375, 2
          %s380 = smul.addr %s37, 32
          %s381 = sadd.s32 %s379, %s380
          %s382 = smul.addr %s381, 128
          %s383 = scalar_lea.hbm %s0, %s382
          %s384 = sshll.u32 %s374, 4
          %s385 = int_to_ptr.vmem [resolvable:$true] %s384
          %390 = dma.hbm_to_vmem [thread:$0]  %s383, 4096, %s385, %s371, 256, 256, 16
        $region36: #{tpu_custom_call.1} parent=31 // pred_fallthru
          _
        // Predicated region
        $region37: #{tpu_custom_call.1} parent=31 // pred_check
          %p391 = pneg %p90
        $region38: #{tpu_custom_call.1} parent=31 // pred_check_branch
          %393 = sbr.rel (%p391) target = $region40
        $region39: #{tpu_custom_call.1} parent=31 // pred_region
          %s394 = sand.u32 %s30, 1
          %s395 = scalar_lea.sflag [#allocation6], %s394
          %s396 = sand.u32 %s80, 1
          %s397 = smul.addr %s396, 2
          %s398 = scalar_lea.vmem [#allocation5], %s397
          %s400 = ssub.s32 32, 32
          %401 = vsyncadd %s395, %s400
          %s402 = smul.addr %s37, 2
          %s403 = smul.addr %s402, 16
          %s404 = scalar_lea.hbm %s1, %s403
          %s406 = sshll.u32 %s398, 4
          %s407 = int_to_ptr.vmem [resolvable:$true] %s406
          %409 = dma.hbm_to_vmem [thread:$0]  %s404, 32, %s407, %s395
        $region40: #{tpu_custom_call.1} parent=31 // pred_fallthru
          _
        // Predicated region
        $region41: #{tpu_custom_call.1} parent=31 // pred_check
          %p410 = pneg %p116
        $region42: #{tpu_custom_call.1} parent=31 // pred_check_branch
          %412 = sbr.rel (%p410) target = $region44
        $region43: #{tpu_custom_call.1} parent=31 // pred_region
          %s413 = sand.u32 %s30, 1
          %s414 = scalar_lea.sflag [#allocation6], %s413
          %s415 = sand.u32 %s106, 1
          %s416 = smul.addr %s415, 2
          %s417 = scalar_lea.vmem [#allocation7], %s416
          %s419 = ssub.s32 32, 32
          %420 = vsyncadd %s414, %s419
          %s421 = smul.addr %s37, 2
          %s422 = smul.addr %s421, 16
          %s423 = scalar_lea.hbm %s2, %s422
          %s425 = sshll.u32 %s417, 4
          %s426 = int_to_ptr.vmem [resolvable:$true] %s425
          %428 = dma.hbm_to_vmem [thread:$0]  %s423, 32, %s426, %s414
        $region44: #{tpu_custom_call.1} parent=31 // pred_fallthru
          _
      $region32: #{tpu_custom_call.1} parent=5 // pred_fallthru
        _
      %p429 = scmp.le.s32.totalorder 1, %s30
      %p430 = scmp.lt.s32.totalorder %s30, 3
      %p431 = pnand %p429, %p430
      %p432 = pneg %p431
      // Predicated region
      $region45: #{tpu_custom_call.1} parent=5 // pred_check
        _
      $region46: #{tpu_custom_call.1} parent=5 // pred_check_branch
        %434 = sbr.rel (%p431) target = $region48
      $region47: #{tpu_custom_call.1} parent=5 // pred_region
        %s435 = ssub.s32 %s30, 1
        %s436 = sand.u32 %s57, 1
        %s437 = scalar_lea.sflag [#allocation3], %s436
        %s438 = sand.u32 %s57, 1
        %s439 = smul.addr %s438, 256
        %s440 = scalar_lea.vmem [#allocation2], %s439
        // Predicated region
        $region49: #{tpu_custom_call.1} parent=47 // pred_check
          %p441 = pneg %p70
        $region50: #{tpu_custom_call.1} parent=47 // pred_check_branch
          %443 = sbr.rel (%p441) target = $region52
        $region51: #{tpu_custom_call.1} parent=47 // pred_region
          %444 = dma.done %s437, 4096
        $region52: #{tpu_custom_call.1} parent=47 // pred_fallthru
          _
        %s445 = sand.u32 %s35, 1
        %s446 = scalar_lea.sflag [#allocation6], %s445
        %s447 = sand.u32 %s83, 1
        %s448 = smul.addr %s447, 2
        %s449 = scalar_lea.vmem [#allocation5], %s448
        // Predicated region
        $region53: #{tpu_custom_call.1} parent=47 // pred_check
          %p450 = pneg %p96
        $region54: #{tpu_custom_call.1} parent=47 // pred_check_branch
          %452 = sbr.rel (%p450) target = $region56
        $region55: #{tpu_custom_call.1} parent=47 // pred_region
          %453 = dma.done %s446, 32
        $region56: #{tpu_custom_call.1} parent=47 // pred_fallthru
          _
        %s454 = sand.u32 %s35, 1
        %s455 = scalar_lea.sflag [#allocation6], %s454
        %s456 = sand.u32 %s109, 1
        %s457 = smul.addr %s456, 2
        %s458 = scalar_lea.vmem [#allocation7], %s457
        // Predicated region
        $region57: #{tpu_custom_call.1} parent=47 // pred_check
          %p459 = pneg %p122
        $region58: #{tpu_custom_call.1} parent=47 // pred_check_branch
          %461 = sbr.rel (%p459) target = $region60
        $region59: #{tpu_custom_call.1} parent=47 // pred_region
          %462 = dma.done %s455, 32
        $region60: #{tpu_custom_call.1} parent=47 // pred_fallthru
          _
        // Predicated region
        $region61: #{tpu_custom_call.1} parent=47 // pred_check
          %p463 = pneg %p148
        $region62: #{tpu_custom_call.1} parent=47 // pred_check_branch
          %465 = sbr.rel (%p463) target = $region64
        $region63: #{tpu_custom_call.1} parent=47 // pred_region
          %466 = dma.done [#allocation9], 2048
        $region64: #{tpu_custom_call.1} parent=47 // pred_fallthru
          _
        // Predicated region
        $region65: #{tpu_custom_call.1} parent=47 // pred_check
          %p467 = pneg %p174
        $region66: #{tpu_custom_call.1} parent=47 // pred_check_branch
          %469 = sbr.rel (%p467) target = $region68
        $region67: #{tpu_custom_call.1} parent=47 // pred_region
          %470 = dma.done [#allocation9], 2048
        $region68: #{tpu_custom_call.1} parent=47 // pred_fallthru
          _
        // Predicated region
        $region69: #{tpu_custom_call.1} parent=47 // pred_check
          %p471 = pneg %p195
        $region70: #{tpu_custom_call.1} parent=47 // pred_check_branch
          %473 = sbr.rel (%p471) target = $region72
        $region71: #{tpu_custom_call.1} parent=47 // pred_region
          %474 = dma.done [#allocation12], 12288
        $region72: #{tpu_custom_call.1} parent=47 // pred_fallthru
          _
        %s475 = sand.u32 %s57, 1
        %s476 = scalar_lea.sflag [#allocation3], %s475
        %s477 = sand.u32 %s57, 1
        %s478 = smul.addr %s477, 256
        %s479 = scalar_lea.vmem [#allocation2], %s478
        %p480 = pneg %p70
        %p481 = pneg %p67
        %s482 = sand.u32 %s35, 1
        %s483 = scalar_lea.sflag [#allocation6], %s482
        %s484 = sand.u32 %s83, 1
        %s485 = smul.addr %s484, 2
        %s486 = scalar_lea.vmem [#allocation5], %s485
        %p487 = pneg %p96
        %p488 = pneg %p93
        %s489 = sand.u32 %s35, 1
        %s490 = scalar_lea.sflag [#allocation6], %s489
        %s491 = sand.u32 %s109, 1
        %s492 = smul.addr %s491, 2
        %s493 = scalar_lea.vmem [#allocation7], %s492
        %p494 = pneg %p122
        %p495 = pneg %p119
        %p496 = pneg %p148
        %p497 = pneg %p145
        %p498 = pneg %p174
        %p499 = pneg %p171
        %p500 = pneg %p195
        %p501 = pneg %p192
        %p502 = pneg %p216
        %p503 = pneg %p213
        %p504 = pneg %p244
        %p505 = pneg %p241
        %s506 = sand.u32 %s231, 1
        %s507 = scalar_lea.sflag [#allocation4], %s506
        %s508 = sand.u32 %s231, 1
        %s509 = smul.addr %s508, 128
        %s510 = scalar_lea.vmem [#allocation13], %s509
        %p511 = pneg %p272
        %p512 = pneg %p269
        %s513 = sand.u32 %s35, 1
        %s514 = scalar_lea.sflag [#allocation15], %s513
        %s515 = sand.u32 %s259, 1
        %s516 = smul.addr %s515, 128
        %s517 = scalar_lea.vmem [#allocation14], %s516
        %p518 = pneg %p300
        %p519 = pneg %p297
        %s520 = sand.u32 %s35, 1
        %s521 = scalar_lea.sflag [#allocation15], %s520
        %s522 = sand.u32 %s287, 1
        %s523 = smul.addr %s522, 128
        %s524 = scalar_lea.vmem [#allocation16], %s523
        %s525 = smul.u32 16, %s40
        %s526 = smul.u32 16, %s40
        %s527 = smul.u32 16, %s40
        %s528 = smul.u32 16, %s40
        %s529 = smul.u32 16, %s40
        %s530 = smul.u32 16, %s40
        %v531 = vld [vmem:[%s440] sm:$0xff]
        %v532 = vld [vmem:[%s440 + $0x8] sm:$0xff]
        %v533 = vld [vmem:[%s440 + $0x10] sm:$0xff]
        %v534 = vld [vmem:[%s440 + $0x18] sm:$0xff]
        %v535 = vld [vmem:[%s440 + $0x20] sm:$0xff]
        %v536 = vld [vmem:[%s440 + $0x28] sm:$0xff]
        %v537 = vld [vmem:[%s440 + $0x30] sm:$0xff]
        %v538 = vld [vmem:[%s440 + $0x38] sm:$0xff]
        %v539 = vld [vmem:[%s440 + $0x40] sm:$0xff]
        %v540 = vld [vmem:[%s440 + $0x48] sm:$0xff]
        %v541 = vld [vmem:[%s440 + $0x50] sm:$0xff]
        %v542 = vld [vmem:[%s440 + $0x58] sm:$0xff]
        %v543 = vld [vmem:[%s440 + $0x60] sm:$0xff]
        %v544 = vld [vmem:[%s440 + $0x68] sm:$0xff]
        %v545 = vld [vmem:[%s440 + $0x70] sm:$0xff]
        %v546 = vld [vmem:[%s440 + $0x78] sm:$0xff]
        %v547 = vld [vmem:[%s440 + $0x80] sm:$0xff]
        %v548 = vld [vmem:[%s440 + $0x88] sm:$0xff]
        %v549 = vld [vmem:[%s440 + $0x90] sm:$0xff]
        %v550 = vld [vmem:[%s440 + $0x98] sm:$0xff]
        %v551 = vld [vmem:[%s440 + $0xa0] sm:$0xff]
        %v552 = vld [vmem:[%s440 + $0xa8] sm:$0xff]
        %v553 = vld [vmem:[%s440 + $0xb0] sm:$0xff]
        %v554 = vld [vmem:[%s440 + $0xb8] sm:$0xff]
        %v555 = vld [vmem:[%s440 + $0xc0] sm:$0xff]
        %v556 = vld [vmem:[%s440 + $0xc8] sm:$0xff]
        %v557 = vld [vmem:[%s440 + $0xd0] sm:$0xff]
        %v558 = vld [vmem:[%s440 + $0xd8] sm:$0xff]
        %v559 = vld [vmem:[%s440 + $0xe0] sm:$0xff]
        %v560 = vld [vmem:[%s440 + $0xe8] sm:$0xff]
        %v561 = vld [vmem:[%s440 + $0xf0] sm:$0xff]
        %v562 = vld [vmem:[%s440 + $0xf8] sm:$0xff]
        %v563 = vadd.f32 %v531, %v532
        %564 = vadd.xlane.f32.xlu0 %v563
        %v565 = vpop.xlane.xlu0 %564
        %v566 = vadd.f32 %v533, %v534
        %567 = vadd.xlane.f32.xlu0 %v566
        %v568 = vpop.xlane.xlu0 %567
        %v569 = vadd.f32 %v535, %v536
        %570 = vadd.xlane.f32.xlu0 %v569
        %v571 = vpop.xlane.xlu0 %570
        %v572 = vadd.f32 %v537, %v538
        %573 = vadd.xlane.f32.xlu0 %v572
        %v574 = vpop.xlane.xlu0 %573
        %v575 = vadd.f32 %v539, %v540
        %576 = vadd.xlane.f32.xlu0 %v575
        %v577 = vpop.xlane.xlu0 %576
        %v578 = vadd.f32 %v541, %v542
        %579 = vadd.xlane.f32.xlu0 %v578
        %v580 = vpop.xlane.xlu0 %579
        %v581 = vadd.f32 %v543, %v544
        %582 = vadd.xlane.f32.xlu0 %v581
        %v583 = vpop.xlane.xlu0 %582
        %v584 = vadd.f32 %v545, %v546
        %585 = vadd.xlane.f32.xlu0 %v584
        %v586 = vpop.xlane.xlu0 %585
        %v587 = vadd.f32 %v547, %v548
        %588 = vadd.xlane.f32.xlu0 %v587
        %v589 = vpop.xlane.xlu0 %588
        %v590 = vadd.f32 %v549, %v550
        %591 = vadd.xlane.f32.xlu0 %v590
        %v592 = vpop.xlane.xlu0 %591
        %v593 = vadd.f32 %v551, %v552
        %594 = vadd.xlane.f32.xlu0 %v593
        %v595 = vpop.xlane.xlu0 %594
        %v596 = vadd.f32 %v553, %v554
        %597 = vadd.xlane.f32.xlu0 %v596
        %v598 = vpop.xlane.xlu0 %597
        %v599 = vadd.f32 %v555, %v556
        %600 = vadd.xlane.f32.xlu0 %v599
        %v601 = vpop.xlane.xlu0 %600
        %v602 = vadd.f32 %v557, %v558
        %603 = vadd.xlane.f32.xlu0 %v602
        %v604 = vpop.xlane.xlu0 %603
        %v605 = vadd.f32 %v559, %v560
        %606 = vadd.xlane.f32.xlu0 %v605
        %v607 = vpop.xlane.xlu0 %606
        %v608 = vadd.f32 %v561, %v562
        %609 = vadd.xlane.f32.xlu0 %v608
        %v610 = vpop.xlane.xlu0 %609
        %v611 = vrcp.pop 256.0
        %v612 = vmul.f32 %v565, %v611
        %v613 = vmul.f32 %v568, %v611
        %v614 = vmul.f32 %v571, %v611
        %v615 = vmul.f32 %v574, %v611
        %v616 = vmul.f32 %v577, %v611
        %v617 = vmul.f32 %v580, %v611
        %v618 = vmul.f32 %v583, %v611
        %v619 = vmul.f32 %v586, %v611
        %v620 = vmul.f32 %v589, %v611
        %v621 = vmul.f32 %v592, %v611
        %v622 = vmul.f32 %v595, %v611
        %v623 = vmul.f32 %v598, %v611
        %v624 = vmul.f32 %v601, %v611
        %v625 = vmul.f32 %v604, %v611
        %v626 = vmul.f32 %v607, %v611
        %v627 = vmul.f32 %v610, %v611
        %v628 = vmul.f32 %v531, %v531
        %v629 = vmul.f32 %v532, %v532
        %v630 = vmul.f32 %v533, %v533
        %v631 = vmul.f32 %v534, %v534
        %v632 = vmul.f32 %v535, %v535
        %v633 = vmul.f32 %v536, %v536
        %v634 = vmul.f32 %v537, %v537
        %v635 = vmul.f32 %v538, %v538
        %v636 = vmul.f32 %v539, %v539
        %v637 = vmul.f32 %v540, %v540
        %v638 = vmul.f32 %v541, %v541
        %v639 = vmul.f32 %v542, %v542
        %v640 = vmul.f32 %v543, %v543
        %v641 = vmul.f32 %v544, %v544
        %v642 = vmul.f32 %v545, %v545
        %v643 = vmul.f32 %v546, %v546
        %v644 = vmul.f32 %v547, %v547
        %v645 = vmul.f32 %v548, %v548
        %v646 = vmul.f32 %v549, %v549
        %v647 = vmul.f32 %v550, %v550
        %v648 = vmul.f32 %v551, %v551
        %v649 = vmul.f32 %v552, %v552
        %v650 = vmul.f32 %v553, %v553
        %v651 = vmul.f32 %v554, %v554
        %v652 = vmul.f32 %v555, %v555
        %v653 = vmul.f32 %v556, %v556
        %v654 = vmul.f32 %v557, %v557
        %v655 = vmul.f32 %v558, %v558
        %v656 = vmul.f32 %v559, %v559
        %v657 = vmul.f32 %v560, %v560
        %v658 = vmul.f32 %v561, %v561
        %v659 = vmul.f32 %v562, %v562
        %v660 = vadd.f32 %v628, %v629
        %661 = vadd.xlane.f32.xlu0 %v660
        %v662 = vpop.xlane.xlu0 %661
        %v663 = vadd.f32 %v630, %v631
        %664 = vadd.xlane.f32.xlu0 %v663
        %v665 = vpop.xlane.xlu0 %664
        %v666 = vadd.f32 %v632, %v633
        %667 = vadd.xlane.f32.xlu0 %v666
        %v668 = vpop.xlane.xlu0 %667
        %v669 = vadd.f32 %v634, %v635
        %670 = vadd.xlane.f32.xlu0 %v669
        %v671 = vpop.xlane.xlu0 %670
        %v672 = vadd.f32 %v636, %v637
        %673 = vadd.xlane.f32.xlu0 %v672
        %v674 = vpop.xlane.xlu0 %673
        %v675 = vadd.f32 %v638, %v639
        %676 = vadd.xlane.f32.xlu0 %v675
        %v677 = vpop.xlane.xlu0 %676
        %v678 = vadd.f32 %v640, %v641
        %679 = vadd.xlane.f32.xlu0 %v678
        %v680 = vpop.xlane.xlu0 %679
        %v681 = vadd.f32 %v642, %v643
        %682 = vadd.xlane.f32.xlu0 %v681
        %v683 = vpop.xlane.xlu0 %682
        %v684 = vadd.f32 %v644, %v645
        %685 = vadd.xlane.f32.xlu0 %v684
        %v686 = vpop.xlane.xlu0 %685
        %v687 = vadd.f32 %v646, %v647
        %688 = vadd.xlane.f32.xlu0 %v687
        %v689 = vpop.xlane.xlu0 %688
        %v690 = vadd.f32 %v648, %v649
        %691 = vadd.xlane.f32.xlu0 %v690
        %v692 = vpop.xlane.xlu0 %691
        %v693 = vadd.f32 %v650, %v651
        %694 = vadd.xlane.f32.xlu0 %v693
        %v695 = vpop.xlane.xlu0 %694
        %v696 = vadd.f32 %v652, %v653
        %697 = vadd.xlane.f32.xlu0 %v696
        %v698 = vpop.xlane.xlu0 %697
        %v699 = vadd.f32 %v654, %v655
        %700 = vadd.xlane.f32.xlu0 %v699
        %v701 = vpop.xlane.xlu0 %700
        %v702 = vadd.f32 %v656, %v657
        %703 = vadd.xlane.f32.xlu0 %v702
        %v704 = vpop.xlane.xlu0 %703
        %v705 = vadd.f32 %v658, %v659
        %706 = vadd.xlane.f32.xlu0 %v705
        %v707 = vpop.xlane.xlu0 %706
        %v708 = vmul.f32 %v662, %v611
        %v709 = vmul.f32 %v665, %v611
        %v710 = vmul.f32 %v668, %v611
        %v711 = vmul.f32 %v671, %v611
        %v712 = vmul.f32 %v674, %v611
        %v713 = vmul.f32 %v677, %v611
        %v714 = vmul.f32 %v680, %v611
        %v715 = vmul.f32 %v683, %v611
        %v716 = vmul.f32 %v686, %v611
        %v717 = vmul.f32 %v689, %v611
        %v718 = vmul.f32 %v692, %v611
        %v719 = vmul.f32 %v695, %v611
        %v720 = vmul.f32 %v698, %v611
        %v721 = vmul.f32 %v701, %v611
        %v722 = vmul.f32 %v704, %v611
        %v723 = vmul.f32 %v707, %v611
        %v724 = vmul.f32 %v612, %v612
        %v725 = vmul.f32 %v613, %v613
        %v726 = vmul.f32 %v614, %v614
        %v727 = vmul.f32 %v615, %v615
        %v728 = vmul.f32 %v616, %v616
        %v729 = vmul.f32 %v617, %v617
        %v730 = vmul.f32 %v618, %v618
        %v731 = vmul.f32 %v619, %v619
        %v732 = vmul.f32 %v620, %v620
        %v733 = vmul.f32 %v621, %v621
        %v734 = vmul.f32 %v622, %v622
        %v735 = vmul.f32 %v623, %v623
        %v736 = vmul.f32 %v624, %v624
        %v737 = vmul.f32 %v625, %v625
        %v738 = vmul.f32 %v626, %v626
        %v739 = vmul.f32 %v627, %v627
        %v740 = vsub.f32 %v708, %v724
        %v741 = vsub.f32 %v709, %v725
        %v742 = vsub.f32 %v710, %v726
        %v743 = vsub.f32 %v711, %v727
        %v744 = vsub.f32 %v712, %v728
        %v745 = vsub.f32 %v713, %v729
        %v746 = vsub.f32 %v714, %v730
        %v747 = vsub.f32 %v715, %v731
        %v748 = vsub.f32 %v716, %v732
        %v749 = vsub.f32 %v717, %v733
        %v750 = vsub.f32 %v718, %v734
        %v751 = vsub.f32 %v719, %v735
        %v752 = vsub.f32 %v720, %v736
        %v753 = vsub.f32 %v721, %v737
        %v754 = vsub.f32 %v722, %v738
        %v755 = vsub.f32 %v723, %v739
        %v756 = vsub.f32 %v531, %v612
        %v757 = vsub.f32 %v532, %v612
        %v758 = vsub.f32 %v533, %v613
        %v759 = vsub.f32 %v534, %v613
        %v760 = vsub.f32 %v535, %v614
        %v761 = vsub.f32 %v536, %v614
        %v762 = vsub.f32 %v537, %v615
        %v763 = vsub.f32 %v538, %v615
        %v764 = vsub.f32 %v539, %v616
        %v765 = vsub.f32 %v540, %v616
        %v766 = vsub.f32 %v541, %v617
        %v767 = vsub.f32 %v542, %v617
        %v768 = vsub.f32 %v543, %v618
        %v769 = vsub.f32 %v544, %v618
        %v770 = vsub.f32 %v545, %v619
        %v771 = vsub.f32 %v546, %v619
        %v772 = vsub.f32 %v547, %v620
        %v773 = vsub.f32 %v548, %v620
        %v774 = vsub.f32 %v549, %v621
        %v775 = vsub.f32 %v550, %v621
        %v776 = vsub.f32 %v551, %v622
        %v777 = vsub.f32 %v552, %v622
        %v778 = vsub.f32 %v553, %v623
        %v779 = vsub.f32 %v554, %v623
        %v780 = vsub.f32 %v555, %v624
        %v781 = vsub.f32 %v556, %v624
        %v782 = vsub.f32 %v557, %v625
        %v783 = vsub.f32 %v558, %v625
        %v784 = vsub.f32 %v559, %v626
        %v785 = vsub.f32 %v560, %v626
        %v786 = vsub.f32 %v561, %v627
        %v787 = vsub.f32 %v562, %v627
        %v788 = vadd.f32 %v740, 1e-05
        %v789 = vadd.f32 %v741, 1e-05
        %v790 = vadd.f32 %v742, 1e-05
        %v791 = vadd.f32 %v743, 1e-05
        %v792 = vadd.f32 %v744, 1e-05
        %v793 = vadd.f32 %v745, 1e-05
        %v794 = vadd.f32 %v746, 1e-05
        %v795 = vadd.f32 %v747, 1e-05
        %v796 = vadd.f32 %v748, 1e-05
        %v797 = vadd.f32 %v749, 1e-05
        %v798 = vadd.f32 %v750, 1e-05
        %v799 = vadd.f32 %v751, 1e-05
        %v800 = vadd.f32 %v752, 1e-05
        %v801 = vadd.f32 %v753, 1e-05
        %v802 = vadd.f32 %v754, 1e-05
        %v803 = vadd.f32 %v755, 1e-05
        %v804 = vrsqrt.pop %v788
        %v805 = vrsqrt.pop %v789
        %v806 = vrsqrt.pop %v790
        %v807 = vrsqrt.pop %v791
        %v808 = vrsqrt.pop %v792
        %v809 = vrsqrt.pop %v793
        %v810 = vrsqrt.pop %v794
        %v811 = vrsqrt.pop %v795
        %v812 = vrsqrt.pop %v796
        %v813 = vrsqrt.pop %v797
        %v814 = vrsqrt.pop %v798
        %v815 = vrsqrt.pop %v799
        %v816 = vrsqrt.pop %v800
        %v817 = vrsqrt.pop %v801
        %v818 = vrsqrt.pop %v802
        %v819 = vrsqrt.pop %v803
        %v820 = vmul.f32 %v756, %v804
        %v821 = vmul.f32 %v757, %v804
        %v822 = vmul.f32 %v758, %v805
        %v823 = vmul.f32 %v759, %v805
        %v824 = vmul.f32 %v760, %v806
        %v825 = vmul.f32 %v761, %v806
        %v826 = vmul.f32 %v762, %v807
        %v827 = vmul.f32 %v763, %v807
        %v828 = vmul.f32 %v764, %v808
        %v829 = vmul.f32 %v765, %v808
        %v830 = vmul.f32 %v766, %v809
        %v831 = vmul.f32 %v767, %v809
        %v832 = vmul.f32 %v768, %v810
        %v833 = vmul.f32 %v769, %v810
        %v834 = vmul.f32 %v770, %v811
        %v835 = vmul.f32 %v771, %v811
        %v836 = vmul.f32 %v772, %v812
        %v837 = vmul.f32 %v773, %v812
        %v838 = vmul.f32 %v774, %v813
        %v839 = vmul.f32 %v775, %v813
        %v840 = vmul.f32 %v776, %v814
        %v841 = vmul.f32 %v777, %v814
        %v842 = vmul.f32 %v778, %v815
        %v843 = vmul.f32 %v779, %v815
        %v844 = vmul.f32 %v780, %v816
        %v845 = vmul.f32 %v781, %v816
        %v846 = vmul.f32 %v782, %v817
        %v847 = vmul.f32 %v783, %v817
        %v848 = vmul.f32 %v784, %v818
        %v849 = vmul.f32 %v785, %v818
        %v850 = vmul.f32 %v786, %v819
        %v851 = vmul.f32 %v787, %v819
        %v852 = vld [vmem:[%s458] sm:$0x3]
        %v853 = vadd.f32 %v852, 1.0
        %v855 = vlaneseq
        %v856 = vshrl.u32 %v855, 7
        %v857 = vsub.s32 0, %v856
        %v858 = vrot.slane %v853, %v857
        %v859 = vlaneseq
        %v860 = vshrl.u32 %v859, 7
        %v861 = vsub.s32 1, %v860
        %v862 = vrot.slane %v853, %v861
        %v865 = vmul.f32 %v820, %v858
        %v866 = vmul.f32 %v821, %v862
        %v867 = vmul.f32 %v822, %v858
        %v868 = vmul.f32 %v823, %v862
        %v869 = vmul.f32 %v824, %v858
        %v870 = vmul.f32 %v825, %v862
        %v871 = vmul.f32 %v826, %v858
        %v872 = vmul.f32 %v827, %v862
        %v873 = vmul.f32 %v828, %v858
        %v874 = vmul.f32 %v829, %v862
        %v875 = vmul.f32 %v830, %v858
        %v876 = vmul.f32 %v831, %v862
        %v877 = vmul.f32 %v832, %v858
        %v878 = vmul.f32 %v833, %v862
        %v879 = vmul.f32 %v834, %v858
        %v880 = vmul.f32 %v835, %v862
        %v881 = vmul.f32 %v836, %v858
        %v882 = vmul.f32 %v837, %v862
        %v883 = vmul.f32 %v838, %v858
        %v884 = vmul.f32 %v839, %v862
        %v885 = vmul.f32 %v840, %v858
        %v886 = vmul.f32 %v841, %v862
        %v887 = vmul.f32 %v842, %v858
        %v888 = vmul.f32 %v843, %v862
        %v889 = vmul.f32 %v844, %v858
        %v890 = vmul.f32 %v845, %v862
        %v891 = vmul.f32 %v846, %v858
        %v892 = vmul.f32 %v847, %v862
        %v893 = vmul.f32 %v848, %v858
        %v894 = vmul.f32 %v849, %v862
        %v895 = vmul.f32 %v850, %v858
        %v896 = vmul.f32 %v851, %v862
        %v897 = vld [vmem:[%s449] sm:$0x3]
        %v899 = vlaneseq
        %v900 = vshrl.u32 %v899, 7
        %v901 = vsub.s32 0, %v900
        %v902 = vrot.slane %v897, %v901
        %v903 = vlaneseq
        %v904 = vshrl.u32 %v903, 7
        %v905 = vsub.s32 1, %v904
        %v906 = vrot.slane %v897, %v905
        %v909 = vadd.f32 %v865, %v902
        %v910 = vadd.f32 %v866, %v906
        %v911 = vadd.f32 %v867, %v902
        %v912 = vadd.f32 %v868, %v906
        %v913 = vadd.f32 %v869, %v902
        %v914 = vadd.f32 %v870, %v906
        %v915 = vadd.f32 %v871, %v902
        %v916 = vadd.f32 %v872, %v906
        %v917 = vadd.f32 %v873, %v902
        %v918 = vadd.f32 %v874, %v906
        %v919 = vadd.f32 %v875, %v902
        %v920 = vadd.f32 %v876, %v906
        %v921 = vadd.f32 %v877, %v902
        %v922 = vadd.f32 %v878, %v906
        %v923 = vadd.f32 %v879, %v902
        %v924 = vadd.f32 %v880, %v906
        %v925 = vadd.f32 %v881, %v902
        %v926 = vadd.f32 %v882, %v906
        %v927 = vadd.f32 %v883, %v902
        %v928 = vadd.f32 %v884, %v906
        %v929 = vadd.f32 %v885, %v902
        %v930 = vadd.f32 %v886, %v906
        %v931 = vadd.f32 %v887, %v902
        %v932 = vadd.f32 %v888, %v906
        %v933 = vadd.f32 %v889, %v902
        %v934 = vadd.f32 %v890, %v906
        %v935 = vadd.f32 %v891, %v902
        %v936 = vadd.f32 %v892, %v906
        %v937 = vadd.f32 %v893, %v902
        %v938 = vadd.f32 %v894, %v906
        %v939 = vadd.f32 %v895, %v902
        %v940 = vadd.f32 %v896, %v906
        %v941 = vpack.c.bf16 %v911, %v909
        %v942 = vpack.c.bf16 %v912, %v910
        %v943 = vpack.c.bf16 %v915, %v913
        %v944 = vpack.c.bf16 %v916, %v914
        %v945 = vpack.c.bf16 %v919, %v917
        %v946 = vpack.c.bf16 %v920, %v918
        %v947 = vpack.c.bf16 %v923, %v921
        %v948 = vpack.c.bf16 %v924, %v922
        %v949 = vpack.c.bf16 %v927, %v925
        %v950 = vpack.c.bf16 %v928, %v926
        %v951 = vpack.c.bf16 %v931, %v929
        %v952 = vpack.c.bf16 %v932, %v930
        %v953 = vpack.c.bf16 %v935, %v933
        %v954 = vpack.c.bf16 %v936, %v934
        %v955 = vpack.c.bf16 %v939, %v937
        %v956 = vpack.c.bf16 %v940, %v938
        %v957 = vld [vmem:[#allocation11] sm:$0xff]
        %v958 = vld [vmem:[#allocation11 + $0x8] sm:$0xff]
        %v959 = vld [vmem:[#allocation11 + $0x10] sm:$0xff]
        %v960 = vld [vmem:[#allocation11 + $0x18] sm:$0xff]
        %v961 = vld [vmem:[#allocation11 + $0x20] sm:$0xff]
        %v962 = vld [vmem:[#allocation11 + $0x28] sm:$0xff]
        %v963 = vld [vmem:[#allocation11 + $0x30] sm:$0xff]
        %v964 = vld [vmem:[#allocation11 + $0x38] sm:$0xff]
        %v965 = vld [vmem:[#allocation11 + $0x40] sm:$0xff]
        %v966 = vld [vmem:[#allocation11 + $0x48] sm:$0xff]
        %v967 = vld [vmem:[#allocation11 + $0x50] sm:$0xff]
        %v968 = vld [vmem:[#allocation11 + $0x58] sm:$0xff]
        %v969 = vld [vmem:[#allocation11 + $0x60] sm:$0xff]
        %v970 = vld [vmem:[#allocation11 + $0x68] sm:$0xff]
        %v971 = vld [vmem:[#allocation11 + $0x70] sm:$0xff]
        %v972 = vld [vmem:[#allocation11 + $0x78] sm:$0xff]
        %v973 = vld [vmem:[#allocation11 + $0x80] sm:$0xff]
        %v974 = vld [vmem:[#allocation11 + $0x88] sm:$0xff]
        %v975 = vld [vmem:[#allocation11 + $0x90] sm:$0xff]
        %v976 = vld [vmem:[#allocation11 + $0x98] sm:$0xff]
        %v977 = vld [vmem:[#allocation11 + $0xa0] sm:$0xff]
        %v978 = vld [vmem:[#allocation11 + $0xa8] sm:$0xff]
        %v979 = vld [vmem:[#allocation11 + $0xb0] sm:$0xff]
        %v980 = vld [vmem:[#allocation11 + $0xb8] sm:$0xff]
        %v981 = vld [vmem:[#allocation11 + $0xc0] sm:$0xff]
        %v982 = vld [vmem:[#allocation11 + $0xc8] sm:$0xff]
        %v983 = vld [vmem:[#allocation11 + $0xd0] sm:$0xff]
        %v984 = vld [vmem:[#allocation11 + $0xd8] sm:$0xff]
        %v985 = vld [vmem:[#allocation11 + $0xe0] sm:$0xff]
        %v986 = vld [vmem:[#allocation11 + $0xe8] sm:$0xff]
        %v987 = vld [vmem:[#allocation11 + $0xf0] sm:$0xff]
        %v988 = vld [vmem:[#allocation11 + $0xf8] sm:$0xff]
        %v989 = vld [vmem:[#allocation11 + $0x100] sm:$0xff]
        %v990 = vld [vmem:[#allocation11 + $0x108] sm:$0xff]
        %v991 = vld [vmem:[#allocation11 + $0x110] sm:$0xff]
        %v992 = vld [vmem:[#allocation11 + $0x118] sm:$0xff]
        %v993 = vld [vmem:[#allocation11 + $0x120] sm:$0xff]
        %v994 = vld [vmem:[#allocation11 + $0x128] sm:$0xff]
        %v995 = vld [vmem:[#allocation11 + $0x130] sm:$0xff]
        %v996 = vld [vmem:[#allocation11 + $0x138] sm:$0xff]
        %v997 = vld [vmem:[#allocation11 + $0x140] sm:$0xff]
        %v998 = vld [vmem:[#allocation11 + $0x148] sm:$0xff]
        %v999 = vld [vmem:[#allocation11 + $0x150] sm:$0xff]
        %v1000 = vld [vmem:[#allocation11 + $0x158] sm:$0xff]
        %v1001 = vld [vmem:[#allocation11 + $0x160] sm:$0xff]
        %v1002 = vld [vmem:[#allocation11 + $0x168] sm:$0xff]
        %v1003 = vld [vmem:[#allocation11 + $0x170] sm:$0xff]
        %v1004 = vld [vmem:[#allocation11 + $0x178] sm:$0xff]
        %v1005 = vld [vmem:[#allocation11 + $0x180] sm:$0xff]
        %v1006 = vld [vmem:[#allocation11 + $0x188] sm:$0xff]
        %v1007 = vld [vmem:[#allocation11 + $0x190] sm:$0xff]
        %v1008 = vld [vmem:[#allocation11 + $0x198] sm:$0xff]
        %v1009 = vld [vmem:[#allocation11 + $0x1a0] sm:$0xff]
        %v1010 = vld [vmem:[#allocation11 + $0x1a8] sm:$0xff]
        %v1011 = vld [vmem:[#allocation11 + $0x1b0] sm:$0xff]
        %v1012 = vld [vmem:[#allocation11 + $0x1b8] sm:$0xff]
        %v1013 = vld [vmem:[#allocation11 + $0x1c0] sm:$0xff]
        %v1014 = vld [vmem:[#allocation11 + $0x1c8] sm:$0xff]
        %v1015 = vld [vmem:[#allocation11 + $0x1d0] sm:$0xff]
        %v1016 = vld [vmem:[#allocation11 + $0x1d8] sm:$0xff]
        %v1017 = vld [vmem:[#allocation11 + $0x1e0] sm:$0xff]
        %v1018 = vld [vmem:[#allocation11 + $0x1e8] sm:$0xff]
        %v1019 = vld [vmem:[#allocation11 + $0x1f0] sm:$0xff]
        %v1020 = vld [vmem:[#allocation11 + $0x1f8] sm:$0xff]
        %v1021 = vld [vmem:[#allocation11 + $0x200] sm:$0xff]
        %v1022 = vld [vmem:[#allocation11 + $0x208] sm:$0xff]
        %v1023 = vld [vmem:[#allocation11 + $0x210] sm:$0xff]
        %v1024 = vld [vmem:[#allocation11 + $0x218] sm:$0xff]
        %v1025 = vld [vmem:[#allocation11 + $0x220] sm:$0xff]
        %v1026 = vld [vmem:[#allocation11 + $0x228] sm:$0xff]
        %v1027 = vld [vmem:[#allocation11 + $0x230] sm:$0xff]
        %v1028 = vld [vmem:[#allocation11 + $0x238] sm:$0xff]
        %v1029 = vld [vmem:[#allocation11 + $0x240] sm:$0xff]
        %v1030 = vld [vmem:[#allocation11 + $0x248] sm:$0xff]
        %v1031 = vld [vmem:[#allocation11 + $0x250] sm:$0xff]
        %v1032 = vld [vmem:[#allocation11 + $0x258] sm:$0xff]
        %v1033 = vld [vmem:[#allocation11 + $0x260] sm:$0xff]
        %v1034 = vld [vmem:[#allocation11 + $0x268] sm:$0xff]
        %v1035 = vld [vmem:[#allocation11 + $0x270] sm:$0xff]
        %v1036 = vld [vmem:[#allocation11 + $0x278] sm:$0xff]
        %v1037 = vld [vmem:[#allocation11 + $0x280] sm:$0xff]
        %v1038 = vld [vmem:[#allocation11 + $0x288] sm:$0xff]
        %v1039 = vld [vmem:[#allocation11 + $0x290] sm:$0xff]
        %v1040 = vld [vmem:[#allocation11 + $0x298] sm:$0xff]
        %v1041 = vld [vmem:[#allocation11 + $0x2a0] sm:$0xff]
        %v1042 = vld [vmem:[#allocation11 + $0x2a8] sm:$0xff]
        %v1043 = vld [vmem:[#allocation11 + $0x2b0] sm:$0xff]
        %v1044 = vld [vmem:[#allocation11 + $0x2b8] sm:$0xff]
        %v1045 = vld [vmem:[#allocation11 + $0x2c0] sm:$0xff]
        %v1046 = vld [vmem:[#allocation11 + $0x2c8] sm:$0xff]
        %v1047 = vld [vmem:[#allocation11 + $0x2d0] sm:$0xff]
        %v1048 = vld [vmem:[#allocation11 + $0x2d8] sm:$0xff]
        %v1049 = vld [vmem:[#allocation11 + $0x2e0] sm:$0xff]
        %v1050 = vld [vmem:[#allocation11 + $0x2e8] sm:$0xff]
        %v1051 = vld [vmem:[#allocation11 + $0x2f0] sm:$0xff]
        %v1052 = vld [vmem:[#allocation11 + $0x2f8] sm:$0xff]
        %v1053 = vld [vmem:[%s6] sm:$0x3f]
        %v1055 = vlaneseq
        %v1056 = vshrl.u32 %v1055, 7
        %v1057 = vsub.s32 0, %v1056
        %v1058 = vrot.slane %v1053, %v1057
        %v1059 = vlaneseq
        %v1060 = vshrl.u32 %v1059, 7
        %v1061 = vsub.s32 1, %v1060
        %v1062 = vrot.slane %v1053, %v1061
        %v1063 = vlaneseq
        %v1064 = vshrl.u32 %v1063, 7
        %v1065 = vsub.s32 2, %v1064
        %v1066 = vrot.slane %v1053, %v1065
        %v1067 = vlaneseq
        %v1068 = vshrl.u32 %v1067, 7
        %v1069 = vsub.s32 3, %v1068
        %v1070 = vrot.slane %v1053, %v1069
        %v1071 = vlaneseq
        %v1072 = vshrl.u32 %v1071, 7
        %v1073 = vsub.s32 4, %v1072
        %v1074 = vrot.slane %v1053, %v1073
        %v1075 = vlaneseq
        %v1076 = vshrl.u32 %v1075, 7
        %v1077 = vsub.s32 5, %v1076
        %v1078 = vrot.slane %v1053, %v1077
        %v1181 = vunpack.c.l.b16 %v957
        %v1182 = vunpack.c.h.b16 %v957
        %v1183 = vunpack.c.l.b16 %v958
        %v1184 = vunpack.c.h.b16 %v958
        %v1185 = vunpack.c.l.b16 %v959
        %v1186 = vunpack.c.h.b16 %v959
        %v1187 = vunpack.c.l.b16 %v960
        %v1188 = vunpack.c.h.b16 %v960
        %v1189 = vunpack.c.l.b16 %v961
        %v1190 = vunpack.c.h.b16 %v961
        %v1191 = vunpack.c.l.b16 %v962
        %v1192 = vunpack.c.h.b16 %v962
        %v1193 = vunpack.c.l.b16 %v963
        %v1194 = vunpack.c.h.b16 %v963
        %v1195 = vunpack.c.l.b16 %v964
        %v1196 = vunpack.c.h.b16 %v964
        %v1197 = vunpack.c.l.b16 %v965
        %v1198 = vunpack.c.h.b16 %v965
        %v1199 = vunpack.c.l.b16 %v966
        %v1200 = vunpack.c.h.b16 %v966
        %v1201 = vunpack.c.l.b16 %v967
        %v1202 = vunpack.c.h.b16 %v967
        %v1203 = vunpack.c.l.b16 %v968
        %v1204 = vunpack.c.h.b16 %v968
        %v1205 = vunpack.c.l.b16 %v969
        %v1206 = vunpack.c.h.b16 %v969
        %v1207 = vunpack.c.l.b16 %v970
        %v1208 = vunpack.c.h.b16 %v970
        %v1209 = vunpack.c.l.b16 %v971
        %v1210 = vunpack.c.h.b16 %v971
        %v1211 = vunpack.c.l.b16 %v972
        %v1212 = vunpack.c.h.b16 %v972
        %v1213 = vunpack.c.l.b16 %v973
        %v1214 = vunpack.c.h.b16 %v973
        %v1215 = vunpack.c.l.b16 %v974
        %v1216 = vunpack.c.h.b16 %v974
        %v1217 = vunpack.c.l.b16 %v975
        %v1218 = vunpack.c.h.b16 %v975
        %v1219 = vunpack.c.l.b16 %v976
        %v1220 = vunpack.c.h.b16 %v976
        %v1221 = vunpack.c.l.b16 %v977
        %v1222 = vunpack.c.h.b16 %v977
        %v1223 = vunpack.c.l.b16 %v978
        %v1224 = vunpack.c.h.b16 %v978
        %v1225 = vunpack.c.l.b16 %v979
        %v1226 = vunpack.c.h.b16 %v979
        %v1227 = vunpack.c.l.b16 %v980
        %v1228 = vunpack.c.h.b16 %v980
        %v1229 = vunpack.c.l.b16 %v981
        %v1230 = vunpack.c.h.b16 %v981
        %v1231 = vunpack.c.l.b16 %v982
        %v1232 = vunpack.c.h.b16 %v982
        %v1233 = vunpack.c.l.b16 %v983
        %v1234 = vunpack.c.h.b16 %v983
        %v1235 = vunpack.c.l.b16 %v984
        %v1236 = vunpack.c.h.b16 %v984
        %v1237 = vunpack.c.l.b16 %v985
        %v1238 = vunpack.c.h.b16 %v985
        %v1239 = vunpack.c.l.b16 %v986
        %v1240 = vunpack.c.h.b16 %v986
        %v1241 = vunpack.c.l.b16 %v987
        %v1242 = vunpack.c.h.b16 %v987
        %v1243 = vunpack.c.l.b16 %v988
        %v1244 = vunpack.c.h.b16 %v988
        %v1245 = vunpack.c.l.b16 %v989
        %v1246 = vunpack.c.h.b16 %v989
        %v1247 = vunpack.c.l.b16 %v990
        %v1248 = vunpack.c.h.b16 %v990
        %v1249 = vunpack.c.l.b16 %v991
        %v1250 = vunpack.c.h.b16 %v991
        %v1251 = vunpack.c.l.b16 %v992
        %v1252 = vunpack.c.h.b16 %v992
        %v1253 = vunpack.c.l.b16 %v993
        %v1254 = vunpack.c.h.b16 %v993
        %v1255 = vunpack.c.l.b16 %v994
        %v1256 = vunpack.c.h.b16 %v994
        %v1257 = vunpack.c.l.b16 %v995
        %v1258 = vunpack.c.h.b16 %v995
        %v1259 = vunpack.c.l.b16 %v996
        %v1260 = vunpack.c.h.b16 %v996
        %v1261 = vunpack.c.l.b16 %v997
        %v1262 = vunpack.c.h.b16 %v997
        %v1263 = vunpack.c.l.b16 %v998
        %v1264 = vunpack.c.h.b16 %v998
        %v1265 = vunpack.c.l.b16 %v999
        %v1266 = vunpack.c.h.b16 %v999
        %v1267 = vunpack.c.l.b16 %v1000
        %v1268 = vunpack.c.h.b16 %v1000
        %v1269 = vunpack.c.l.b16 %v1001
        %v1270 = vunpack.c.h.b16 %v1001
        %v1271 = vunpack.c.l.b16 %v1002
        %v1272 = vunpack.c.h.b16 %v1002
        %v1273 = vunpack.c.l.b16 %v1003
        %v1274 = vunpack.c.h.b16 %v1003
        %v1275 = vunpack.c.l.b16 %v1004
        %v1276 = vunpack.c.h.b16 %v1004
        %v1277 = vunpack.c.l.b16 %v1005
        %v1278 = vunpack.c.h.b16 %v1005
        %v1279 = vunpack.c.l.b16 %v1006
        %v1280 = vunpack.c.h.b16 %v1006
        %v1281 = vunpack.c.l.b16 %v1007
        %v1282 = vunpack.c.h.b16 %v1007
        %v1283 = vunpack.c.l.b16 %v1008
        %v1284 = vunpack.c.h.b16 %v1008
        %v1285 = vunpack.c.l.b16 %v1009
        %v1286 = vunpack.c.h.b16 %v1009
        %v1287 = vunpack.c.l.b16 %v1010
        %v1288 = vunpack.c.h.b16 %v1010
        %v1289 = vunpack.c.l.b16 %v1011
        %v1290 = vunpack.c.h.b16 %v1011
        %v1291 = vunpack.c.l.b16 %v1012
        %v1292 = vunpack.c.h.b16 %v1012
        %v1293 = vunpack.c.l.b16 %v1013
        %v1294 = vunpack.c.h.b16 %v1013
        %v1295 = vunpack.c.l.b16 %v1014
        %v1296 = vunpack.c.h.b16 %v1014
        %v1297 = vunpack.c.l.b16 %v1015
        %v1298 = vunpack.c.h.b16 %v1015
        %v1299 = vunpack.c.l.b16 %v1016
        %v1300 = vunpack.c.h.b16 %v1016
        %v1301 = vunpack.c.l.b16 %v1017
        %v1302 = vunpack.c.h.b16 %v1017
        %v1303 = vunpack.c.l.b16 %v1018
        %v1304 = vunpack.c.h.b16 %v1018
        %v1305 = vunpack.c.l.b16 %v1019
        %v1306 = vunpack.c.h.b16 %v1019
        %v1307 = vunpack.c.l.b16 %v1020
        %v1308 = vunpack.c.h.b16 %v1020
        %v1309 = vunpack.c.l.b16 %v1021
        %v1310 = vunpack.c.h.b16 %v1021
        %v1311 = vunpack.c.l.b16 %v1022
        %v1312 = vunpack.c.h.b16 %v1022
        %v1313 = vunpack.c.l.b16 %v1023
        %v1314 = vunpack.c.h.b16 %v1023
        %v1315 = vunpack.c.l.b16 %v1024
        %v1316 = vunpack.c.h.b16 %v1024
        %v1317 = vunpack.c.l.b16 %v1025
        %v1318 = vunpack.c.h.b16 %v1025
        %v1319 = vunpack.c.l.b16 %v1026
        %v1320 = vunpack.c.h.b16 %v1026
        %v1321 = vunpack.c.l.b16 %v1027
        %v1322 = vunpack.c.h.b16 %v1027
        %v1323 = vunpack.c.l.b16 %v1028
        %v1324 = vunpack.c.h.b16 %v1028
        %v1325 = vunpack.c.l.b16 %v1029
        %v1326 = vunpack.c.h.b16 %v1029
        %v1327 = vunpack.c.l.b16 %v1030
        %v1328 = vunpack.c.h.b16 %v1030
        %v1329 = vunpack.c.l.b16 %v1031
        %v1330 = vunpack.c.h.b16 %v1031
        %v1331 = vunpack.c.l.b16 %v1032
        %v1332 = vunpack.c.h.b16 %v1032
        %v1333 = vunpack.c.l.b16 %v1033
        %v1334 = vunpack.c.h.b16 %v1033
        %v1335 = vunpack.c.l.b16 %v1034
        %v1336 = vunpack.c.h.b16 %v1034
        %v1337 = vunpack.c.l.b16 %v1035
        %v1338 = vunpack.c.h.b16 %v1035
        %v1339 = vunpack.c.l.b16 %v1036
        %v1340 = vunpack.c.h.b16 %v1036
        %v1341 = vunpack.c.l.b16 %v1037
        %v1342 = vunpack.c.h.b16 %v1037
        %v1343 = vunpack.c.l.b16 %v1038
        %v1344 = vunpack.c.h.b16 %v1038
        %v1345 = vunpack.c.l.b16 %v1039
        %v1346 = vunpack.c.h.b16 %v1039
        %v1347 = vunpack.c.l.b16 %v1040
        %v1348 = vunpack.c.h.b16 %v1040
        %v1349 = vunpack.c.l.b16 %v1041
        %v1350 = vunpack.c.h.b16 %v1041
        %v1351 = vunpack.c.l.b16 %v1042
        %v1352 = vunpack.c.h.b16 %v1042
        %v1353 = vunpack.c.l.b16 %v1043
        %v1354 = vunpack.c.h.b16 %v1043
        %v1355 = vunpack.c.l.b16 %v1044
        %v1356 = vunpack.c.h.b16 %v1044
        %v1357 = vunpack.c.l.b16 %v1045
        %v1358 = vunpack.c.h.b16 %v1045
        %v1359 = vunpack.c.l.b16 %v1046
        %v1360 = vunpack.c.h.b16 %v1046
        %v1361 = vunpack.c.l.b16 %v1047
        %v1362 = vunpack.c.h.b16 %v1047
        %v1363 = vunpack.c.l.b16 %v1048
        %v1364 = vunpack.c.h.b16 %v1048
        %v1365 = vunpack.c.l.b16 %v1049
        %v1366 = vunpack.c.h.b16 %v1049
        %v1367 = vunpack.c.l.b16 %v1050
        %v1368 = vunpack.c.h.b16 %v1050
        %v1369 = vunpack.c.l.b16 %v1051
        %v1370 = vunpack.c.h.b16 %v1051
        %v1371 = vunpack.c.l.b16 %v1052
        %v1372 = vunpack.c.h.b16 %v1052
        %v1373 = vpack.c.b16 %v1187, %v1181
        %v1374 = vpack.c.b16 %v1188, %v1182
        %v1375 = vpack.c.b16 %v1189, %v1183
        %v1376 = vpack.c.b16 %v1190, %v1184
        %v1377 = vpack.c.b16 %v1191, %v1185
        %v1378 = vpack.c.b16 %v1192, %v1186
        %v1379 = vpack.c.b16 %v1199, %v1193
        %v1380 = vpack.c.b16 %v1200, %v1194
        %v1381 = vpack.c.b16 %v1201, %v1195
        %v1382 = vpack.c.b16 %v1202, %v1196
        %v1383 = vpack.c.b16 %v1203, %v1197
        %v1384 = vpack.c.b16 %v1204, %v1198
        %v1385 = vpack.c.b16 %v1211, %v1205
        %v1386 = vpack.c.b16 %v1212, %v1206
        %v1387 = vpack.c.b16 %v1213, %v1207
        %v1388 = vpack.c.b16 %v1214, %v1208
        %v1389 = vpack.c.b16 %v1215, %v1209
        %v1390 = vpack.c.b16 %v1216, %v1210
        %v1391 = vpack.c.b16 %v1223, %v1217
        %v1392 = vpack.c.b16 %v1224, %v1218
        %v1393 = vpack.c.b16 %v1225, %v1219
        %v1394 = vpack.c.b16 %v1226, %v1220
        %v1395 = vpack.c.b16 %v1227, %v1221
        %v1396 = vpack.c.b16 %v1228, %v1222
        %v1397 = vpack.c.b16 %v1235, %v1229
        %v1398 = vpack.c.b16 %v1236, %v1230
        %v1399 = vpack.c.b16 %v1237, %v1231
        %v1400 = vpack.c.b16 %v1238, %v1232
        %v1401 = vpack.c.b16 %v1239, %v1233
        %v1402 = vpack.c.b16 %v1240, %v1234
        %v1403 = vpack.c.b16 %v1247, %v1241
        %v1404 = vpack.c.b16 %v1248, %v1242
        %v1405 = vpack.c.b16 %v1249, %v1243
        %v1406 = vpack.c.b16 %v1250, %v1244
        %v1407 = vpack.c.b16 %v1251, %v1245
        %v1408 = vpack.c.b16 %v1252, %v1246
        %v1409 = vpack.c.b16 %v1259, %v1253
        %v1410 = vpack.c.b16 %v1260, %v1254
        %v1411 = vpack.c.b16 %v1261, %v1255
        %v1412 = vpack.c.b16 %v1262, %v1256
        %v1413 = vpack.c.b16 %v1263, %v1257
        %v1414 = vpack.c.b16 %v1264, %v1258
        %v1415 = vpack.c.b16 %v1271, %v1265
        %v1416 = vpack.c.b16 %v1272, %v1266
        %v1417 = vpack.c.b16 %v1273, %v1267
        %v1418 = vpack.c.b16 %v1274, %v1268
        %v1419 = vpack.c.b16 %v1275, %v1269
        %v1420 = vpack.c.b16 %v1276, %v1270
        %v1421 = vpack.c.b16 %v1283, %v1277
        %v1422 = vpack.c.b16 %v1284, %v1278
        %v1423 = vpack.c.b16 %v1285, %v1279
        %v1424 = vpack.c.b16 %v1286, %v1280
        %v1425 = vpack.c.b16 %v1287, %v1281
        %v1426 = vpack.c.b16 %v1288, %v1282
        %v1427 = vpack.c.b16 %v1295, %v1289
        %v1428 = vpack.c.b16 %v1296, %v1290
        %v1429 = vpack.c.b16 %v1297, %v1291
        %v1430 = vpack.c.b16 %v1298, %v1292
        %v1431 = vpack.c.b16 %v1299, %v1293
        %v1432 = vpack.c.b16 %v1300, %v1294
        %v1433 = vpack.c.b16 %v1307, %v1301
        %v1434 = vpack.c.b16 %v1308, %v1302
        %v1435 = vpack.c.b16 %v1309, %v1303
        %v1436 = vpack.c.b16 %v1310, %v1304
        %v1437 = vpack.c.b16 %v1311, %v1305
        %v1438 = vpack.c.b16 %v1312, %v1306
        %v1439 = vpack.c.b16 %v1319, %v1313
        %v1440 = vpack.c.b16 %v1320, %v1314
        %v1441 = vpack.c.b16 %v1321, %v1315
        %v1442 = vpack.c.b16 %v1322, %v1316
        %v1443 = vpack.c.b16 %v1323, %v1317
        %v1444 = vpack.c.b16 %v1324, %v1318
        %v1445 = vpack.c.b16 %v1331, %v1325
        %v1446 = vpack.c.b16 %v1332, %v1326
        %v1447 = vpack.c.b16 %v1333, %v1327
        %v1448 = vpack.c.b16 %v1334, %v1328
        %v1449 = vpack.c.b16 %v1335, %v1329
        %v1450 = vpack.c.b16 %v1336, %v1330
        %v1451 = vpack.c.b16 %v1343, %v1337
        %v1452 = vpack.c.b16 %v1344, %v1338
        %v1453 = vpack.c.b16 %v1345, %v1339
        %v1454 = vpack.c.b16 %v1346, %v1340
        %v1455 = vpack.c.b16 %v1347, %v1341
        %v1456 = vpack.c.b16 %v1348, %v1342
        %v1457 = vpack.c.b16 %v1355, %v1349
        %v1458 = vpack.c.b16 %v1356, %v1350
        %v1459 = vpack.c.b16 %v1357, %v1351
        %v1460 = vpack.c.b16 %v1358, %v1352
        %v1461 = vpack.c.b16 %v1359, %v1353
        %v1462 = vpack.c.b16 %v1360, %v1354
        %v1463 = vpack.c.b16 %v1367, %v1361
        %v1464 = vpack.c.b16 %v1368, %v1362
        %v1465 = vpack.c.b16 %v1369, %v1363
        %v1466 = vpack.c.b16 %v1370, %v1364
        %v1467 = vpack.c.b16 %v1371, %v1365
        %v1468 = vpack.c.b16 %v1372, %v1366
        %1565 = vmatprep.subr.bf16.mxu0 %v1416
        %1566 = vmatpush1.bf16.msra.mxu0 %v1415
        %1567 = vmatprep.subr.bf16.mxu0 %v1410
        %1568 = vmatpush1.bf16.msra.mxu0 %v1409
        %1569 = vmatprep.subr.bf16.mxu0 %v1404
        %1570 = vmatpush1.bf16.msra.mxu0 %v1403
        %1571 = vmatprep.subr.bf16.mxu0 %v1398
        %1572 = vmatpush1.bf16.msra.mxu0 %v1397
        %1573 = vmatprep.subr.bf16.mxu0 %v1392
        %1574 = vmatpush1.bf16.msra.mxu0 %v1391
        %1575 = vmatprep.subr.bf16.mxu0 %v1386
        %1576 = vmatpush1.bf16.msra.mxu0 %v1385
        %1577 = vmatprep.subr.bf16.mxu0 %v1380
        %1578 = vmatpush1.bf16.msra.mxu0 %v1379
        %1579 = vmatprep.subr.bf16.mxu0 %v1374
        %1580 = vmatpush1.bf16.msra.mxu0 %v1373
        %1581 = vmatprep.subr.bf16.mxu0 %v1464
        %1582 = vmatpush2.bf16.msra.mxu0 %v1463
        %1583 = vmatprep.subr.bf16.mxu0 %v1458
        %1584 = vmatpush2.bf16.msra.mxu0 %v1457
        %1585 = vmatprep.subr.bf16.mxu0 %v1452
        %1586 = vmatpush2.bf16.msra.mxu0 %v1451
        %1587 = vmatprep.subr.bf16.mxu0 %v1446
        %1588 = vmatpush2.bf16.msra.mxu0 %v1445
        %1589 = vmatprep.subr.bf16.mxu0 %v1440
        %1590 = vmatpush2.bf16.msra.mxu0 %v1439
        %1591 = vmatprep.subr.bf16.mxu0 %v1434
        %1592 = vmatpush2.bf16.msra.mxu0 %v1433
        %1593 = vmatprep.subr.bf16.mxu0 %v1428
        %1594 = vmatpush2.bf16.msra.mxu0 %v1427
        %1595 = vmatprep.subr.bf16.mxu0 %v1422
        %1596 = vmatpush2.bf16.msra.mxu0 %v1421
        %1597 = vmatprep.mubr.bf16.mxu0 %v942
        %1598 = vmatmul.mubr.bf16.gmra.mxu0 %v941
        %v1599 = vpop.f32.mrf.mxu0
        %v1600 = vadd.f32 %v1058, %v1599
        %v1601 = vpop.f32.mrf.mxu0
        %v1602 = vadd.f32 %v1062, %v1601
        %v1603 = vpop.f32.mrf.mxu0
        %v1604 = vadd.f32 %v1058, %v1603
        %v1605 = vpop.f32.mrf.mxu0
        %v1606 = vadd.f32 %v1062, %v1605
        %1607 = vmatprep.mubr.bf16.mxu0 %v944
        %1608 = vmatmul.mubr.bf16.gmra.mxu0 %v943
        %v1609 = vpop.f32.mrf.mxu0
        %v1610 = vadd.f32 %v1058, %v1609
        %v1611 = vpop.f32.mrf.mxu0
        %v1612 = vadd.f32 %v1062, %v1611
        %v1613 = vpop.f32.mrf.mxu0
        %v1614 = vadd.f32 %v1058, %v1613
        %v1615 = vpop.f32.mrf.mxu0
        %v1616 = vadd.f32 %v1062, %v1615
        %1617 = vmatprep.mubr.bf16.mxu0 %v946
        %1618 = vmatmul.mubr.bf16.gmra.mxu0 %v945
        %v1619 = vpop.f32.mrf.mxu0
        %v1620 = vadd.f32 %v1058, %v1619
        %v1621 = vpop.f32.mrf.mxu0
        %v1622 = vadd.f32 %v1062, %v1621
        %v1623 = vpop.f32.mrf.mxu0
        %v1624 = vadd.f32 %v1058, %v1623
        %v1625 = vpop.f32.mrf.mxu0
        %v1626 = vadd.f32 %v1062, %v1625
        %1627 = vmatprep.mubr.bf16.mxu0 %v948
        %1628 = vmatmul.mubr.bf16.gmra.mxu0 %v947
        %v1629 = vpop.f32.mrf.mxu0
        %v1630 = vadd.f32 %v1058, %v1629
        %v1631 = vpop.f32.mrf.mxu0
        %v1632 = vadd.f32 %v1062, %v1631
        %v1633 = vpop.f32.mrf.mxu0
        %v1634 = vadd.f32 %v1058, %v1633
        %v1635 = vpop.f32.mrf.mxu0
        %v1636 = vadd.f32 %v1062, %v1635
        %1637 = vmatprep.mubr.bf16.mxu0 %v950
        %1638 = vmatmul.mubr.bf16.gmra.mxu0 %v949
        %v1639 = vpop.f32.mrf.mxu0
        %v1640 = vadd.f32 %v1058, %v1639
        %v1641 = vpop.f32.mrf.mxu0
        %v1642 = vadd.f32 %v1062, %v1641
        %v1643 = vpop.f32.mrf.mxu0
        %v1644 = vadd.f32 %v1058, %v1643
        %v1645 = vpop.f32.mrf.mxu0
        %v1646 = vadd.f32 %v1062, %v1645
        %1647 = vmatprep.mubr.bf16.mxu0 %v952
        %1648 = vmatmul.mubr.bf16.gmra.mxu0 %v951
        %v1649 = vpop.f32.mrf.mxu0
        %v1650 = vadd.f32 %v1058, %v1649
        %v1651 = vpop.f32.mrf.mxu0
        %v1652 = vadd.f32 %v1062, %v1651
        %v1653 = vpop.f32.mrf.mxu0
        %v1654 = vadd.f32 %v1058, %v1653
        %v1655 = vpop.f32.mrf.mxu0
        %v1656 = vadd.f32 %v1062, %v1655
        %1657 = vmatprep.mubr.bf16.mxu0 %v954
        %1658 = vmatmul.mubr.bf16.gmra.mxu0 %v953
        %v1659 = vpop.f32.mrf.mxu0
        %v1660 = vadd.f32 %v1058, %v1659
        %v1661 = vpop.f32.mrf.mxu0
        %v1662 = vadd.f32 %v1062, %v1661
        %v1663 = vpop.f32.mrf.mxu0
        %v1664 = vadd.f32 %v1058, %v1663
        %v1665 = vpop.f32.mrf.mxu0
        %v1666 = vadd.f32 %v1062, %v1665
        %1667 = vmatprep.mubr.bf16.mxu0 %v956
        %1668 = vmatmul.mubr.bf16.gmra.mxu0 %v955
        %v1669 = vpop.f32.mrf.mxu0
        %v1670 = vadd.f32 %v1058, %v1669
        %v1671 = vpop.f32.mrf.mxu0
        %v1672 = vadd.f32 %v1062, %v1671
        %v1673 = vpop.f32.mrf.mxu0
        %v1674 = vadd.f32 %v1058, %v1673
        %v1675 = vpop.f32.mrf.mxu0
        %v1676 = vadd.f32 %v1062, %v1675
        %1677 = vdwg.mxu0
        %1678 = vmatprep.subr.bf16.mxu0 %v1418
        %1679 = vmatpush1.bf16.msra.mxu0 %v1417
        %1680 = vmatprep.subr.bf16.mxu0 %v1412
        %1681 = vmatpush1.bf16.msra.mxu0 %v1411
        %1682 = vmatprep.subr.bf16.mxu0 %v1406
        %1683 = vmatpush1.bf16.msra.mxu0 %v1405
        %1684 = vmatprep.subr.bf16.mxu0 %v1400
        %1685 = vmatpush1.bf16.msra.mxu0 %v1399
        %1686 = vmatprep.subr.bf16.mxu0 %v1394
        %1687 = vmatpush1.bf16.msra.mxu0 %v1393
        %1688 = vmatprep.subr.bf16.mxu0 %v1388
        %1689 = vmatpush1.bf16.msra.mxu0 %v1387
        %1690 = vmatprep.subr.bf16.mxu0 %v1382
        %1691 = vmatpush1.bf16.msra.mxu0 %v1381
        %1692 = vmatprep.subr.bf16.mxu0 %v1376
        %1693 = vmatpush1.bf16.msra.mxu0 %v1375
        %1694 = vmatprep.subr.bf16.mxu0 %v1466
        %1695 = vmatpush2.bf16.msra.mxu0 %v1465
        %1696 = vmatprep.subr.bf16.mxu0 %v1460
        %1697 = vmatpush2.bf16.msra.mxu0 %v1459
        %1698 = vmatprep.subr.bf16.mxu0 %v1454
        %1699 = vmatpush2.bf16.msra.mxu0 %v1453
        %1700 = vmatprep.subr.bf16.mxu0 %v1448
        %1701 = vmatpush2.bf16.msra.mxu0 %v1447
        %1702 = vmatprep.subr.bf16.mxu0 %v1442
        %1703 = vmatpush2.bf16.msra.mxu0 %v1441
        %1704 = vmatprep.subr.bf16.mxu0 %v1436
        %1705 = vmatpush2.bf16.msra.mxu0 %v1435
        %1706 = vmatprep.subr.bf16.mxu0 %v1430
        %1707 = vmatpush2.bf16.msra.mxu0 %v1429
        %1708 = vmatprep.subr.bf16.mxu0 %v1424
        %1709 = vmatpush2.bf16.msra.mxu0 %v1423
        %1710 = vmatprep.mubr.bf16.mxu0 %v942
        %1711 = vmatmul.mubr.bf16.gmra.mxu0 %v941
        %v1712 = vpop.f32.mrf.mxu0
        %v1713 = vadd.f32 %v1066, %v1712
        %v1714 = vpop.f32.mrf.mxu0
        %v1715 = vadd.f32 %v1070, %v1714
        %v1716 = vpop.f32.mrf.mxu0
        %v1717 = vadd.f32 %v1066, %v1716
        %v1718 = vpop.f32.mrf.mxu0
        %v1719 = vadd.f32 %v1070, %v1718
        %1720 = vmatprep.mubr.bf16.mxu0 %v944
        %1721 = vmatmul.mubr.bf16.gmra.mxu0 %v943
        %v1722 = vpop.f32.mrf.mxu0
        %v1723 = vadd.f32 %v1066, %v1722
        %v1724 = vpop.f32.mrf.mxu0
        %v1725 = vadd.f32 %v1070, %v1724
        %v1726 = vpop.f32.mrf.mxu0
        %v1727 = vadd.f32 %v1066, %v1726
        %v1728 = vpop.f32.mrf.mxu0
        %v1729 = vadd.f32 %v1070, %v1728
        %1730 = vmatprep.mubr.bf16.mxu0 %v946
        %1731 = vmatmul.mubr.bf16.gmra.mxu0 %v945
        %v1732 = vpop.f32.mrf.mxu0
        %v1733 = vadd.f32 %v1066, %v1732
        %v1734 = vpop.f32.mrf.mxu0
        %v1735 = vadd.f32 %v1070, %v1734
        %v1736 = vpop.f32.mrf.mxu0
        %v1737 = vadd.f32 %v1066, %v1736
        %v1738 = vpop.f32.mrf.mxu0
        %v1739 = vadd.f32 %v1070, %v1738
        %1740 = vmatprep.mubr.bf16.mxu0 %v948
        %1741 = vmatmul.mubr.bf16.gmra.mxu0 %v947
        %v1742 = vpop.f32.mrf.mxu0
        %v1743 = vadd.f32 %v1066, %v1742
        %v1744 = vpop.f32.mrf.mxu0
        %v1745 = vadd.f32 %v1070, %v1744
        %v1746 = vpop.f32.mrf.mxu0
        %v1747 = vadd.f32 %v1066, %v1746
        %v1748 = vpop.f32.mrf.mxu0
        %v1749 = vadd.f32 %v1070, %v1748
        %1750 = vmatprep.mubr.bf16.mxu0 %v950
        %1751 = vmatmul.mubr.bf16.gmra.mxu0 %v949
        %v1752 = vpop.f32.mrf.mxu0
        %v1753 = vadd.f32 %v1066, %v1752
        %v1754 = vpop.f32.mrf.mxu0
        %v1755 = vadd.f32 %v1070, %v1754
        %v1756 = vpop.f32.mrf.mxu0
        %v1757 = vadd.f32 %v1066, %v1756
        %v1758 = vpop.f32.mrf.mxu0
        %v1759 = vadd.f32 %v1070, %v1758
        %1760 = vmatprep.mubr.bf16.mxu0 %v952
        %1761 = vmatmul.mubr.bf16.gmra.mxu0 %v951
        %v1762 = vpop.f32.mrf.mxu0
        %v1763 = vadd.f32 %v1066, %v1762
        %v1764 = vpop.f32.mrf.mxu0
        %v1765 = vadd.f32 %v1070, %v1764
        %v1766 = vpop.f32.mrf.mxu0
        %v1767 = vadd.f32 %v1066, %v1766
        %v1768 = vpop.f32.mrf.mxu0
        %v1769 = vadd.f32 %v1070, %v1768
        %1770 = vmatprep.mubr.bf16.mxu0 %v954
        %1771 = vmatmul.mubr.bf16.gmra.mxu0 %v953
        %v1772 = vpop.f32.mrf.mxu0
        %v1773 = vadd.f32 %v1066, %v1772
        %v1774 = vpop.f32.mrf.mxu0
        %v1775 = vadd.f32 %v1070, %v1774
        %v1776 = vpop.f32.mrf.mxu0
        %v1777 = vadd.f32 %v1066, %v1776
        %v1778 = vpop.f32.mrf.mxu0
        %v1779 = vadd.f32 %v1070, %v1778
        %1780 = vmatprep.mubr.bf16.mxu0 %v956
        %1781 = vmatmul.mubr.bf16.gmra.mxu0 %v955
        %v1782 = vpop.f32.mrf.mxu0
        %v1783 = vadd.f32 %v1066, %v1782
        %v1784 = vpop.f32.mrf.mxu0
        %v1785 = vadd.f32 %v1070, %v1784
        %v1786 = vpop.f32.mrf.mxu0
        %v1787 = vadd.f32 %v1066, %v1786
        %v1788 = vpop.f32.mrf.mxu0
        %v1789 = vadd.f32 %v1070, %v1788
        %1790 = vdwg.mxu0
        %1791 = vmatprep.subr.bf16.mxu0 %v1420
        %1792 = vmatpush1.bf16.msra.mxu0 %v1419
        %1793 = vmatprep.subr.bf16.mxu0 %v1414
        %1794 = vmatpush1.bf16.msra.mxu0 %v1413
        %1795 = vmatprep.subr.bf16.mxu0 %v1408
        %1796 = vmatpush1.bf16.msra.mxu0 %v1407
        %1797 = vmatprep.subr.bf16.mxu0 %v1402
        %1798 = vmatpush1.bf16.msra.mxu0 %v1401
        %1799 = vmatprep.subr.bf16.mxu0 %v1396
        %1800 = vmatpush1.bf16.msra.mxu0 %v1395
        %1801 = vmatprep.subr.bf16.mxu0 %v1390
        %1802 = vmatpush1.bf16.msra.mxu0 %v1389
        %1803 = vmatprep.subr.bf16.mxu0 %v1384
        %1804 = vmatpush1.bf16.msra.mxu0 %v1383
        %1805 = vmatprep.subr.bf16.mxu0 %v1378
        %1806 = vmatpush1.bf16.msra.mxu0 %v1377
        %1807 = vmatprep.subr.bf16.mxu0 %v1468
        %1808 = vmatpush2.bf16.msra.mxu0 %v1467
        %1809 = vmatprep.subr.bf16.mxu0 %v1462
        %1810 = vmatpush2.bf16.msra.mxu0 %v1461
        %1811 = vmatprep.subr.bf16.mxu0 %v1456
        %1812 = vmatpush2.bf16.msra.mxu0 %v1455
        %1813 = vmatprep.subr.bf16.mxu0 %v1450
        %1814 = vmatpush2.bf16.msra.mxu0 %v1449
        %1815 = vmatprep.subr.bf16.mxu0 %v1444
        %1816 = vmatpush2.bf16.msra.mxu0 %v1443
        %1817 = vmatprep.subr.bf16.mxu0 %v1438
        %1818 = vmatpush2.bf16.msra.mxu0 %v1437
        %1819 = vmatprep.subr.bf16.mxu0 %v1432
        %1820 = vmatpush2.bf16.msra.mxu0 %v1431
        %1821 = vmatprep.subr.bf16.mxu0 %v1426
        %1822 = vmatpush2.bf16.msra.mxu0 %v1425
        %1823 = vmatprep.mubr.bf16.mxu0 %v942
        %1824 = vmatmul.mubr.bf16.gmra.mxu0 %v941
        %v1825 = vpop.f32.mrf.mxu0
        %v1826 = vadd.f32 %v1074, %v1825
        %v1827 = vpop.f32.mrf.mxu0
        %v1828 = vadd.f32 %v1078, %v1827
        %v1829 = vpop.f32.mrf.mxu0
        %v1830 = vadd.f32 %v1074, %v1829
        %v1831 = vpop.f32.mrf.mxu0
        %v1832 = vadd.f32 %v1078, %v1831
        %1833 = vmatprep.mubr.bf16.mxu0 %v944
        %1834 = vmatmul.mubr.bf16.gmra.mxu0 %v943
        %v1835 = vpop.f32.mrf.mxu0
        %v1836 = vadd.f32 %v1074, %v1835
        %v1837 = vpop.f32.mrf.mxu0
        %v1838 = vadd.f32 %v1078, %v1837
        %v1839 = vpop.f32.mrf.mxu0
        %v1840 = vadd.f32 %v1074, %v1839
        %v1841 = vpop.f32.mrf.mxu0
        %v1842 = vadd.f32 %v1078, %v1841
        %1843 = vmatprep.mubr.bf16.mxu0 %v946
        %1844 = vmatmul.mubr.bf16.gmra.mxu0 %v945
        %v1845 = vpop.f32.mrf.mxu0
        %v1846 = vadd.f32 %v1074, %v1845
        %v1847 = vpop.f32.mrf.mxu0
        %v1848 = vadd.f32 %v1078, %v1847
        %v1849 = vpop.f32.mrf.mxu0
        %v1850 = vadd.f32 %v1074, %v1849
        %v1851 = vpop.f32.mrf.mxu0
        %v1852 = vadd.f32 %v1078, %v1851
        %1853 = vmatprep.mubr.bf16.mxu0 %v948
        %1854 = vmatmul.mubr.bf16.gmra.mxu0 %v947
        %v1855 = vpop.f32.mrf.mxu0
        %v1856 = vadd.f32 %v1074, %v1855
        %v1857 = vpop.f32.mrf.mxu0
        %v1858 = vadd.f32 %v1078, %v1857
        %v1859 = vpop.f32.mrf.mxu0
        %v1860 = vadd.f32 %v1074, %v1859
        %v1861 = vpop.f32.mrf.mxu0
        %v1862 = vadd.f32 %v1078, %v1861
        %1863 = vmatprep.mubr.bf16.mxu0 %v950
        %1864 = vmatmul.mubr.bf16.gmra.mxu0 %v949
        %v1865 = vpop.f32.mrf.mxu0
        %v1866 = vadd.f32 %v1074, %v1865
        %v1867 = vpop.f32.mrf.mxu0
        %v1868 = vadd.f32 %v1078, %v1867
        %v1869 = vpop.f32.mrf.mxu0
        %v1870 = vadd.f32 %v1074, %v1869
        %v1871 = vpop.f32.mrf.mxu0
        %v1872 = vadd.f32 %v1078, %v1871
        %1873 = vmatprep.mubr.bf16.mxu0 %v952
        %1874 = vmatmul.mubr.bf16.gmra.mxu0 %v951
        %v1875 = vpop.f32.mrf.mxu0
        %v1876 = vadd.f32 %v1074, %v1875
        %v1877 = vpop.f32.mrf.mxu0
        %v1878 = vadd.f32 %v1078, %v1877
        %v1879 = vpop.f32.mrf.mxu0
        %v1880 = vadd.f32 %v1074, %v1879
        %v1881 = vpop.f32.mrf.mxu0
        %v1882 = vadd.f32 %v1078, %v1881
        %1883 = vmatprep.mubr.bf16.mxu0 %v954
        %1884 = vmatmul.mubr.bf16.gmra.mxu0 %v953
        %v1885 = vpop.f32.mrf.mxu0
        %v1886 = vadd.f32 %v1074, %v1885
        %v1887 = vpop.f32.mrf.mxu0
        %v1888 = vadd.f32 %v1078, %v1887
        %v1889 = vpop.f32.mrf.mxu0
        %v1890 = vadd.f32 %v1074, %v1889
        %v1891 = vpop.f32.mrf.mxu0
        %v1892 = vadd.f32 %v1078, %v1891
        %1893 = vmatprep.mubr.bf16.mxu0 %v956
        %1894 = vmatmul.mubr.bf16.gmra.mxu0 %v955
        %v1895 = vpop.f32.mrf.mxu0
        %v1896 = vadd.f32 %v1074, %v1895
        %v1897 = vpop.f32.mrf.mxu0
        %v1898 = vadd.f32 %v1078, %v1897
        %v1899 = vpop.f32.mrf.mxu0
        %v1900 = vadd.f32 %v1074, %v1899
        %v1901 = vpop.f32.mrf.mxu0
        %v1902 = vadd.f32 %v1078, %v1901
        %1903 = vdwg.mxu0
        %v1904 = vld [vmem:[#allocation8] sm:$0xff]
        %v1905 = vld [vmem:[#allocation8 + $0x8] sm:$0xff]
        %v1906 = vld [vmem:[#allocation8 + $0x10] sm:$0xff]
        %v1907 = vld [vmem:[#allocation8 + $0x18] sm:$0xff]
        %v1908 = vld [vmem:[#allocation8 + $0x20] sm:$0xff]
        %v1909 = vld [vmem:[#allocation8 + $0x28] sm:$0xff]
        %v1910 = vld [vmem:[#allocation8 + $0x30] sm:$0xff]
        %v1911 = vld [vmem:[#allocation8 + $0x38] sm:$0xff]
        %v1912 = vld [vmem:[#allocation8 + $0x40] sm:$0xff]
        %v1913 = vld [vmem:[#allocation8 + $0x48] sm:$0xff]
        %v1914 = vld [vmem:[#allocation8 + $0x50] sm:$0xff]
        %v1915 = vld [vmem:[#allocation8 + $0x58] sm:$0xff]
        %v1916 = vld [vmem:[#allocation8 + $0x60] sm:$0xff]
        %v1917 = vld [vmem:[#allocation8 + $0x68] sm:$0xff]
        %v1918 = vld [vmem:[#allocation8 + $0x70] sm:$0xff]
        %v1919 = vld [vmem:[#allocation8 + $0x78] sm:$0xff]
        %v1920 = vld [vmem:[#allocation10] sm:$0xff]
        %v1921 = vld [vmem:[#allocation10 + $0x8] sm:$0xff]
        %v1922 = vld [vmem:[#allocation10 + $0x10] sm:$0xff]
        %v1923 = vld [vmem:[#allocation10 + $0x18] sm:$0xff]
        %v1924 = vld [vmem:[#allocation10 + $0x20] sm:$0xff]
        %v1925 = vld [vmem:[#allocation10 + $0x28] sm:$0xff]
        %v1926 = vld [vmem:[#allocation10 + $0x30] sm:$0xff]
        %v1927 = vld [vmem:[#allocation10 + $0x38] sm:$0xff]
        %v1928 = vld [vmem:[#allocation10 + $0x40] sm:$0xff]
        %v1929 = vld [vmem:[#allocation10 + $0x48] sm:$0xff]
        %v1930 = vld [vmem:[#allocation10 + $0x50] sm:$0xff]
        %v1931 = vld [vmem:[#allocation10 + $0x58] sm:$0xff]
        %v1932 = vld [vmem:[#allocation10 + $0x60] sm:$0xff]
        %v1933 = vld [vmem:[#allocation10 + $0x68] sm:$0xff]
        %v1934 = vld [vmem:[#allocation10 + $0x70] sm:$0xff]
        %v1935 = vld [vmem:[#allocation10 + $0x78] sm:$0xff]
        %v1936 = vlaneseq
        %v1937 = vand.u32 %v1936, 127
        %v1938 = vadd.s32 %v1937, 128
        %vm1939 = vcmp.lt.s32.totalorder %v1937, 0
        %v1940 = vsub.s32 0, %v1937
        %v1941 = vsel %vm1939, %v1940, %v1937
        %v1942 = vshrl.u32 %v1941, 7
        %v1943 = vand.u32 %v1941, 127
        %v1944 = vsub.s32 0, %v1943
        %v1945 = vsel %vm1939, %v1944, %v1943
        %vm1946 = vcmp.lt.s32.totalorder %v1938, 0
        %v1947 = vsub.s32 0, %v1938
        %v1948 = vsel %vm1946, %v1947, %v1938
        %v1949 = vshrl.u32 %v1948, 7
        %v1950 = vand.u32 %v1948, 127
        %v1951 = vsub.s32 0, %v1950
        %v1952 = vsel %vm1946, %v1951, %v1950
        %vm1953 = vcmp.ne.s32.totalorder %v1945, 0
        %vm1954 = vcmp.ne.s32.totalorder %v1952, 0
        %vm1955 = vcmp.lt.s32.totalorder %v1945, 0
        %vm1956 = vcmp.lt.s32.totalorder %v1952, 0
        %vm1957 = vmand %vm1955, %vm1953
        %vm1958 = vmand %vm1956, %vm1954
        %v1959 = vadd.s32 %v1945, 128
        %v1960 = vadd.s32 %v1952, 128
        %v1961 = vsel %vm1957, %v1959, %v1945
        %v1962 = vsel %vm1958, %v1960, %v1952
        %vm1963 = vcmp.lt.s32.totalorder %v1961, 64
        %vm1964 = vcmp.lt.s32.totalorder %v1962, 64
        %1965 = vrot.lane.b32.xlu0 %v1600, 64
        %v1966 = vpop.permute.xlu0 %1965
        %1967 = vrot.lane.b32.xlu0 %v1604, 64
        %v1968 = vpop.permute.xlu0 %1967
        %1969 = vrot.lane.b32.xlu0 %v1610, 64
        %v1970 = vpop.permute.xlu0 %1969
        %1971 = vrot.lane.b32.xlu0 %v1614, 64
        %v1972 = vpop.permute.xlu0 %1971
        %1973 = vrot.lane.b32.xlu0 %v1620, 64
        %v1974 = vpop.permute.xlu0 %1973
        %1975 = vrot.lane.b32.xlu0 %v1624, 64
        %v1976 = vpop.permute.xlu0 %1975
        %1977 = vrot.lane.b32.xlu0 %v1630, 64
        %v1978 = vpop.permute.xlu0 %1977
        %1979 = vrot.lane.b32.xlu0 %v1634, 64
        %v1980 = vpop.permute.xlu0 %1979
        %1981 = vrot.lane.b32.xlu0 %v1640, 64
        %v1982 = vpop.permute.xlu0 %1981
        %1983 = vrot.lane.b32.xlu0 %v1644, 64
        %v1984 = vpop.permute.xlu0 %1983
        %1985 = vrot.lane.b32.xlu0 %v1650, 64
        %v1986 = vpop.permute.xlu0 %1985
        %1987 = vrot.lane.b32.xlu0 %v1654, 64
        %v1988 = vpop.permute.xlu0 %1987
        %1989 = vrot.lane.b32.xlu0 %v1660, 64
        %v1990 = vpop.permute.xlu0 %1989
        %1991 = vrot.lane.b32.xlu0 %v1664, 64
        %v1992 = vpop.permute.xlu0 %1991
        %1993 = vrot.lane.b32.xlu0 %v1670, 64
        %v1994 = vpop.permute.xlu0 %1993
        %1995 = vrot.lane.b32.xlu0 %v1674, 64
        %v1996 = vpop.permute.xlu0 %1995
        %1997 = vrot.lane.b32.xlu0 %v1602, 64
        %v1998 = vpop.permute.xlu0 %1997
        %1999 = vrot.lane.b32.xlu0 %v1606, 64
        %v2000 = vpop.permute.xlu0 %1999
        %2001 = vrot.lane.b32.xlu0 %v1612, 64
        %v2002 = vpop.permute.xlu0 %2001
        %2003 = vrot.lane.b32.xlu0 %v1616, 64
        %v2004 = vpop.permute.xlu0 %2003
        %2005 = vrot.lane.b32.xlu0 %v1622, 64
        %v2006 = vpop.permute.xlu0 %2005
        %2007 = vrot.lane.b32.xlu0 %v1626, 64
        %v2008 = vpop.permute.xlu0 %2007
        %2009 = vrot.lane.b32.xlu0 %v1632, 64
        %v2010 = vpop.permute.xlu0 %2009
        %2011 = vrot.lane.b32.xlu0 %v1636, 64
        %v2012 = vpop.permute.xlu0 %2011
        %2013 = vrot.lane.b32.xlu0 %v1642, 64
        %v2014 = vpop.permute.xlu0 %2013
        %2015 = vrot.lane.b32.xlu0 %v1646, 64
        %v2016 = vpop.permute.xlu0 %2015
        %2017 = vrot.lane.b32.xlu0 %v1652, 64
        %v2018 = vpop.permute.xlu0 %2017
        %2019 = vrot.lane.b32.xlu0 %v1656, 64
        %v2020 = vpop.permute.xlu0 %2019
        %2021 = vrot.lane.b32.xlu0 %v1662, 64
        %v2022 = vpop.permute.xlu0 %2021
        %2023 = vrot.lane.b32.xlu0 %v1666, 64
        %v2024 = vpop.permute.xlu0 %2023
        %2025 = vrot.lane.b32.xlu0 %v1672, 64
        %v2026 = vpop.permute.xlu0 %2025
        %2027 = vrot.lane.b32.xlu0 %v1676, 64
        %v2028 = vpop.permute.xlu0 %2027
        %vm2029 = vcmp.lt.s32.totalorder %v1937, 64
        %v2030 = vsel %vm2029, %v1966, %v1998
        %v2031 = vsel %vm2029, %v1968, %v2000
        %v2032 = vsel %vm2029, %v1970, %v2002
        %v2033 = vsel %vm2029, %v1972, %v2004
        %v2034 = vsel %vm2029, %v1974, %v2006
        %v2035 = vsel %vm2029, %v1976, %v2008
        %v2036 = vsel %vm2029, %v1978, %v2010
        %v2037 = vsel %vm2029, %v1980, %v2012
        %v2038 = vsel %vm2029, %v1982, %v2014
        %v2039 = vsel %vm2029, %v1984, %v2016
        %v2040 = vsel %vm2029, %v1986, %v2018
        %v2041 = vsel %vm2029, %v1988, %v2020
        %v2042 = vsel %vm2029, %v1990, %v2022
        %v2043 = vsel %vm2029, %v1992, %v2024
        %v2044 = vsel %vm2029, %v1994, %v2026
        %v2045 = vsel %vm2029, %v1996, %v2028
        %v2046 = vsel %vm2029, %v1998, %v1966
        %v2047 = vsel %vm2029, %v2000, %v1968
        %v2048 = vsel %vm2029, %v2002, %v1970
        %v2049 = vsel %vm2029, %v2004, %v1972
        %v2050 = vsel %vm2029, %v2006, %v1974
        %v2051 = vsel %vm2029, %v2008, %v1976
        %v2052 = vsel %vm2029, %v2010, %v1978
        %v2053 = vsel %vm2029, %v2012, %v1980
        %v2054 = vsel %vm2029, %v2014, %v1982
        %v2055 = vsel %vm2029, %v2016, %v1984
        %v2056 = vsel %vm2029, %v2018, %v1986
        %v2057 = vsel %vm2029, %v2020, %v1988
        %v2058 = vsel %vm2029, %v2022, %v1990
        %v2059 = vsel %vm2029, %v2024, %v1992
        %v2060 = vsel %vm2029, %v2026, %v1994
        %v2061 = vsel %vm2029, %v2028, %v1996
        %v2062 = vmul.f32 %v1600, %v1904
        %v2063 = vmul.f32 %v1602, %v1904
        %v2064 = vmul.f32 %v1604, %v1905
        %v2065 = vmul.f32 %v1606, %v1905
        %v2066 = vmul.f32 %v1610, %v1906
        %v2067 = vmul.f32 %v1612, %v1906
        %v2068 = vmul.f32 %v1614, %v1907
        %v2069 = vmul.f32 %v1616, %v1907
        %v2070 = vmul.f32 %v1620, %v1908
        %v2071 = vmul.f32 %v1622, %v1908
        %v2072 = vmul.f32 %v1624, %v1909
        %v2073 = vmul.f32 %v1626, %v1909
        %v2074 = vmul.f32 %v1630, %v1910
        %v2075 = vmul.f32 %v1632, %v1910
        %v2076 = vmul.f32 %v1634, %v1911
        %v2077 = vmul.f32 %v1636, %v1911
        %v2078 = vmul.f32 %v1640, %v1912
        %v2079 = vmul.f32 %v1642, %v1912
        %v2080 = vmul.f32 %v1644, %v1913
        %v2081 = vmul.f32 %v1646, %v1913
        %v2082 = vmul.f32 %v1650, %v1914
        %v2083 = vmul.f32 %v1652, %v1914
        %v2084 = vmul.f32 %v1654, %v1915
        %v2085 = vmul.f32 %v1656, %v1915
        %v2086 = vmul.f32 %v1660, %v1916
        %v2087 = vmul.f32 %v1662, %v1916
        %v2088 = vmul.f32 %v1664, %v1917
        %v2089 = vmul.f32 %v1666, %v1917
        %v2090 = vmul.f32 %v1670, %v1918
        %v2091 = vmul.f32 %v1672, %v1918
        %v2092 = vmul.f32 %v1674, %v1919
        %v2093 = vmul.f32 %v1676, %v1919
        %v2094 = vsel %vm1963, %v2030, %v2046
        %v2095 = vsel %vm1964, %v2046, %v2030
        %v2096 = vsel %vm1963, %v2031, %v2047
        %v2097 = vsel %vm1964, %v2047, %v2031
        %v2098 = vsel %vm1963, %v2032, %v2048
        %v2099 = vsel %vm1964, %v2048, %v2032
        %v2100 = vsel %vm1963, %v2033, %v2049
        %v2101 = vsel %vm1964, %v2049, %v2033
        %v2102 = vsel %vm1963, %v2034, %v2050
        %v2103 = vsel %vm1964, %v2050, %v2034
        %v2104 = vsel %vm1963, %v2035, %v2051
        %v2105 = vsel %vm1964, %v2051, %v2035
        %v2106 = vsel %vm1963, %v2036, %v2052
        %v2107 = vsel %vm1964, %v2052, %v2036
        %v2108 = vsel %vm1963, %v2037, %v2053
        %v2109 = vsel %vm1964, %v2053, %v2037
        %v2110 = vsel %vm1963, %v2038, %v2054
        %v2111 = vsel %vm1964, %v2054, %v2038
        %v2112 = vsel %vm1963, %v2039, %v2055
        %v2113 = vsel %vm1964, %v2055, %v2039
        %v2114 = vsel %vm1963, %v2040, %v2056
        %v2115 = vsel %vm1964, %v2056, %v2040
        %v2116 = vsel %vm1963, %v2041, %v2057
        %v2117 = vsel %vm1964, %v2057, %v2041
        %v2118 = vsel %vm1963, %v2042, %v2058
        %v2119 = vsel %vm1964, %v2058, %v2042
        %v2120 = vsel %vm1963, %v2043, %v2059
        %v2121 = vsel %vm1964, %v2059, %v2043
        %v2122 = vsel %vm1963, %v2044, %v2060
        %v2123 = vsel %vm1964, %v2060, %v2044
        %v2124 = vsel %vm1963, %v2045, %v2061
        %v2125 = vsel %vm1964, %v2061, %v2045
        %v2126 = vmul.f32 %v2094, %v1920
        %v2127 = vmul.f32 %v2095, %v1920
        %v2128 = vmul.f32 %v2096, %v1921
        %v2129 = vmul.f32 %v2097, %v1921
        %v2130 = vmul.f32 %v2098, %v1922
        %v2131 = vmul.f32 %v2099, %v1922
        %v2132 = vmul.f32 %v2100, %v1923
        %v2133 = vmul.f32 %v2101, %v1923
        %v2134 = vmul.f32 %v2102, %v1924
        %v2135 = vmul.f32 %v2103, %v1924
        %v2136 = vmul.f32 %v2104, %v1925
        %v2137 = vmul.f32 %v2105, %v1925
        %v2138 = vmul.f32 %v2106, %v1926
        %v2139 = vmul.f32 %v2107, %v1926
        %v2140 = vmul.f32 %v2108, %v1927
        %v2141 = vmul.f32 %v2109, %v1927
        %v2142 = vmul.f32 %v2110, %v1928
        %v2143 = vmul.f32 %v2111, %v1928
        %v2144 = vmul.f32 %v2112, %v1929
        %v2145 = vmul.f32 %v2113, %v1929
        %v2146 = vmul.f32 %v2114, %v1930
        %v2147 = vmul.f32 %v2115, %v1930
        %v2148 = vmul.f32 %v2116, %v1931
        %v2149 = vmul.f32 %v2117, %v1931
        %v2150 = vmul.f32 %v2118, %v1932
        %v2151 = vmul.f32 %v2119, %v1932
        %v2152 = vmul.f32 %v2120, %v1933
        %v2153 = vmul.f32 %v2121, %v1933
        %v2154 = vmul.f32 %v2122, %v1934
        %v2155 = vmul.f32 %v2123, %v1934
        %v2156 = vmul.f32 %v2124, %v1935
        %v2157 = vmul.f32 %v2125, %v1935
        %v2158 = vadd.f32 %v2062, %v2126
        %v2159 = vadd.f32 %v2063, %v2127
        %v2160 = vadd.f32 %v2064, %v2128
        %v2161 = vadd.f32 %v2065, %v2129
        %v2162 = vadd.f32 %v2066, %v2130
        %v2163 = vadd.f32 %v2067, %v2131
        %v2164 = vadd.f32 %v2068, %v2132
        %v2165 = vadd.f32 %v2069, %v2133
        %v2166 = vadd.f32 %v2070, %v2134
        %v2167 = vadd.f32 %v2071, %v2135
        %v2168 = vadd.f32 %v2072, %v2136
        %v2169 = vadd.f32 %v2073, %v2137
        %v2170 = vadd.f32 %v2074, %v2138
        %v2171 = vadd.f32 %v2075, %v2139
        %v2172 = vadd.f32 %v2076, %v2140
        %v2173 = vadd.f32 %v2077, %v2141
        %v2174 = vadd.f32 %v2078, %v2142
        %v2175 = vadd.f32 %v2079, %v2143
        %v2176 = vadd.f32 %v2080, %v2144
        %v2177 = vadd.f32 %v2081, %v2145
        %v2178 = vadd.f32 %v2082, %v2146
        %v2179 = vadd.f32 %v2083, %v2147
        %v2180 = vadd.f32 %v2084, %v2148
        %v2181 = vadd.f32 %v2085, %v2149
        %v2182 = vadd.f32 %v2086, %v2150
        %v2183 = vadd.f32 %v2087, %v2151
        %v2184 = vadd.f32 %v2088, %v2152
        %v2185 = vadd.f32 %v2089, %v2153
        %v2186 = vadd.f32 %v2090, %v2154
        %v2187 = vadd.f32 %v2091, %v2155
        %v2188 = vadd.f32 %v2092, %v2156
        %v2189 = vadd.f32 %v2093, %v2157
        %v2190 = vpack.c.bf16 %v2160, %v2158
        %v2191 = vpack.c.bf16 %v2161, %v2159
        %v2192 = vpack.c.bf16 %v2164, %v2162
        %v2193 = vpack.c.bf16 %v2165, %v2163
        %v2194 = vpack.c.bf16 %v2168, %v2166
        %v2195 = vpack.c.bf16 %v2169, %v2167
        %v2196 = vpack.c.bf16 %v2172, %v2170
        %v2197 = vpack.c.bf16 %v2173, %v2171
        %v2198 = vpack.c.bf16 %v2176, %v2174
        %v2199 = vpack.c.bf16 %v2177, %v2175
        %v2200 = vpack.c.bf16 %v2180, %v2178
        %v2201 = vpack.c.bf16 %v2181, %v2179
        %v2202 = vpack.c.bf16 %v2184, %v2182
        %v2203 = vpack.c.bf16 %v2185, %v2183
        %v2204 = vpack.c.bf16 %v2188, %v2186
        %v2205 = vpack.c.bf16 %v2189, %v2187
        %v2222 = vunpack.c.l.b16 %v2190
        %v2223 = vunpack.c.l.b16 %v2191
        %v2224 = vunpack.c.h.b16 %v2190
        %v2225 = vunpack.c.h.b16 %v2191
        %v2226 = vunpack.c.l.b16 %v2192
        %v2227 = vunpack.c.l.b16 %v2193
        %v2228 = vunpack.c.h.b16 %v2192
        %v2229 = vunpack.c.h.b16 %v2193
        %v2230 = vunpack.c.l.b16 %v2194
        %v2231 = vunpack.c.l.b16 %v2195
        %v2232 = vunpack.c.h.b16 %v2194
        %v2233 = vunpack.c.h.b16 %v2195
        %v2234 = vunpack.c.l.b16 %v2196
        %v2235 = vunpack.c.l.b16 %v2197
        %v2236 = vunpack.c.h.b16 %v2196
        %v2237 = vunpack.c.h.b16 %v2197
        %v2238 = vunpack.c.l.b16 %v2198
        %v2239 = vunpack.c.l.b16 %v2199
        %v2240 = vunpack.c.h.b16 %v2198
        %v2241 = vunpack.c.h.b16 %v2199
        %v2242 = vunpack.c.l.b16 %v2200
        %v2243 = vunpack.c.l.b16 %v2201
        %v2244 = vunpack.c.h.b16 %v2200
        %v2245 = vunpack.c.h.b16 %v2201
        %v2246 = vunpack.c.l.b16 %v2202
        %v2247 = vunpack.c.l.b16 %v2203
        %v2248 = vunpack.c.h.b16 %v2202
        %v2249 = vunpack.c.h.b16 %v2203
        %v2250 = vunpack.c.l.b16 %v2204
        %v2251 = vunpack.c.l.b16 %v2205
        %v2252 = vunpack.c.h.b16 %v2204
        %v2253 = vunpack.c.h.b16 %v2205
        %v2254 = vpack.c.b16 %v2223, %v2222
        %v2255 = vpack.c.b16 %v2225, %v2224
        %v2256 = vpack.c.b16 %v2227, %v2226
        %v2257 = vpack.c.b16 %v2229, %v2228
        %v2258 = vpack.c.b16 %v2231, %v2230
        %v2259 = vpack.c.b16 %v2233, %v2232
        %v2260 = vpack.c.b16 %v2235, %v2234
        %v2261 = vpack.c.b16 %v2237, %v2236
        %v2262 = vpack.c.b16 %v2239, %v2238
        %v2263 = vpack.c.b16 %v2241, %v2240
        %v2264 = vpack.c.b16 %v2243, %v2242
        %v2265 = vpack.c.b16 %v2245, %v2244
        %v2266 = vpack.c.b16 %v2247, %v2246
        %v2267 = vpack.c.b16 %v2249, %v2248
        %v2268 = vpack.c.b16 %v2251, %v2250
        %v2269 = vpack.c.b16 %v2253, %v2252
        %2286 = vst [vmem:[%s510] sm:$0xff] %v2254
        %2287 = vst [vmem:[%s510 + $0x8] sm:$0xff] %v2255
        %2288 = vst [vmem:[%s510 + $0x10] sm:$0xff] %v2256
        %2289 = vst [vmem:[%s510 + $0x18] sm:$0xff] %v2257
        %2290 = vst [vmem:[%s510 + $0x20] sm:$0xff] %v2258
        %2291 = vst [vmem:[%s510 + $0x28] sm:$0xff] %v2259
        %2292 = vst [vmem:[%s510 + $0x30] sm:$0xff] %v2260
        %2293 = vst [vmem:[%s510 + $0x38] sm:$0xff] %v2261
        %2294 = vst [vmem:[%s510 + $0x40] sm:$0xff] %v2262
        %2295 = vst [vmem:[%s510 + $0x48] sm:$0xff] %v2263
        %2296 = vst [vmem:[%s510 + $0x50] sm:$0xff] %v2264
        %2297 = vst [vmem:[%s510 + $0x58] sm:$0xff] %v2265
        %2298 = vst [vmem:[%s510 + $0x60] sm:$0xff] %v2266
        %2299 = vst [vmem:[%s510 + $0x68] sm:$0xff] %v2267
        %2300 = vst [vmem:[%s510 + $0x70] sm:$0xff] %v2268
        %2301 = vst [vmem:[%s510 + $0x78] sm:$0xff] %v2269
        %2302 = vrot.lane.b32.xlu0 %v1713, 64
        %v2303 = vpop.permute.xlu0 %2302
        %2304 = vrot.lane.b32.xlu0 %v1717, 64
        %v2305 = vpop.permute.xlu0 %2304
        %2306 = vrot.lane.b32.xlu0 %v1723, 64
        %v2307 = vpop.permute.xlu0 %2306
        %2308 = vrot.lane.b32.xlu0 %v1727, 64
        %v2309 = vpop.permute.xlu0 %2308
        %2310 = vrot.lane.b32.xlu0 %v1733, 64
        %v2311 = vpop.permute.xlu0 %2310
        %2312 = vrot.lane.b32.xlu0 %v1737, 64
        %v2313 = vpop.permute.xlu0 %2312
        %2314 = vrot.lane.b32.xlu0 %v1743, 64
        %v2315 = vpop.permute.xlu0 %2314
        %2316 = vrot.lane.b32.xlu0 %v1747, 64
        %v2317 = vpop.permute.xlu0 %2316
        %2318 = vrot.lane.b32.xlu0 %v1753, 64
        %v2319 = vpop.permute.xlu0 %2318
        %2320 = vrot.lane.b32.xlu0 %v1757, 64
        %v2321 = vpop.permute.xlu0 %2320
        %2322 = vrot.lane.b32.xlu0 %v1763, 64
        %v2323 = vpop.permute.xlu0 %2322
        %2324 = vrot.lane.b32.xlu0 %v1767, 64
        %v2325 = vpop.permute.xlu0 %2324
        %2326 = vrot.lane.b32.xlu0 %v1773, 64
        %v2327 = vpop.permute.xlu0 %2326
        %2328 = vrot.lane.b32.xlu0 %v1777, 64
        %v2329 = vpop.permute.xlu0 %2328
        %2330 = vrot.lane.b32.xlu0 %v1783, 64
        %v2331 = vpop.permute.xlu0 %2330
        %2332 = vrot.lane.b32.xlu0 %v1787, 64
        %v2333 = vpop.permute.xlu0 %2332
        %2334 = vrot.lane.b32.xlu0 %v1715, 64
        %v2335 = vpop.permute.xlu0 %2334
        %2336 = vrot.lane.b32.xlu0 %v1719, 64
        %v2337 = vpop.permute.xlu0 %2336
        %2338 = vrot.lane.b32.xlu0 %v1725, 64
        %v2339 = vpop.permute.xlu0 %2338
        %2340 = vrot.lane.b32.xlu0 %v1729, 64
        %v2341 = vpop.permute.xlu0 %2340
        %2342 = vrot.lane.b32.xlu0 %v1735, 64
        %v2343 = vpop.permute.xlu0 %2342
        %2344 = vrot.lane.b32.xlu0 %v1739, 64
        %v2345 = vpop.permute.xlu0 %2344
        %2346 = vrot.lane.b32.xlu0 %v1745, 64
        %v2347 = vpop.permute.xlu0 %2346
        %2348 = vrot.lane.b32.xlu0 %v1749, 64
        %v2349 = vpop.permute.xlu0 %2348
        %2350 = vrot.lane.b32.xlu0 %v1755, 64
        %v2351 = vpop.permute.xlu0 %2350
        %2352 = vrot.lane.b32.xlu0 %v1759, 64
        %v2353 = vpop.permute.xlu0 %2352
        %2354 = vrot.lane.b32.xlu0 %v1765, 64
        %v2355 = vpop.permute.xlu0 %2354
        %2356 = vrot.lane.b32.xlu0 %v1769, 64
        %v2357 = vpop.permute.xlu0 %2356
        %2358 = vrot.lane.b32.xlu0 %v1775, 64
        %v2359 = vpop.permute.xlu0 %2358
        %2360 = vrot.lane.b32.xlu0 %v1779, 64
        %v2361 = vpop.permute.xlu0 %2360
        %2362 = vrot.lane.b32.xlu0 %v1785, 64
        %v2363 = vpop.permute.xlu0 %2362
        %2364 = vrot.lane.b32.xlu0 %v1789, 64
        %v2365 = vpop.permute.xlu0 %2364
        %v2366 = vsel %vm2029, %v2303, %v2335
        %v2367 = vsel %vm2029, %v2305, %v2337
        %v2368 = vsel %vm2029, %v2307, %v2339
        %v2369 = vsel %vm2029, %v2309, %v2341
        %v2370 = vsel %vm2029, %v2311, %v2343
        %v2371 = vsel %vm2029, %v2313, %v2345
        %v2372 = vsel %vm2029, %v2315, %v2347
        %v2373 = vsel %vm2029, %v2317, %v2349
        %v2374 = vsel %vm2029, %v2319, %v2351
        %v2375 = vsel %vm2029, %v2321, %v2353
        %v2376 = vsel %vm2029, %v2323, %v2355
        %v2377 = vsel %vm2029, %v2325, %v2357
        %v2378 = vsel %vm2029, %v2327, %v2359
        %v2379 = vsel %vm2029, %v2329, %v2361
        %v2380 = vsel %vm2029, %v2331, %v2363
        %v2381 = vsel %vm2029, %v2333, %v2365
        %v2382 = vsel %vm2029, %v2335, %v2303
        %v2383 = vsel %vm2029, %v2337, %v2305
        %v2384 = vsel %vm2029, %v2339, %v2307
        %v2385 = vsel %vm2029, %v2341, %v2309
        %v2386 = vsel %vm2029, %v2343, %v2311
        %v2387 = vsel %vm2029, %v2345, %v2313
        %v2388 = vsel %vm2029, %v2347, %v2315
        %v2389 = vsel %vm2029, %v2349, %v2317
        %v2390 = vsel %vm2029, %v2351, %v2319
        %v2391 = vsel %vm2029, %v2353, %v2321
        %v2392 = vsel %vm2029, %v2355, %v2323
        %v2393 = vsel %vm2029, %v2357, %v2325
        %v2394 = vsel %vm2029, %v2359, %v2327
        %v2395 = vsel %vm2029, %v2361, %v2329
        %v2396 = vsel %vm2029, %v2363, %v2331
        %v2397 = vsel %vm2029, %v2365, %v2333
        %v2398 = vmul.f32 %v1713, %v1904
        %v2399 = vmul.f32 %v1715, %v1904
        %v2400 = vmul.f32 %v1717, %v1905
        %v2401 = vmul.f32 %v1719, %v1905
        %v2402 = vmul.f32 %v1723, %v1906
        %v2403 = vmul.f32 %v1725, %v1906
        %v2404 = vmul.f32 %v1727, %v1907
        %v2405 = vmul.f32 %v1729, %v1907
        %v2406 = vmul.f32 %v1733, %v1908
        %v2407 = vmul.f32 %v1735, %v1908
        %v2408 = vmul.f32 %v1737, %v1909
        %v2409 = vmul.f32 %v1739, %v1909
        %v2410 = vmul.f32 %v1743, %v1910
        %v2411 = vmul.f32 %v1745, %v1910
        %v2412 = vmul.f32 %v1747, %v1911
        %v2413 = vmul.f32 %v1749, %v1911
        %v2414 = vmul.f32 %v1753, %v1912
        %v2415 = vmul.f32 %v1755, %v1912
        %v2416 = vmul.f32 %v1757, %v1913
        %v2417 = vmul.f32 %v1759, %v1913
        %v2418 = vmul.f32 %v1763, %v1914
        %v2419 = vmul.f32 %v1765, %v1914
        %v2420 = vmul.f32 %v1767, %v1915
        %v2421 = vmul.f32 %v1769, %v1915
        %v2422 = vmul.f32 %v1773, %v1916
        %v2423 = vmul.f32 %v1775, %v1916
        %v2424 = vmul.f32 %v1777, %v1917
        %v2425 = vmul.f32 %v1779, %v1917
        %v2426 = vmul.f32 %v1783, %v1918
        %v2427 = vmul.f32 %v1785, %v1918
        %v2428 = vmul.f32 %v1787, %v1919
        %v2429 = vmul.f32 %v1789, %v1919
        %v2430 = vsel %vm1963, %v2366, %v2382
        %v2431 = vsel %vm1964, %v2382, %v2366
        %v2432 = vsel %vm1963, %v2367, %v2383
        %v2433 = vsel %vm1964, %v2383, %v2367
        %v2434 = vsel %vm1963, %v2368, %v2384
        %v2435 = vsel %vm1964, %v2384, %v2368
        %v2436 = vsel %vm1963, %v2369, %v2385
        %v2437 = vsel %vm1964, %v2385, %v2369
        %v2438 = vsel %vm1963, %v2370, %v2386
        %v2439 = vsel %vm1964, %v2386, %v2370
        %v2440 = vsel %vm1963, %v2371, %v2387
        %v2441 = vsel %vm1964, %v2387, %v2371
        %v2442 = vsel %vm1963, %v2372, %v2388
        %v2443 = vsel %vm1964, %v2388, %v2372
        %v2444 = vsel %vm1963, %v2373, %v2389
        %v2445 = vsel %vm1964, %v2389, %v2373
        %v2446 = vsel %vm1963, %v2374, %v2390
        %v2447 = vsel %vm1964, %v2390, %v2374
        %v2448 = vsel %vm1963, %v2375, %v2391
        %v2449 = vsel %vm1964, %v2391, %v2375
        %v2450 = vsel %vm1963, %v2376, %v2392
        %v2451 = vsel %vm1964, %v2392, %v2376
        %v2452 = vsel %vm1963, %v2377, %v2393
        %v2453 = vsel %vm1964, %v2393, %v2377
        %v2454 = vsel %vm1963, %v2378, %v2394
        %v2455 = vsel %vm1964, %v2394, %v2378
        %v2456 = vsel %vm1963, %v2379, %v2395
        %v2457 = vsel %vm1964, %v2395, %v2379
        %v2458 = vsel %vm1963, %v2380, %v2396
        %v2459 = vsel %vm1964, %v2396, %v2380
        %v2460 = vsel %vm1963, %v2381, %v2397
        %v2461 = vsel %vm1964, %v2397, %v2381
        %v2462 = vmul.f32 %v2430, %v1920
        %v2463 = vmul.f32 %v2431, %v1920
        %v2464 = vmul.f32 %v2432, %v1921
        %v2465 = vmul.f32 %v2433, %v1921
        %v2466 = vmul.f32 %v2434, %v1922
        %v2467 = vmul.f32 %v2435, %v1922
        %v2468 = vmul.f32 %v2436, %v1923
        %v2469 = vmul.f32 %v2437, %v1923
        %v2470 = vmul.f32 %v2438, %v1924
        %v2471 = vmul.f32 %v2439, %v1924
        %v2472 = vmul.f32 %v2440, %v1925
        %v2473 = vmul.f32 %v2441, %v1925
        %v2474 = vmul.f32 %v2442, %v1926
        %v2475 = vmul.f32 %v2443, %v1926
        %v2476 = vmul.f32 %v2444, %v1927
        %v2477 = vmul.f32 %v2445, %v1927
        %v2478 = vmul.f32 %v2446, %v1928
        %v2479 = vmul.f32 %v2447, %v1928
        %v2480 = vmul.f32 %v2448, %v1929
        %v2481 = vmul.f32 %v2449, %v1929
        %v2482 = vmul.f32 %v2450, %v1930
        %v2483 = vmul.f32 %v2451, %v1930
        %v2484 = vmul.f32 %v2452, %v1931
        %v2485 = vmul.f32 %v2453, %v1931
        %v2486 = vmul.f32 %v2454, %v1932
        %v2487 = vmul.f32 %v2455, %v1932
        %v2488 = vmul.f32 %v2456, %v1933
        %v2489 = vmul.f32 %v2457, %v1933
        %v2490 = vmul.f32 %v2458, %v1934
        %v2491 = vmul.f32 %v2459, %v1934
        %v2492 = vmul.f32 %v2460, %v1935
        %v2493 = vmul.f32 %v2461, %v1935
        %v2494 = vadd.f32 %v2398, %v2462
        %v2495 = vadd.f32 %v2399, %v2463
        %v2496 = vadd.f32 %v2400, %v2464
        %v2497 = vadd.f32 %v2401, %v2465
        %v2498 = vadd.f32 %v2402, %v2466
        %v2499 = vadd.f32 %v2403, %v2467
        %v2500 = vadd.f32 %v2404, %v2468
        %v2501 = vadd.f32 %v2405, %v2469
        %v2502 = vadd.f32 %v2406, %v2470
        %v2503 = vadd.f32 %v2407, %v2471
        %v2504 = vadd.f32 %v2408, %v2472
        %v2505 = vadd.f32 %v2409, %v2473
        %v2506 = vadd.f32 %v2410, %v2474
        %v2507 = vadd.f32 %v2411, %v2475
        %v2508 = vadd.f32 %v2412, %v2476
        %v2509 = vadd.f32 %v2413, %v2477
        %v2510 = vadd.f32 %v2414, %v2478
        %v2511 = vadd.f32 %v2415, %v2479
        %v2512 = vadd.f32 %v2416, %v2480
        %v2513 = vadd.f32 %v2417, %v2481
        %v2514 = vadd.f32 %v2418, %v2482
        %v2515 = vadd.f32 %v2419, %v2483
        %v2516 = vadd.f32 %v2420, %v2484
        %v2517 = vadd.f32 %v2421, %v2485
        %v2518 = vadd.f32 %v2422, %v2486
        %v2519 = vadd.f32 %v2423, %v2487
        %v2520 = vadd.f32 %v2424, %v2488
        %v2521 = vadd.f32 %v2425, %v2489
        %v2522 = vadd.f32 %v2426, %v2490
        %v2523 = vadd.f32 %v2427, %v2491
        %v2524 = vadd.f32 %v2428, %v2492
        %v2525 = vadd.f32 %v2429, %v2493
        %v2526 = vpack.c.bf16 %v2496, %v2494
        %v2527 = vpack.c.bf16 %v2497, %v2495
        %v2528 = vpack.c.bf16 %v2500, %v2498
        %v2529 = vpack.c.bf16 %v2501, %v2499
        %v2530 = vpack.c.bf16 %v2504, %v2502
        %v2531 = vpack.c.bf16 %v2505, %v2503
        %v2532 = vpack.c.bf16 %v2508, %v2506
        %v2533 = vpack.c.bf16 %v2509, %v2507
        %v2534 = vpack.c.bf16 %v2512, %v2510
        %v2535 = vpack.c.bf16 %v2513, %v2511
        %v2536 = vpack.c.bf16 %v2516, %v2514
        %v2537 = vpack.c.bf16 %v2517, %v2515
        %v2538 = vpack.c.bf16 %v2520, %v2518
        %v2539 = vpack.c.bf16 %v2521, %v2519
        %v2540 = vpack.c.bf16 %v2524, %v2522
        %v2541 = vpack.c.bf16 %v2525, %v2523
        %v2558 = vunpack.c.l.b16 %v2526
        %v2559 = vunpack.c.l.b16 %v2527
        %v2560 = vunpack.c.h.b16 %v2526
        %v2561 = vunpack.c.h.b16 %v2527
        %v2562 = vunpack.c.l.b16 %v2528
        %v2563 = vunpack.c.l.b16 %v2529
        %v2564 = vunpack.c.h.b16 %v2528
        %v2565 = vunpack.c.h.b16 %v2529
        %v2566 = vunpack.c.l.b16 %v2530
        %v2567 = vunpack.c.l.b16 %v2531
        %v2568 = vunpack.c.h.b16 %v2530
        %v2569 = vunpack.c.h.b16 %v2531
        %v2570 = vunpack.c.l.b16 %v2532
        %v2571 = vunpack.c.l.b16 %v2533
        %v2572 = vunpack.c.h.b16 %v2532
        %v2573 = vunpack.c.h.b16 %v2533
        %v2574 = vunpack.c.l.b16 %v2534
        %v2575 = vunpack.c.l.b16 %v2535
        %v2576 = vunpack.c.h.b16 %v2534
        %v2577 = vunpack.c.h.b16 %v2535
        %v2578 = vunpack.c.l.b16 %v2536
        %v2579 = vunpack.c.l.b16 %v2537
        %v2580 = vunpack.c.h.b16 %v2536
        %v2581 = vunpack.c.h.b16 %v2537
        %v2582 = vunpack.c.l.b16 %v2538
        %v2583 = vunpack.c.l.b16 %v2539
        %v2584 = vunpack.c.h.b16 %v2538
        %v2585 = vunpack.c.h.b16 %v2539
        %v2586 = vunpack.c.l.b16 %v2540
        %v2587 = vunpack.c.l.b16 %v2541
        %v2588 = vunpack.c.h.b16 %v2540
        %v2589 = vunpack.c.h.b16 %v2541
        %v2590 = vpack.c.b16 %v2559, %v2558
        %v2591 = vpack.c.b16 %v2561, %v2560
        %v2592 = vpack.c.b16 %v2563, %v2562
        %v2593 = vpack.c.b16 %v2565, %v2564
        %v2594 = vpack.c.b16 %v2567, %v2566
        %v2595 = vpack.c.b16 %v2569, %v2568
        %v2596 = vpack.c.b16 %v2571, %v2570
        %v2597 = vpack.c.b16 %v2573, %v2572
        %v2598 = vpack.c.b16 %v2575, %v2574
        %v2599 = vpack.c.b16 %v2577, %v2576
        %v2600 = vpack.c.b16 %v2579, %v2578
        %v2601 = vpack.c.b16 %v2581, %v2580
        %v2602 = vpack.c.b16 %v2583, %v2582
        %v2603 = vpack.c.b16 %v2585, %v2584
        %v2604 = vpack.c.b16 %v2587, %v2586
        %v2605 = vpack.c.b16 %v2589, %v2588
        %2622 = vst [vmem:[%s517] sm:$0xff] %v2590
        %2623 = vst [vmem:[%s517 + $0x8] sm:$0xff] %v2591
        %2624 = vst [vmem:[%s517 + $0x10] sm:$0xff] %v2592
        %2625 = vst [vmem:[%s517 + $0x18] sm:$0xff] %v2593
        %2626 = vst [vmem:[%s517 + $0x20] sm:$0xff] %v2594
        %2627 = vst [vmem:[%s517 + $0x28] sm:$0xff] %v2595
        %2628 = vst [vmem:[%s517 + $0x30] sm:$0xff] %v2596
        %2629 = vst [vmem:[%s517 + $0x38] sm:$0xff] %v2597
        %2630 = vst [vmem:[%s517 + $0x40] sm:$0xff] %v2598
        %2631 = vst [vmem:[%s517 + $0x48] sm:$0xff] %v2599
        %2632 = vst [vmem:[%s517 + $0x50] sm:$0xff] %v2600
        %2633 = vst [vmem:[%s517 + $0x58] sm:$0xff] %v2601
        %2634 = vst [vmem:[%s517 + $0x60] sm:$0xff] %v2602
        %2635 = vst [vmem:[%s517 + $0x68] sm:$0xff] %v2603
        %2636 = vst [vmem:[%s517 + $0x70] sm:$0xff] %v2604
        %2637 = vst [vmem:[%s517 + $0x78] sm:$0xff] %v2605
        %v2638 = vpack.c.bf16 %v1830, %v1826
        %v2639 = vpack.c.bf16 %v1832, %v1828
        %v2640 = vpack.c.bf16 %v1840, %v1836
        %v2641 = vpack.c.bf16 %v1842, %v1838
        %v2642 = vpack.c.bf16 %v1850, %v1846
        %v2643 = vpack.c.bf16 %v1852, %v1848
        %v2644 = vpack.c.bf16 %v1860, %v1856
        %v2645 = vpack.c.bf16 %v1862, %v1858
        %v2646 = vpack.c.bf16 %v1870, %v1866
        %v2647 = vpack.c.bf16 %v1872, %v1868
        %v2648 = vpack.c.bf16 %v1880, %v1876
        %v2649 = vpack.c.bf16 %v1882, %v1878
        %v2650 = vpack.c.bf16 %v1890, %v1886
        %v2651 = vpack.c.bf16 %v1892, %v1888
        %v2652 = vpack.c.bf16 %v1900, %v1896
        %v2653 = vpack.c.bf16 %v1902, %v1898
        %v2670 = vunpack.c.l.b16 %v2638
        %v2671 = vunpack.c.l.b16 %v2639
        %v2672 = vunpack.c.h.b16 %v2638
        %v2673 = vunpack.c.h.b16 %v2639
        %v2674 = vunpack.c.l.b16 %v2640
        %v2675 = vunpack.c.l.b16 %v2641
        %v2676 = vunpack.c.h.b16 %v2640
        %v2677 = vunpack.c.h.b16 %v2641
        %v2678 = vunpack.c.l.b16 %v2642
        %v2679 = vunpack.c.l.b16 %v2643
        %v2680 = vunpack.c.h.b16 %v2642
        %v2681 = vunpack.c.h.b16 %v2643
        %v2682 = vunpack.c.l.b16 %v2644
        %v2683 = vunpack.c.l.b16 %v2645
        %v2684 = vunpack.c.h.b16 %v2644
        %v2685 = vunpack.c.h.b16 %v2645
        %v2686 = vunpack.c.l.b16 %v2646
        %v2687 = vunpack.c.l.b16 %v2647
        %v2688 = vunpack.c.h.b16 %v2646
        %v2689 = vunpack.c.h.b16 %v2647
        %v2690 = vunpack.c.l.b16 %v2648
        %v2691 = vunpack.c.l.b16 %v2649
        %v2692 = vunpack.c.h.b16 %v2648
        %v2693 = vunpack.c.h.b16 %v2649
        %v2694 = vunpack.c.l.b16 %v2650
        %v2695 = vunpack.c.l.b16 %v2651
        %v2696 = vunpack.c.h.b16 %v2650
        %v2697 = vunpack.c.h.b16 %v2651
        %v2698 = vunpack.c.l.b16 %v2652
        %v2699 = vunpack.c.l.b16 %v2653
        %v2700 = vunpack.c.h.b16 %v2652
        %v2701 = vunpack.c.h.b16 %v2653
        %v2702 = vpack.c.b16 %v2671, %v2670
        %v2703 = vpack.c.b16 %v2673, %v2672
        %v2704 = vpack.c.b16 %v2675, %v2674
        %v2705 = vpack.c.b16 %v2677, %v2676
        %v2706 = vpack.c.b16 %v2679, %v2678
        %v2707 = vpack.c.b16 %v2681, %v2680
        %v2708 = vpack.c.b16 %v2683, %v2682
        %v2709 = vpack.c.b16 %v2685, %v2684
        %v2710 = vpack.c.b16 %v2687, %v2686
        %v2711 = vpack.c.b16 %v2689, %v2688
        %v2712 = vpack.c.b16 %v2691, %v2690
        %v2713 = vpack.c.b16 %v2693, %v2692
        %v2714 = vpack.c.b16 %v2695, %v2694
        %v2715 = vpack.c.b16 %v2697, %v2696
        %v2716 = vpack.c.b16 %v2699, %v2698
        %v2717 = vpack.c.b16 %v2701, %v2700
        %2734 = vst [vmem:[%s524] sm:$0xff] %v2702
        %2735 = vst [vmem:[%s524 + $0x8] sm:$0xff] %v2703
        %2736 = vst [vmem:[%s524 + $0x10] sm:$0xff] %v2704
        %2737 = vst [vmem:[%s524 + $0x18] sm:$0xff] %v2705
        %2738 = vst [vmem:[%s524 + $0x20] sm:$0xff] %v2706
        %2739 = vst [vmem:[%s524 + $0x28] sm:$0xff] %v2707
        %2740 = vst [vmem:[%s524 + $0x30] sm:$0xff] %v2708
        %2741 = vst [vmem:[%s524 + $0x38] sm:$0xff] %v2709
        %2742 = vst [vmem:[%s524 + $0x40] sm:$0xff] %v2710
        %2743 = vst [vmem:[%s524 + $0x48] sm:$0xff] %v2711
        %2744 = vst [vmem:[%s524 + $0x50] sm:$0xff] %v2712
        %2745 = vst [vmem:[%s524 + $0x58] sm:$0xff] %v2713
        %2746 = vst [vmem:[%s524 + $0x60] sm:$0xff] %v2714
        %2747 = vst [vmem:[%s524 + $0x68] sm:$0xff] %v2715
        %2748 = vst [vmem:[%s524 + $0x70] sm:$0xff] %v2716
        %2749 = vst [vmem:[%s524 + $0x78] sm:$0xff] %v2717
        %s2750 = sand.u32 %s231, 1
        %s2751 = scalar_lea.sflag [#allocation4], %s2750
        %s2752 = sand.u32 %s231, 1
        %s2753 = smul.addr %s2752, 128
        %s2754 = scalar_lea.vmem [#allocation13], %s2753
        %s2755 = sand.u32 %s35, 1
        %s2756 = scalar_lea.sflag [#allocation15], %s2755
        %s2757 = sand.u32 %s259, 1
        %s2758 = smul.addr %s2757, 128
        %s2759 = scalar_lea.vmem [#allocation14], %s2758
        %s2760 = sand.u32 %s35, 1
        %s2761 = scalar_lea.sflag [#allocation15], %s2760
        %s2762 = sand.u32 %s287, 1
        %s2763 = smul.addr %s2762, 128
        %s2764 = scalar_lea.vmem [#allocation16], %s2763
        // Predicated region
        $region73: #{tpu_custom_call.1} parent=47 // pred_check
          %p2765 = pneg %p241
        $region74: #{tpu_custom_call.1} parent=47 // pred_check_branch
          %2767 = sbr.rel (%p2765) target = $region76
        $region75: #{tpu_custom_call.1} parent=47 // pred_region
          %s2768 = smul.u32 16, %s40
          %s2770 = ssub.s32 2048, 2048
          %2771 = vsyncadd %s2751, %s2770
          %s2772 = smul.addr %s2768, 2
          %s2773 = smul.addr %s39, 32
          %s2774 = sadd.s32 %s2772, %s2773
          %s2775 = smul.addr %s2774, 64
          %s2776 = scalar_lea.hbm %s7, %s2775
          %s2777 = sshll.u32 %s2754, 4
          %s2778 = int_to_ptr.vmem [resolvable:$true] %s2777
          %2783 = dma.vmem_to_hbm [thread:$0]  %s2778, 2048, %s2776, %s2751, 128, 128, 8
        $region76: #{tpu_custom_call.1} parent=47 // pred_fallthru
          _
        // Predicated region
        $region77: #{tpu_custom_call.1} parent=47 // pred_check
          %p2784 = pneg %p269
        $region78: #{tpu_custom_call.1} parent=47 // pred_check_branch
          %2786 = sbr.rel (%p2784) target = $region80
        $region79: #{tpu_custom_call.1} parent=47 // pred_region
          %s2787 = smul.u32 16, %s40
          %s2789 = ssub.s32 2048, 2048
          %2790 = vsyncadd %s2756, %s2789
          %s2791 = smul.addr %s2787, 2
          %s2792 = smul.addr %s39, 32
          %s2793 = sadd.s32 %s2791, %s2792
          %s2794 = smul.addr %s2793, 64
          %s2795 = scalar_lea.hbm %s8, %s2794
          %s2796 = sshll.u32 %s2759, 4
          %s2797 = int_to_ptr.vmem [resolvable:$true] %s2796
          %2802 = dma.vmem_to_hbm [thread:$0]  %s2797, 2048, %s2795, %s2756, 128, 128, 8
        $region80: #{tpu_custom_call.1} parent=47 // pred_fallthru
          _
        // Predicated region
        $region81: #{tpu_custom_call.1} parent=47 // pred_check
          %p2803 = pneg %p297
        $region82: #{tpu_custom_call.1} parent=47 // pred_check_branch
          %2805 = sbr.rel (%p2803) target = $region84
        $region83: #{tpu_custom_call.1} parent=47 // pred_region
          %s2806 = smul.u32 16, %s40
          %s2808 = ssub.s32 2048, 2048
          %2809 = vsyncadd %s2761, %s2808
          %s2810 = smul.addr %s2806, 2
          %s2811 = smul.addr %s39, 32
          %s2812 = sadd.s32 %s2810, %s2811
          %s2813 = smul.addr %s2812, 64
          %s2814 = scalar_lea.hbm %s9, %s2813
          %s2815 = sshll.u32 %s2764, 4
          %s2816 = int_to_ptr.vmem [resolvable:$true] %s2815
          %2821 = dma.vmem_to_hbm [thread:$0]  %s2816, 2048, %s2814, %s2761, 128, 128, 8
        $region84: #{tpu_custom_call.1} parent=47 // pred_fallthru
          _
      $region48: #{tpu_custom_call.1} parent=5 // pred_fallthru
        _
      %p2822 = scmp.le.s32.totalorder 2, %s30
      // Predicated region
      $region85: #{tpu_custom_call.1} parent=5 // pred_check
        %p2823 = pneg %p2822
      $region86: #{tpu_custom_call.1} parent=5 // pred_check_branch
        %2825 = sbr.rel (%p2823) target = $region88
      $region87: #{tpu_custom_call.1} parent=5 // pred_region
        %s2826 = ssub.s32 %s30, 2
        // Predicated region
        $region89: #{tpu_custom_call.1} parent=87 // pred_check
          %p2827 = pneg %p247
        $region90: #{tpu_custom_call.1} parent=87 // pred_check_branch
          %2829 = sbr.rel (%p2827) target = $region92
        $region91: #{tpu_custom_call.1} parent=87 // pred_region
          %s2830 = sand.u32 %s232, 1
          %s2831 = scalar_lea.sflag [#allocation4], %s2830
          %s2832 = sand.u32 %s232, 1
          %s2833 = smul.addr %s2832, 128
          %s2834 = scalar_lea.vmem [#allocation13], %s2833
          %2835 = dma.done %s2831, 2048
        $region92: #{tpu_custom_call.1} parent=87 // pred_fallthru
          _
        // Predicated region
        $region93: #{tpu_custom_call.1} parent=87 // pred_check
          %p2836 = pneg %p275
        $region94: #{tpu_custom_call.1} parent=87 // pred_check_branch
          %2838 = sbr.rel (%p2836) target = $region96
        $region95: #{tpu_custom_call.1} parent=87 // pred_region
          %s2839 = sand.u32 %s36, 1
          %s2840 = scalar_lea.sflag [#allocation15], %s2839
          %s2841 = sand.u32 %s260, 1
          %s2842 = smul.addr %s2841, 128
          %s2843 = scalar_lea.vmem [#allocation14], %s2842
          %2844 = dma.done %s2840, 2048
        $region96: #{tpu_custom_call.1} parent=87 // pred_fallthru
          _
        // Predicated region
        $region97: #{tpu_custom_call.1} parent=87 // pred_check
          %p2845 = pneg %p303
        $region98: #{tpu_custom_call.1} parent=87 // pred_check_branch
          %2847 = sbr.rel (%p2845) target = $region100
        $region99: #{tpu_custom_call.1} parent=87 // pred_region
          %s2848 = sand.u32 %s36, 1
          %s2849 = scalar_lea.sflag [#allocation15], %s2848
          %s2850 = sand.u32 %s288, 1
          %s2851 = smul.addr %s2850, 128
          %s2852 = scalar_lea.vmem [#allocation16], %s2851
          %2853 = dma.done %s2849, 2048
        $region100: #{tpu_custom_call.1} parent=87 // pred_fallthru
          _
      $region88: #{tpu_custom_call.1} parent=5 // pred_fallthru
        _
    $region6: #{tpu_custom_call.1} parent=1 // loop_footer
      %s34 = sadd.s32 1, %s30
    $region7: #{tpu_custom_call.1} parent=1 // loop_footer_branch
      %29 = sbr.rel target = $region3
    $region8: #{tpu_custom_call.1} parent=1 // loop_exit
      _
    %2854 = vsyncpa [#allocation3], 1
    %s2855 = scalar_lea.sflag [#allocation3], 1
    %2856 = vsyncpa %s2855, 1
    %2857 = vsyncpa [#allocation6], 1
    %s2858 = scalar_lea.sflag [#allocation6], 1
    %2859 = vsyncpa %s2858, 1
    %2860 = vsyncpa [#allocation9], 1
    %2861 = vsyncpa [#allocation12], 1
    %2862 = vsyncpa [#allocation4], 1
    %s2863 = scalar_lea.sflag [#allocation4], 1
    %2864 = vsyncpa %s2863, 1
    %2865 = vsyncpa [#allocation15], 1
    %s2866 = scalar_lea.sflag [#allocation15], 1
    %2867 = vsyncpa %s2866, 1

</llo_original>
